<compile_context>
chip_gen: v6e
topology: v6e:2x2x1
jax: 0.10.0
libtpu: 0.0.40
codegen_flags: <defaults>
</compile_context>

<pallas_src>
import math

import jax
import jax.numpy as jnp
from jax import lax
from jax.experimental import pallas as pl
from jax.experimental.pallas import tpu as pltpu  # noqa: F401  (TPU backend assumed)

# ----- small, module-consistent hyperparameters ------------------------------
NTOKEN = 50
D_MODEL = 32
NHEAD = 4           # matches the reference module
D_HID = 64
NLAYERS = 2
SEQ = 8
BATCH = 2
HD = D_MODEL // NHEAD
BS = BATCH * SEQ
LN_EPS = 1e-5
NTOKEN_PAD = 128    # lane-dense decoder output width
VEC_W = 128         # width of the packed bias/LayerNorm slab
NEG = -1e9          # finite "minus infinity" for the additive mask

# globals slab layout (rows)
DEC_W_ROW = 0                    # rows [0, 32):  decoder weight, lanes 0:NTOKEN
DEC_B_ROW = D_MODEL              # row 32:        decoder bias,   lanes 0:NTOKEN
MASK_ROW = 40                    # rows [40, 56): [BS, BS] additive mask, lanes 0:BS
GLOB_ROWS = MASK_ROW + BS        # 56


# ----- the fused Pallas kernel ------------------------------------------------
def fused_transformer_kernel(x_ref, wqkv_ref, wmisc_ref, vec_ref, glob_ref, o_ref):
    """Entire forward: NLAYERS post-LN encoder layers + decoder matmul.

    x_ref:     [BS, D]        scaled embeddings + positional encoding
    wqkv_ref:  [L, D, 128]    fused Wq|Wk|Wv, lane-padded (lanes 0:96 real)
    wmisc_ref: [L, 64, 128]   rows 0:32 lanes 0:32 = Wo, lanes 32:96 = W1,
                              rows 0:64 lanes 96:128 = W2
    vec_ref:   [L, 8, 128]    rows: bo, b1, b2, ln1g, ln1b, ln2g, ln2b, bq|bk|bv
    glob_ref:  [56, 128]      rows 0:32 dec_w (padded), row 32 dec_b,
                              rows 40:56 lanes 0:16 block-diag additive mask
    o_ref:     [BS, 128]      lane-dense padded logits
    """
    x = x_ref[...]                                    # [BS, D]
    glob = glob_ref[...]                              # [56, 128]
    mask = glob[MASK_ROW:MASK_ROW + BS, 0:BS]         # [BS, BS] finite additive mask
    dec_w = glob[DEC_W_ROW:DEC_W_ROW + D_MODEL, :]    # [D, 128]
    dec_b = glob[DEC_B_ROW:DEC_B_ROW + 1, :]          # [1, 128]
    scale = jnp.float32(1.0 / math.sqrt(HD))

    for l in range(NLAYERS):                          # static unroll, weights stay in VMEM
        wqkv = wqkv_ref[l]                            # [D, 128]
        wmisc = wmisc_ref[l]                          # [64, 128]
        vec = vec_ref[l]                              # [8, 128]
        bo = vec[0:1, :D_MODEL]
        b1 = vec[1:2, :D_HID]
        b2 = vec[2:3, :D_MODEL]
        ln1g, ln1b = vec[3:4, :D_MODEL], vec[4:5, :D_MODEL]
        ln2g, ln2b = vec[5:6, :D_MODEL], vec[6:7, :D_MODEL]
        bqkv = vec[7:8, :]                            # [1, 128] (lanes 96:128 are zero)
        wo = wmisc[0:D_MODEL, 0:D_MODEL]              # [32, 32]
        w1 = wmisc[0:D_MODEL, D_MODEL:D_MODEL + D_HID]          # [32, 64]
        w2 = wmisc[0:D_HID, D_MODEL + D_HID:D_MODEL + D_HID + D_MODEL]  # [64, 32]

        # ---- multi-head self-attention: ONE fused QKV matmul ----
        qkv = jnp.dot(x, wqkv, preferred_element_type=jnp.float32) + bqkv   # [BS, 128]

        o_heads = []
        for h in range(NHEAD):                        # static 8-lane slices per head
            q_h = qkv[:, h * HD:(h + 1) * HD]                         # [BS, HD]
            k_h = qkv[:, D_MODEL + h * HD:D_MODEL + (h + 1) * HD]     # [BS, HD]
            v_h = qkv[:, 2 * D_MODEL + h * HD:2 * D_MODEL + (h + 1) * HD]

            s = lax.dot_general(q_h, k_h, (((1,), (1,)), ((), ())),
                                preferred_element_type=jnp.float32) * scale + mask
            s = s - jnp.max(s, axis=-1, keepdims=True)
            e = jnp.exp(s)
            p = e * pl.reciprocal(jnp.sum(e, axis=-1, keepdims=True), approx=True)
            o_heads.append(jnp.dot(p, v_h, preferred_element_type=jnp.float32))

        oh = jnp.concatenate(o_heads, axis=1)                         # [BS, D]
        attn = jnp.dot(oh, wo, preferred_element_type=jnp.float32) + bo

        # ---- residual + LayerNorm1 (one-pass variance; dropout == identity) ----
        y = x + attn
        mu = jnp.mean(y, axis=-1, keepdims=True)
        var = jnp.mean(y * y, axis=-1, keepdims=True) - mu * mu
        y = (y - mu) * lax.rsqrt(var + LN_EPS) * ln1g + ln1b

        # ---- feed-forward (ReLU) + residual + LayerNorm2 ----
        h1 = jnp.maximum(jnp.dot(y, w1, preferred_element_type=jnp.float32) + b1, 0.0)
        h2 = jnp.dot(h1, w2, preferred_element_type=jnp.float32) + b2
        z = y + h2
        mu2 = jnp.mean(z, axis=-1, keepdims=True)
        var2 = jnp.mean(z * z, axis=-1, keepdims=True) - mu2 * mu2
        x = (z - mu2) * lax.rsqrt(var2 + LN_EPS) * ln2g + ln2b

    # ---- decoder: lane-dense 128-wide padded logits ----
    o_ref[...] = jnp.dot(x, dec_w, preferred_element_type=jnp.float32) + dec_b


# ----- wrapper ----------------------------------------------------------------
def pack_params(params):
    """Pack per-layer PyTorch-style params into a few dense, DMA-friendly slabs."""
    wqkv_l, wmisc_l, vec_l = [], [], []
    for p in params['layers']:
        wqkv = jnp.zeros((D_MODEL, 128), jnp.float32)
        wqkv = wqkv.at[:, 0:D_MODEL].set(p['wq'])
        wqkv = wqkv.at[:, D_MODEL:2 * D_MODEL].set(p['wk'])
        wqkv = wqkv.at[:, 2 * D_MODEL:3 * D_MODEL].set(p['wv'])
        wqkv_l.append(wqkv)

        wmisc = jnp.zeros((D_HID, 128), jnp.float32)
        wmisc = wmisc.at[0:D_MODEL, 0:D_MODEL].set(p['wo'])
        wmisc = wmisc.at[0:D_MODEL, D_MODEL:D_MODEL + D_HID].set(p['w1'])
        wmisc = wmisc.at[0:D_HID, D_MODEL + D_HID:D_MODEL + D_HID + D_MODEL].set(p['w2'])
        wmisc_l.append(wmisc)

        slab = jnp.zeros((8, VEC_W), jnp.float32)
        slab = slab.at[0, :D_MODEL].set(p['bo'])
        slab = slab.at[1, :D_HID].set(p['b1'])
        slab = slab.at[2, :D_MODEL].set(p['b2'])
        slab = slab.at[3, :D_MODEL].set(p['ln1g'])
        slab = slab.at[4, :D_MODEL].set(p['ln1b'])
        slab = slab.at[5, :D_MODEL].set(p['ln2g'])
        slab = slab.at[6, :D_MODEL].set(p['ln2b'])
        slab = slab.at[7, 0:D_MODEL].set(p['bq'])
        slab = slab.at[7, D_MODEL:2 * D_MODEL].set(p['bk'])
        slab = slab.at[7, 2 * D_MODEL:3 * D_MODEL].set(p['bv'])
        vec_l.append(slab)

    glob = jnp.zeros((GLOB_ROWS, 128), jnp.float32)
    glob = glob.at[DEC_W_ROW:DEC_W_ROW + D_MODEL, 0:NTOKEN].set(params['dec_w'])
    glob = glob.at[DEC_B_ROW, 0:NTOKEN].set(params['dec_b'])

    return {
        'emb': params['emb'], 'pe': params['pe'],
        'wqkv': jnp.stack(wqkv_l), 'wmisc': jnp.stack(wmisc_l),
        'vec': jnp.stack(vec_l), 'glob': glob,
    }


def transformer_forward(src, src_mask, packed):
    # Embedding gather + sqrt(d_model) scale + positional encoding: plain-JAX glue
    # next to the gather (XLA fuses it; not worth a kernel launch).
    x = packed['emb'][src] * jnp.float32(math.sqrt(D_MODEL))          # [S, B, D]
    x = x + packed['pe'][:SEQ][:, None, :]
    x = jnp.transpose(x, (1, 0, 2)).reshape(BS, D_MODEL)              # [B*S, D]

    # Block-diagonal causal mask over the flattened batch*seq axis (finite -1e9),
    # folded into the single "globals" slab so it rides the existing DMA.
    finite = jnp.maximum(src_mask.astype(jnp.float32), jnp.float32(NEG))
    bid = jnp.arange(BS, dtype=jnp.int32) // SEQ
    same_batch = bid[:, None] == bid[None, :]
    big_mask = jnp.where(same_batch, jnp.tile(finite, (BATCH, BATCH)), jnp.float32(NEG))
    glob = lax.dynamic_update_slice(packed['glob'], big_mask, (MASK_ROW, 0))

    logits_pad = pl.pallas_call(
        fused_transformer_kernel,
        out_shape=jax.ShapeDtypeStruct((BS, NTOKEN_PAD), jnp.float32),
    )(x, packed['wqkv'], packed['wmisc'], packed['vec'], glob)

    logits = logits_pad[:, :NTOKEN].reshape(BATCH, SEQ, NTOKEN)
    return jnp.transpose(logits, (1, 0, 2))                           # [S, B, ntoken]


# ----- deterministic parameter construction -----------------------------------
def make_positional_encoding(max_len, d_model):
    position = jnp.arange(max_len, dtype=jnp.float32)[:, None]
    div_term = jnp.exp(jnp.arange(0, d_model, 2, dtype=jnp.float32)
                       * (-math.log(10000.0) / d_model))
    pe = jnp.zeros((max_len, d_model), jnp.float32)
    pe = pe.at[:, 0::2].set(jnp.sin(position * div_term))
    pe = pe.at[:, 1::2].set(jnp.cos(position * div_term))
    return pe


def init_params(key):
    keys = jax.random.split(key, 2 + NLAYERS)
    params = {
        'emb': jax.random.uniform(keys[0], (NTOKEN, D_MODEL), jnp.float32, -0.1, 0.1),
        'dec_w': jax.random.uniform(keys[1], (D_MODEL, NTOKEN), jnp.float32, -0.1, 0.1),
        'dec_b': jnp.zeros((NTOKEN,), jnp.float32),
        'pe': make_positional_encoding(64, D_MODEL),
        'layers': [],
    }
    sa = 1.0 / math.sqrt(D_MODEL)
    sh = 1.0 / math.sqrt(D_HID)
    for i in range(NLAYERS):
        k = jax.random.split(keys[2 + i], 10)
        layer = dict(
            wq=jax.random.uniform(k[0], (D_MODEL, D_MODEL), jnp.float32, -sa, sa),
            wk=jax.random.uniform(k[1], (D_MODEL, D_MODEL), jnp.float32, -sa, sa),
            wv=jax.random.uniform(k[2], (D_MODEL, D_MODEL), jnp.float32, -sa, sa),
            wo=jax.random.uniform(k[3], (D_MODEL, D_MODEL), jnp.float32, -sa, sa),
            bq=jax.random.uniform(k[4], (D_MODEL,), jnp.float32, -sa, sa),
            bk=jax.random.uniform(k[5], (D_MODEL,), jnp.float32, -sa, sa),
            bv=jax.random.uniform(k[6], (D_MODEL,), jnp.float32, -sa, sa),
            bo=jnp.zeros((D_MODEL,), jnp.float32),
            w1=jax.random.uniform(k[7], (D_MODEL, D_HID), jnp.float32, -sa, sa),
            b1=jax.random.uniform(k[8], (D_HID,), jnp.float32, -sa, sa),
            w2=jax.random.uniform(k[9], (D_HID, D_MODEL), jnp.float32, -sh, sh),
            b2=jnp.zeros((D_MODEL,), jnp.float32),
            ln1g=jnp.ones((D_MODEL,), jnp.float32),
            ln1b=jnp.zeros((D_MODEL,), jnp.float32),
            ln2g=jnp.ones((D_MODEL,), jnp.float32),
            ln2b=jnp.zeros((D_MODEL,), jnp.float32),
        )
        params['layers'].append(layer)
    return params


# ----- pure-JAX reference (same math, no Pallas) -------------------------------
def reference_forward(src, src_mask, params):
    def layer_norm(x, g, b):
        mu = jnp.mean(x, axis=-1, keepdims=True)
        var = jnp.mean((x - mu) ** 2, axis=-1, keepdims=True)
        return (x - mu) * lax.rsqrt(var + LN_EPS) * g + b

    x = params['emb'][src] * math.sqrt(D_MODEL) + params['pe'][:SEQ][:, None, :]  # [S,B,D]
    x = jnp.transpose(x, (1, 0, 2))                                               # [B,S,D]
    for p in params['layers']:
        q = x @ p['wq'] + p['bq']
        k = x @ p['wk'] + p['bk']
        v = x @ p['wv'] + p['bv']
        qh = q.reshape(BATCH, SEQ, NHEAD, HD).transpose(0, 2, 1, 3)
        kh = k.reshape(BATCH, SEQ, NHEAD, HD).transpose(0, 2, 1, 3)
        vh = v.reshape(BATCH, SEQ, NHEAD, HD).transpose(0, 2, 1, 3)
        s = jnp.einsum('bhqd,bhkd->bhqk', qh, kh) / math.sqrt(HD) + src_mask
        pattn = jax.nn.softmax(s, axis=-1)
        o = jnp.einsum('bhqk,bhkd->bhqd', pattn, vh)
        o = o.transpose(0, 2, 1, 3).reshape(BATCH, SEQ, D_MODEL)
        x = layer_norm(x + (o @ p['wo'] + p['bo']), p['ln1g'], p['ln1b'])
        ff = jnp.maximum(x @ p['w1'] + p['b1'], 0.0) @ p['w2'] + p['b2']
        x = layer_norm(x + ff, p['ln2g'], p['ln2b'])
    logits = x @ params['dec_w'] + params['dec_b']
    return logits.transpose(1, 0, 2)                                              # [S,B,V]


# ----- main --------------------------------------------------------------------
if __name__ == "__main__":
    key = jax.random.PRNGKey(0)
    k_param, k_src = jax.random.split(key)
    params = init_params(k_param)
    packed = pack_params(params)

    src = jax.random.randint(k_src, (SEQ, BATCH), 0, NTOKEN, dtype=jnp.int32)
    # causal mask (generate_square_subsequent_mask): -inf above diagonal, 0 elsewhere
    src_mask = jnp.where(jnp.triu(jnp.ones((SEQ, SEQ), bool), k=1),
                         -jnp.inf, 0.0).astype(jnp.float32)

    out = jax.jit(transformer_forward)(src, src_mask, packed)
    out = jax.block_until_ready(out)
    assert out.shape == (SEQ, BATCH, NTOKEN), out.shape

    ref = reference_forward(src, src_mask, params)
    max_err = float(jnp.max(jnp.abs(out - ref)))
    assert jnp.allclose(out, ref, rtol=1e-3, atol=1e-3), max_err

    print("KERNEL_OK")
</pallas_src>

<mosaic_0001>
module attributes {stable_mosaic.version = 11 : i64} {
  func.func @fused_transformer_kernel(%arg0: memref<16x32xf32, #tpu.memory_space<vmem>>, %arg1: memref<2x32x128xf32, #tpu.memory_space<vmem>>, %arg2: memref<2x64x128xf32, #tpu.memory_space<vmem>>, %arg3: memref<2x8x128xf32, #tpu.memory_space<vmem>>, %arg4: memref<56x128xf32, #tpu.memory_space<vmem>>, %arg5: memref<16x128xf32, #tpu.memory_space<vmem>>) attributes {dimension_semantics = [], scalar_prefetch = 0 : i64, scratch_operands = 0 : i64, tpu.core_type = #tpu.core_type<tc>} {
    %c0 = arith.constant 0 : index
    %c0_0 = arith.constant 0 : index
    %0 = vector.load %arg0[%c0, %c0_0] : memref<16x32xf32, #tpu.memory_space<vmem>>, vector<16x32xf32>
    %c0_1 = arith.constant 0 : index
    %c0_2 = arith.constant 0 : index
    %1 = vector.load %arg4[%c0_1, %c0_2] : memref<56x128xf32, #tpu.memory_space<vmem>>, vector<56x128xf32>
    %2 = vector.extract_strided_slice %1 {offsets = [40, 0], sizes = [16, 16], strides = [1, 1]} : vector<56x128xf32> to vector<16x16xf32>
    %3 = vector.extract_strided_slice %1 {offsets = [0, 0], sizes = [32, 128], strides = [1, 1]} : vector<56x128xf32> to vector<32x128xf32>
    %4 = vector.extract_strided_slice %1 {offsets = [32, 0], sizes = [1, 128], strides = [1, 1]} : vector<56x128xf32> to vector<1x128xf32>
    %c0_3 = arith.constant 0 : index
    %c0_4 = arith.constant 0 : index
    %c0_5 = arith.constant 0 : index
    %5 = vector.load %arg1[%c0_3, %c0_4, %c0_5] : memref<2x32x128xf32, #tpu.memory_space<vmem>>, vector<1x32x128xf32>
    %6 = vector.shape_cast %5 : vector<1x32x128xf32> to vector<32x128xf32>
    %c0_6 = arith.constant 0 : index
    %c0_7 = arith.constant 0 : index
    %c0_8 = arith.constant 0 : index
    %7 = vector.load %arg2[%c0_6, %c0_7, %c0_8] : memref<2x64x128xf32, #tpu.memory_space<vmem>>, vector<1x64x128xf32>
    %8 = vector.shape_cast %7 : vector<1x64x128xf32> to vector<64x128xf32>
    %c0_9 = arith.constant 0 : index
    %c0_10 = arith.constant 0 : index
    %c0_11 = arith.constant 0 : index
    %9 = vector.load %arg3[%c0_9, %c0_10, %c0_11] : memref<2x8x128xf32, #tpu.memory_space<vmem>>, vector<1x8x128xf32>
    %10 = vector.shape_cast %9 : vector<1x8x128xf32> to vector<8x128xf32>
    %11 = vector.extract_strided_slice %10 {offsets = [0, 0], sizes = [1, 32], strides = [1, 1]} : vector<8x128xf32> to vector<1x32xf32>
    %12 = vector.extract_strided_slice %10 {offsets = [1, 0], sizes = [1, 64], strides = [1, 1]} : vector<8x128xf32> to vector<1x64xf32>
    %13 = vector.extract_strided_slice %10 {offsets = [2, 0], sizes = [1, 32], strides = [1, 1]} : vector<8x128xf32> to vector<1x32xf32>
    %14 = vector.extract_strided_slice %10 {offsets = [3, 0], sizes = [1, 32], strides = [1, 1]} : vector<8x128xf32> to vector<1x32xf32>
    %15 = vector.extract_strided_slice %10 {offsets = [4, 0], sizes = [1, 32], strides = [1, 1]} : vector<8x128xf32> to vector<1x32xf32>
    %16 = vector.extract_strided_slice %10 {offsets = [5, 0], sizes = [1, 32], strides = [1, 1]} : vector<8x128xf32> to vector<1x32xf32>
    %17 = vector.extract_strided_slice %10 {offsets = [6, 0], sizes = [1, 32], strides = [1, 1]} : vector<8x128xf32> to vector<1x32xf32>
    %18 = vector.extract_strided_slice %10 {offsets = [7, 0], sizes = [1, 128], strides = [1, 1]} : vector<8x128xf32> to vector<1x128xf32>
    %19 = vector.extract_strided_slice %8 {offsets = [0, 0], sizes = [32, 32], strides = [1, 1]} : vector<64x128xf32> to vector<32x32xf32>
    %20 = vector.extract_strided_slice %8 {offsets = [0, 32], sizes = [32, 64], strides = [1, 1]} : vector<64x128xf32> to vector<32x64xf32>
    %21 = vector.extract_strided_slice %8 {offsets = [0, 96], sizes = [64, 32], strides = [1, 1]} : vector<64x128xf32> to vector<64x32xf32>
    %cst = arith.constant dense<0.000000e+00> : vector<16x128xf32>
    %22 = tpu.matmul %0, %6, %cst {dimension_numbers = #tpu.dot_dimension_numbers<[1], [0], [0], [1], [0, 0, 1, 1], [], []>} : vector<16x32xf32>, vector<32x128xf32>, vector<16x128xf32> -> vector<16x128xf32>
    %23 = vector.broadcast %18 : vector<1x128xf32> to vector<16x128xf32>
    %24 = arith.addf %22, %23 : vector<16x128xf32>
    %25 = vector.extract_strided_slice %24 {offsets = [0, 0], sizes = [16, 8], strides = [1, 1]} : vector<16x128xf32> to vector<16x8xf32>
    %26 = vector.extract_strided_slice %24 {offsets = [0, 32], sizes = [16, 8], strides = [1, 1]} : vector<16x128xf32> to vector<16x8xf32>
    %27 = vector.extract_strided_slice %24 {offsets = [0, 64], sizes = [16, 8], strides = [1, 1]} : vector<16x128xf32> to vector<16x8xf32>
    %cst_12 = arith.constant dense<0.000000e+00> : vector<16x16xf32>
    %28 = tpu.matmul %25, %26, %cst_12 {dimension_numbers = #tpu.dot_dimension_numbers<[1], [1], [0], [0], [0, 0, 1, 0], [], []>} : vector<16x8xf32>, vector<16x8xf32>, vector<16x16xf32> -> vector<16x16xf32>
    %cst_13 = arith.constant 0.353553385 : f32
    %29 = vector.broadcast %cst_13 : f32 to vector<16x16xf32>
    %30 = arith.mulf %28, %29 : vector<16x16xf32>
    %31 = arith.addf %30, %2 : vector<16x16xf32>
    %cst_14 = arith.constant dense<0xFF800000> : vector<16xf32>
    %32 = vector.multi_reduction <maximumf>, %31, %cst_14 [1] : vector<16x16xf32> to vector<16xf32>
    %33 = vector.shape_cast %32 : vector<16xf32> to vector<16x1xf32>
    %34 = vector.broadcast %33 : vector<16x1xf32> to vector<16x16xf32>
    %35 = arith.subf %31, %34 : vector<16x16xf32>
    %36 = math.exp %35 : vector<16x16xf32>
    %cst_15 = arith.constant dense<0.000000e+00> : vector<16xf32>
    %37 = vector.multi_reduction <add>, %36, %cst_15 [1] : vector<16x16xf32> to vector<16xf32>
    %38 = vector.shape_cast %37 : vector<16xf32> to vector<16x1xf32>
    %39 = tpu.reciprocal %38 {approx = true} : vector<16x1xf32> -> vector<16x1xf32>
    %40 = vector.broadcast %39 : vector<16x1xf32> to vector<16x16xf32>
    %41 = arith.mulf %36, %40 : vector<16x16xf32>
    %cst_16 = arith.constant dense<0.000000e+00> : vector<16x8xf32>
    %42 = tpu.matmul %41, %27, %cst_16 {dimension_numbers = #tpu.dot_dimension_numbers<[1], [0], [0], [1], [0, 0, 1, 1], [], []>} : vector<16x16xf32>, vector<16x8xf32>, vector<16x8xf32> -> vector<16x8xf32>
    %43 = vector.extract_strided_slice %24 {offsets = [0, 8], sizes = [16, 8], strides = [1, 1]} : vector<16x128xf32> to vector<16x8xf32>
    %44 = vector.extract_strided_slice %24 {offsets = [0, 40], sizes = [16, 8], strides = [1, 1]} : vector<16x128xf32> to vector<16x8xf32>
    %45 = vector.extract_strided_slice %24 {offsets = [0, 72], sizes = [16, 8], strides = [1, 1]} : vector<16x128xf32> to vector<16x8xf32>
    %cst_17 = arith.constant dense<0.000000e+00> : vector<16x16xf32>
    %46 = tpu.matmul %43, %44, %cst_17 {dimension_numbers = #tpu.dot_dimension_numbers<[1], [1], [0], [0], [0, 0, 1, 0], [], []>} : vector<16x8xf32>, vector<16x8xf32>, vector<16x16xf32> -> vector<16x16xf32>
    %cst_18 = arith.constant 0.353553385 : f32
    %47 = vector.broadcast %cst_18 : f32 to vector<16x16xf32>
    %48 = arith.mulf %46, %47 : vector<16x16xf32>
    %49 = arith.addf %48, %2 : vector<16x16xf32>
    %cst_19 = arith.constant dense<0xFF800000> : vector<16xf32>
    %50 = vector.multi_reduction <maximumf>, %49, %cst_19 [1] : vector<16x16xf32> to vector<16xf32>
    %51 = vector.shape_cast %50 : vector<16xf32> to vector<16x1xf32>
    %52 = vector.broadcast %51 : vector<16x1xf32> to vector<16x16xf32>
    %53 = arith.subf %49, %52 : vector<16x16xf32>
    %54 = math.exp %53 : vector<16x16xf32>
    %cst_20 = arith.constant dense<0.000000e+00> : vector<16xf32>
    %55 = vector.multi_reduction <add>, %54, %cst_20 [1] : vector<16x16xf32> to vector<16xf32>
    %56 = vector.shape_cast %55 : vector<16xf32> to vector<16x1xf32>
    %57 = tpu.reciprocal %56 {approx = true} : vector<16x1xf32> -> vector<16x1xf32>
    %58 = vector.broadcast %57 : vector<16x1xf32> to vector<16x16xf32>
    %59 = arith.mulf %54, %58 : vector<16x16xf32>
    %cst_21 = arith.constant dense<0.000000e+00> : vector<16x8xf32>
    %60 = tpu.matmul %59, %45, %cst_21 {dimension_numbers = #tpu.dot_dimension_numbers<[1], [0], [0], [1], [0, 0, 1, 1], [], []>} : vector<16x16xf32>, vector<16x8xf32>, vector<16x8xf32> -> vector<16x8xf32>
    %61 = vector.extract_strided_slice %24 {offsets = [0, 16], sizes = [16, 8], strides = [1, 1]} : vector<16x128xf32> to vector<16x8xf32>
    %62 = vector.extract_strided_slice %24 {offsets = [0, 48], sizes = [16, 8], strides = [1, 1]} : vector<16x128xf32> to vector<16x8xf32>
    %63 = vector.extract_strided_slice %24 {offsets = [0, 80], sizes = [16, 8], strides = [1, 1]} : vector<16x128xf32> to vector<16x8xf32>
    %cst_22 = arith.constant dense<0.000000e+00> : vector<16x16xf32>
    %64 = tpu.matmul %61, %62, %cst_22 {dimension_numbers = #tpu.dot_dimension_numbers<[1], [1], [0], [0], [0, 0, 1, 0], [], []>} : vector<16x8xf32>, vector<16x8xf32>, vector<16x16xf32> -> vector<16x16xf32>
    %cst_23 = arith.constant 0.353553385 : f32
    %65 = vector.broadcast %cst_23 : f32 to vector<16x16xf32>
    %66 = arith.mulf %64, %65 : vector<16x16xf32>
    %67 = arith.addf %66, %2 : vector<16x16xf32>
    %cst_24 = arith.constant dense<0xFF800000> : vector<16xf32>
    %68 = vector.multi_reduction <maximumf>, %67, %cst_24 [1] : vector<16x16xf32> to vector<16xf32>
    %69 = vector.shape_cast %68 : vector<16xf32> to vector<16x1xf32>
    %70 = vector.broadcast %69 : vector<16x1xf32> to vector<16x16xf32>
    %71 = arith.subf %67, %70 : vector<16x16xf32>
    %72 = math.exp %71 : vector<16x16xf32>
    %cst_25 = arith.constant dense<0.000000e+00> : vector<16xf32>
    %73 = vector.multi_reduction <add>, %72, %cst_25 [1] : vector<16x16xf32> to vector<16xf32>
    %74 = vector.shape_cast %73 : vector<16xf32> to vector<16x1xf32>
    %75 = tpu.reciprocal %74 {approx = true} : vector<16x1xf32> -> vector<16x1xf32>
    %76 = vector.broadcast %75 : vector<16x1xf32> to vector<16x16xf32>
    %77 = arith.mulf %72, %76 : vector<16x16xf32>
    %cst_26 = arith.constant dense<0.000000e+00> : vector<16x8xf32>
    %78 = tpu.matmul %77, %63, %cst_26 {dimension_numbers = #tpu.dot_dimension_numbers<[1], [0], [0], [1], [0, 0, 1, 1], [], []>} : vector<16x16xf32>, vector<16x8xf32>, vector<16x8xf32> -> vector<16x8xf32>
    %79 = vector.extract_strided_slice %24 {offsets = [0, 24], sizes = [16, 8], strides = [1, 1]} : vector<16x128xf32> to vector<16x8xf32>
    %80 = vector.extract_strided_slice %24 {offsets = [0, 56], sizes = [16, 8], strides = [1, 1]} : vector<16x128xf32> to vector<16x8xf32>
    %81 = vector.extract_strided_slice %24 {offsets = [0, 88], sizes = [16, 8], strides = [1, 1]} : vector<16x128xf32> to vector<16x8xf32>
    %cst_27 = arith.constant dense<0.000000e+00> : vector<16x16xf32>
    %82 = tpu.matmul %79, %80, %cst_27 {dimension_numbers = #tpu.dot_dimension_numbers<[1], [1], [0], [0], [0, 0, 1, 0], [], []>} : vector<16x8xf32>, vector<16x8xf32>, vector<16x16xf32> -> vector<16x16xf32>
    %cst_28 = arith.constant 0.353553385 : f32
    %83 = vector.broadcast %cst_28 : f32 to vector<16x16xf32>
    %84 = arith.mulf %82, %83 : vector<16x16xf32>
    %85 = arith.addf %84, %2 : vector<16x16xf32>
    %cst_29 = arith.constant dense<0xFF800000> : vector<16xf32>
    %86 = vector.multi_reduction <maximumf>, %85, %cst_29 [1] : vector<16x16xf32> to vector<16xf32>
    %87 = vector.shape_cast %86 : vector<16xf32> to vector<16x1xf32>
    %88 = vector.broadcast %87 : vector<16x1xf32> to vector<16x16xf32>
    %89 = arith.subf %85, %88 : vector<16x16xf32>
    %90 = math.exp %89 : vector<16x16xf32>
    %cst_30 = arith.constant dense<0.000000e+00> : vector<16xf32>
    %91 = vector.multi_reduction <add>, %90, %cst_30 [1] : vector<16x16xf32> to vector<16xf32>
    %92 = vector.shape_cast %91 : vector<16xf32> to vector<16x1xf32>
    %93 = tpu.reciprocal %92 {approx = true} : vector<16x1xf32> -> vector<16x1xf32>
    %94 = vector.broadcast %93 : vector<16x1xf32> to vector<16x16xf32>
    %95 = arith.mulf %90, %94 : vector<16x16xf32>
    %cst_31 = arith.constant dense<0.000000e+00> : vector<16x8xf32>
    %96 = tpu.matmul %95, %81, %cst_31 {dimension_numbers = #tpu.dot_dimension_numbers<[1], [0], [0], [1], [0, 0, 1, 1], [], []>} : vector<16x16xf32>, vector<16x8xf32>, vector<16x8xf32> -> vector<16x8xf32>
    %97 = tpu.concatenate %42, %60, %78, %96 in 1 : vector<16x8xf32>, vector<16x8xf32>, vector<16x8xf32>, vector<16x8xf32> -> vector<16x32xf32>
    %cst_32 = arith.constant dense<0.000000e+00> : vector<16x32xf32>
    %98 = tpu.matmul %97, %19, %cst_32 {dimension_numbers = #tpu.dot_dimension_numbers<[1], [0], [0], [1], [0, 0, 1, 1], [], []>} : vector<16x32xf32>, vector<32x32xf32>, vector<16x32xf32> -> vector<16x32xf32>
    %99 = vector.broadcast %11 : vector<1x32xf32> to vector<16x32xf32>
    %100 = arith.addf %98, %99 : vector<16x32xf32>
    %101 = arith.addf %0, %100 : vector<16x32xf32>
    %cst_33 = arith.constant dense<0.000000e+00> : vector<16xf32>
    %102 = vector.multi_reduction <add>, %101, %cst_33 [1] : vector<16x32xf32> to vector<16xf32>
    %103 = vector.shape_cast %102 : vector<16xf32> to vector<16x1xf32>
    %cst_34 = arith.constant 3.200000e+01 : f32
    %104 = vector.broadcast %cst_34 : f32 to vector<16x1xf32>
    %105 = arith.divf %103, %104 : vector<16x1xf32>
    %106 = arith.mulf %101, %101 : vector<16x32xf32>
    %cst_35 = arith.constant dense<0.000000e+00> : vector<16xf32>
    %107 = vector.multi_reduction <add>, %106, %cst_35 [1] : vector<16x32xf32> to vector<16xf32>
    %108 = vector.shape_cast %107 : vector<16xf32> to vector<16x1xf32>
    %cst_36 = arith.constant 3.200000e+01 : f32
    %109 = vector.broadcast %cst_36 : f32 to vector<16x1xf32>
    %110 = arith.divf %108, %109 : vector<16x1xf32>
    %111 = arith.mulf %105, %105 : vector<16x1xf32>
    %112 = arith.subf %110, %111 : vector<16x1xf32>
    %113 = vector.broadcast %105 : vector<16x1xf32> to vector<16x32xf32>
    %114 = arith.subf %101, %113 : vector<16x32xf32>
    %cst_37 = arith.constant 9.99999974E-6 : f32
    %115 = vector.broadcast %cst_37 : f32 to vector<16x1xf32>
    %116 = arith.addf %112, %115 : vector<16x1xf32>
    %117 = math.rsqrt %116 : vector<16x1xf32>
    %118 = vector.broadcast %117 : vector<16x1xf32> to vector<16x32xf32>
    %119 = arith.mulf %114, %118 : vector<16x32xf32>
    %120 = vector.broadcast %14 : vector<1x32xf32> to vector<16x32xf32>
    %121 = arith.mulf %119, %120 : vector<16x32xf32>
    %122 = vector.broadcast %15 : vector<1x32xf32> to vector<16x32xf32>
    %123 = arith.addf %121, %122 : vector<16x32xf32>
    %cst_38 = arith.constant dense<0.000000e+00> : vector<16x64xf32>
    %124 = tpu.matmul %123, %20, %cst_38 {dimension_numbers = #tpu.dot_dimension_numbers<[1], [0], [0], [1], [0, 0, 1, 1], [], []>} : vector<16x32xf32>, vector<32x64xf32>, vector<16x64xf32> -> vector<16x64xf32>
    %125 = vector.broadcast %12 : vector<1x64xf32> to vector<16x64xf32>
    %126 = arith.addf %124, %125 : vector<16x64xf32>
    %cst_39 = arith.constant 0.000000e+00 : f32
    %127 = vector.broadcast %cst_39 : f32 to vector<16x64xf32>
    %128 = arith.maximumf %126, %127 : vector<16x64xf32>
    %cst_40 = arith.constant dense<0.000000e+00> : vector<16x32xf32>
    %129 = tpu.matmul %128, %21, %cst_40 {dimension_numbers = #tpu.dot_dimension_numbers<[1], [0], [0], [1], [0, 0, 1, 1], [], []>} : vector<16x64xf32>, vector<64x32xf32>, vector<16x32xf32> -> vector<16x32xf32>
    %130 = vector.broadcast %13 : vector<1x32xf32> to vector<16x32xf32>
    %131 = arith.addf %129, %130 : vector<16x32xf32>
    %132 = arith.addf %123, %131 : vector<16x32xf32>
    %cst_41 = arith.constant dense<0.000000e+00> : vector<16xf32>
    %133 = vector.multi_reduction <add>, %132, %cst_41 [1] : vector<16x32xf32> to vector<16xf32>
    %134 = vector.shape_cast %133 : vector<16xf32> to vector<16x1xf32>
    %cst_42 = arith.constant 3.200000e+01 : f32
    %135 = vector.broadcast %cst_42 : f32 to vector<16x1xf32>
    %136 = arith.divf %134, %135 : vector<16x1xf32>
    %137 = arith.mulf %132, %132 : vector<16x32xf32>
    %cst_43 = arith.constant dense<0.000000e+00> : vector<16xf32>
    %138 = vector.multi_reduction <add>, %137, %cst_43 [1] : vector<16x32xf32> to vector<16xf32>
    %139 = vector.shape_cast %138 : vector<16xf32> to vector<16x1xf32>
    %cst_44 = arith.constant 3.200000e+01 : f32
    %140 = vector.broadcast %cst_44 : f32 to vector<16x1xf32>
    %141 = arith.divf %139, %140 : vector<16x1xf32>
    %142 = arith.mulf %136, %136 : vector<16x1xf32>
    %143 = arith.subf %141, %142 : vector<16x1xf32>
    %144 = vector.broadcast %136 : vector<16x1xf32> to vector<16x32xf32>
    %145 = arith.subf %132, %144 : vector<16x32xf32>
    %cst_45 = arith.constant 9.99999974E-6 : f32
    %146 = vector.broadcast %cst_45 : f32 to vector<16x1xf32>
    %147 = arith.addf %143, %146 : vector<16x1xf32>
    %148 = math.rsqrt %147 : vector<16x1xf32>
    %149 = vector.broadcast %148 : vector<16x1xf32> to vector<16x32xf32>
    %150 = arith.mulf %145, %149 : vector<16x32xf32>
    %151 = vector.broadcast %16 : vector<1x32xf32> to vector<16x32xf32>
    %152 = arith.mulf %150, %151 : vector<16x32xf32>
    %153 = vector.broadcast %17 : vector<1x32xf32> to vector<16x32xf32>
    %154 = arith.addf %152, %153 : vector<16x32xf32>
    %c1 = arith.constant 1 : index
    %c0_46 = arith.constant 0 : index
    %c0_47 = arith.constant 0 : index
    %155 = vector.load %arg1[%c1, %c0_46, %c0_47] : memref<2x32x128xf32, #tpu.memory_space<vmem>>, vector<1x32x128xf32>
    %156 = vector.shape_cast %155 : vector<1x32x128xf32> to vector<32x128xf32>
    %c1_48 = arith.constant 1 : index
    %c0_49 = arith.constant 0 : index
    %c0_50 = arith.constant 0 : index
    %157 = vector.load %arg2[%c1_48, %c0_49, %c0_50] : memref<2x64x128xf32, #tpu.memory_space<vmem>>, vector<1x64x128xf32>
    %158 = vector.shape_cast %157 : vector<1x64x128xf32> to vector<64x128xf32>
    %c1_51 = arith.constant 1 : index
    %c0_52 = arith.constant 0 : index
    %c0_53 = arith.constant 0 : index
    %159 = vector.load %arg3[%c1_51, %c0_52, %c0_53] : memref<2x8x128xf32, #tpu.memory_space<vmem>>, vector<1x8x128xf32>
    %160 = vector.shape_cast %159 : vector<1x8x128xf32> to vector<8x128xf32>
    %161 = vector.extract_strided_slice %160 {offsets = [0, 0], sizes = [1, 32], strides = [1, 1]} : vector<8x128xf32> to vector<1x32xf32>
    %162 = vector.extract_strided_slice %160 {offsets = [1, 0], sizes = [1, 64], strides = [1, 1]} : vector<8x128xf32> to vector<1x64xf32>
    %163 = vector.extract_strided_slice %160 {offsets = [2, 0], sizes = [1, 32], strides = [1, 1]} : vector<8x128xf32> to vector<1x32xf32>
    %164 = vector.extract_strided_slice %160 {offsets = [3, 0], sizes = [1, 32], strides = [1, 1]} : vector<8x128xf32> to vector<1x32xf32>
    %165 = vector.extract_strided_slice %160 {offsets = [4, 0], sizes = [1, 32], strides = [1, 1]} : vector<8x128xf32> to vector<1x32xf32>
    %166 = vector.extract_strided_slice %160 {offsets = [5, 0], sizes = [1, 32], strides = [1, 1]} : vector<8x128xf32> to vector<1x32xf32>
    %167 = vector.extract_strided_slice %160 {offsets = [6, 0], sizes = [1, 32], strides = [1, 1]} : vector<8x128xf32> to vector<1x32xf32>
    %168 = vector.extract_strided_slice %160 {offsets = [7, 0], sizes = [1, 128], strides = [1, 1]} : vector<8x128xf32> to vector<1x128xf32>
    %169 = vector.extract_strided_slice %158 {offsets = [0, 0], sizes = [32, 32], strides = [1, 1]} : vector<64x128xf32> to vector<32x32xf32>
    %170 = vector.extract_strided_slice %158 {offsets = [0, 32], sizes = [32, 64], strides = [1, 1]} : vector<64x128xf32> to vector<32x64xf32>
    %171 = vector.extract_strided_slice %158 {offsets = [0, 96], sizes = [64, 32], strides = [1, 1]} : vector<64x128xf32> to vector<64x32xf32>
    %cst_54 = arith.constant dense<0.000000e+00> : vector<16x128xf32>
    %172 = tpu.matmul %154, %156, %cst_54 {dimension_numbers = #tpu.dot_dimension_numbers<[1], [0], [0], [1], [0, 0, 1, 1], [], []>} : vector<16x32xf32>, vector<32x128xf32>, vector<16x128xf32> -> vector<16x128xf32>
    %173 = vector.broadcast %168 : vector<1x128xf32> to vector<16x128xf32>
    %174 = arith.addf %172, %173 : vector<16x128xf32>
    %175 = vector.extract_strided_slice %174 {offsets = [0, 0], sizes = [16, 8], strides = [1, 1]} : vector<16x128xf32> to vector<16x8xf32>
    %176 = vector.extract_strided_slice %174 {offsets = [0, 32], sizes = [16, 8], strides = [1, 1]} : vector<16x128xf32> to vector<16x8xf32>
    %177 = vector.extract_strided_slice %174 {offsets = [0, 64], sizes = [16, 8], strides = [1, 1]} : vector<16x128xf32> to vector<16x8xf32>
    %cst_55 = arith.constant dense<0.000000e+00> : vector<16x16xf32>
    %178 = tpu.matmul %175, %176, %cst_55 {dimension_numbers = #tpu.dot_dimension_numbers<[1], [1], [0], [0], [0, 0, 1, 0], [], []>} : vector<16x8xf32>, vector<16x8xf32>, vector<16x16xf32> -> vector<16x16xf32>
    %cst_56 = arith.constant 0.353553385 : f32
    %179 = vector.broadcast %cst_56 : f32 to vector<16x16xf32>
    %180 = arith.mulf %178, %179 : vector<16x16xf32>
    %181 = arith.addf %180, %2 : vector<16x16xf32>
    %cst_57 = arith.constant dense<0xFF800000> : vector<16xf32>
    %182 = vector.multi_reduction <maximumf>, %181, %cst_57 [1] : vector<16x16xf32> to vector<16xf32>
    %183 = vector.shape_cast %182 : vector<16xf32> to vector<16x1xf32>
    %184 = vector.broadcast %183 : vector<16x1xf32> to vector<16x16xf32>
    %185 = arith.subf %181, %184 : vector<16x16xf32>
    %186 = math.exp %185 : vector<16x16xf32>
    %cst_58 = arith.constant dense<0.000000e+00> : vector<16xf32>
    %187 = vector.multi_reduction <add>, %186, %cst_58 [1] : vector<16x16xf32> to vector<16xf32>
    %188 = vector.shape_cast %187 : vector<16xf32> to vector<16x1xf32>
    %189 = tpu.reciprocal %188 {approx = true} : vector<16x1xf32> -> vector<16x1xf32>
    %190 = vector.broadcast %189 : vector<16x1xf32> to vector<16x16xf32>
    %191 = arith.mulf %186, %190 : vector<16x16xf32>
    %cst_59 = arith.constant dense<0.000000e+00> : vector<16x8xf32>
    %192 = tpu.matmul %191, %177, %cst_59 {dimension_numbers = #tpu.dot_dimension_numbers<[1], [0], [0], [1], [0, 0, 1, 1], [], []>} : vector<16x16xf32>, vector<16x8xf32>, vector<16x8xf32> -> vector<16x8xf32>
    %193 = vector.extract_strided_slice %174 {offsets = [0, 8], sizes = [16, 8], strides = [1, 1]} : vector<16x128xf32> to vector<16x8xf32>
    %194 = vector.extract_strided_slice %174 {offsets = [0, 40], sizes = [16, 8], strides = [1, 1]} : vector<16x128xf32> to vector<16x8xf32>
    %195 = vector.extract_strided_slice %174 {offsets = [0, 72], sizes = [16, 8], strides = [1, 1]} : vector<16x128xf32> to vector<16x8xf32>
    %cst_60 = arith.constant dense<0.000000e+00> : vector<16x16xf32>
    %196 = tpu.matmul %193, %194, %cst_60 {dimension_numbers = #tpu.dot_dimension_numbers<[1], [1], [0], [0], [0, 0, 1, 0], [], []>} : vector<16x8xf32>, vector<16x8xf32>, vector<16x16xf32> -> vector<16x16xf32>
    %cst_61 = arith.constant 0.353553385 : f32
    %197 = vector.broadcast %cst_61 : f32 to vector<16x16xf32>
    %198 = arith.mulf %196, %197 : vector<16x16xf32>
    %199 = arith.addf %198, %2 : vector<16x16xf32>
    %cst_62 = arith.constant dense<0xFF800000> : vector<16xf32>
    %200 = vector.multi_reduction <maximumf>, %199, %cst_62 [1] : vector<16x16xf32> to vector<16xf32>
    %201 = vector.shape_cast %200 : vector<16xf32> to vector<16x1xf32>
    %202 = vector.broadcast %201 : vector<16x1xf32> to vector<16x16xf32>
    %203 = arith.subf %199, %202 : vector<16x16xf32>
    %204 = math.exp %203 : vector<16x16xf32>
    %cst_63 = arith.constant dense<0.000000e+00> : vector<16xf32>
    %205 = vector.multi_reduction <add>, %204, %cst_63 [1] : vector<16x16xf32> to vector<16xf32>
    %206 = vector.shape_cast %205 : vector<16xf32> to vector<16x1xf32>
    %207 = tpu.reciprocal %206 {approx = true} : vector<16x1xf32> -> vector<16x1xf32>
    %208 = vector.broadcast %207 : vector<16x1xf32> to vector<16x16xf32>
    %209 = arith.mulf %204, %208 : vector<16x16xf32>
    %cst_64 = arith.constant dense<0.000000e+00> : vector<16x8xf32>
    %210 = tpu.matmul %209, %195, %cst_64 {dimension_numbers = #tpu.dot_dimension_numbers<[1], [0], [0], [1], [0, 0, 1, 1], [], []>} : vector<16x16xf32>, vector<16x8xf32>, vector<16x8xf32> -> vector<16x8xf32>
    %211 = vector.extract_strided_slice %174 {offsets = [0, 16], sizes = [16, 8], strides = [1, 1]} : vector<16x128xf32> to vector<16x8xf32>
    %212 = vector.extract_strided_slice %174 {offsets = [0, 48], sizes = [16, 8], strides = [1, 1]} : vector<16x128xf32> to vector<16x8xf32>
    %213 = vector.extract_strided_slice %174 {offsets = [0, 80], sizes = [16, 8], strides = [1, 1]} : vector<16x128xf32> to vector<16x8xf32>
    %cst_65 = arith.constant dense<0.000000e+00> : vector<16x16xf32>
    %214 = tpu.matmul %211, %212, %cst_65 {dimension_numbers = #tpu.dot_dimension_numbers<[1], [1], [0], [0], [0, 0, 1, 0], [], []>} : vector<16x8xf32>, vector<16x8xf32>, vector<16x16xf32> -> vector<16x16xf32>
    %cst_66 = arith.constant 0.353553385 : f32
    %215 = vector.broadcast %cst_66 : f32 to vector<16x16xf32>
    %216 = arith.mulf %214, %215 : vector<16x16xf32>
    %217 = arith.addf %216, %2 : vector<16x16xf32>
    %cst_67 = arith.constant dense<0xFF800000> : vector<16xf32>
    %218 = vector.multi_reduction <maximumf>, %217, %cst_67 [1] : vector<16x16xf32> to vector<16xf32>
    %219 = vector.shape_cast %218 : vector<16xf32> to vector<16x1xf32>
    %220 = vector.broadcast %219 : vector<16x1xf32> to vector<16x16xf32>
    %221 = arith.subf %217, %220 : vector<16x16xf32>
    %222 = math.exp %221 : vector<16x16xf32>
    %cst_68 = arith.constant dense<0.000000e+00> : vector<16xf32>
    %223 = vector.multi_reduction <add>, %222, %cst_68 [1] : vector<16x16xf32> to vector<16xf32>
    %224 = vector.shape_cast %223 : vector<16xf32> to vector<16x1xf32>
    %225 = tpu.reciprocal %224 {approx = true} : vector<16x1xf32> -> vector<16x1xf32>
    %226 = vector.broadcast %225 : vector<16x1xf32> to vector<16x16xf32>
    %227 = arith.mulf %222, %226 : vector<16x16xf32>
    %cst_69 = arith.constant dense<0.000000e+00> : vector<16x8xf32>
    %228 = tpu.matmul %227, %213, %cst_69 {dimension_numbers = #tpu.dot_dimension_numbers<[1], [0], [0], [1], [0, 0, 1, 1], [], []>} : vector<16x16xf32>, vector<16x8xf32>, vector<16x8xf32> -> vector<16x8xf32>
    %229 = vector.extract_strided_slice %174 {offsets = [0, 24], sizes = [16, 8], strides = [1, 1]} : vector<16x128xf32> to vector<16x8xf32>
    %230 = vector.extract_strided_slice %174 {offsets = [0, 56], sizes = [16, 8], strides = [1, 1]} : vector<16x128xf32> to vector<16x8xf32>
    %231 = vector.extract_strided_slice %174 {offsets = [0, 88], sizes = [16, 8], strides = [1, 1]} : vector<16x128xf32> to vector<16x8xf32>
    %cst_70 = arith.constant dense<0.000000e+00> : vector<16x16xf32>
    %232 = tpu.matmul %229, %230, %cst_70 {dimension_numbers = #tpu.dot_dimension_numbers<[1], [1], [0], [0], [0, 0, 1, 0], [], []>} : vector<16x8xf32>, vector<16x8xf32>, vector<16x16xf32> -> vector<16x16xf32>
    %cst_71 = arith.constant 0.353553385 : f32
    %233 = vector.broadcast %cst_71 : f32 to vector<16x16xf32>
    %234 = arith.mulf %232, %233 : vector<16x16xf32>
    %235 = arith.addf %234, %2 : vector<16x16xf32>
    %cst_72 = arith.constant dense<0xFF800000> : vector<16xf32>
    %236 = vector.multi_reduction <maximumf>, %235, %cst_72 [1] : vector<16x16xf32> to vector<16xf32>
    %237 = vector.shape_cast %236 : vector<16xf32> to vector<16x1xf32>
    %238 = vector.broadcast %237 : vector<16x1xf32> to vector<16x16xf32>
    %239 = arith.subf %235, %238 : vector<16x16xf32>
    %240 = math.exp %239 : vector<16x16xf32>
    %cst_73 = arith.constant dense<0.000000e+00> : vector<16xf32>
    %241 = vector.multi_reduction <add>, %240, %cst_73 [1] : vector<16x16xf32> to vector<16xf32>
    %242 = vector.shape_cast %241 : vector<16xf32> to vector<16x1xf32>
    %243 = tpu.reciprocal %242 {approx = true} : vector<16x1xf32> -> vector<16x1xf32>
    %244 = vector.broadcast %243 : vector<16x1xf32> to vector<16x16xf32>
    %245 = arith.mulf %240, %244 : vector<16x16xf32>
    %cst_74 = arith.constant dense<0.000000e+00> : vector<16x8xf32>
    %246 = tpu.matmul %245, %231, %cst_74 {dimension_numbers = #tpu.dot_dimension_numbers<[1], [0], [0], [1], [0, 0, 1, 1], [], []>} : vector<16x16xf32>, vector<16x8xf32>, vector<16x8xf32> -> vector<16x8xf32>
    %247 = tpu.concatenate %192, %210, %228, %246 in 1 : vector<16x8xf32>, vector<16x8xf32>, vector<16x8xf32>, vector<16x8xf32> -> vector<16x32xf32>
    %cst_75 = arith.constant dense<0.000000e+00> : vector<16x32xf32>
    %248 = tpu.matmul %247, %169, %cst_75 {dimension_numbers = #tpu.dot_dimension_numbers<[1], [0], [0], [1], [0, 0, 1, 1], [], []>} : vector<16x32xf32>, vector<32x32xf32>, vector<16x32xf32> -> vector<16x32xf32>
    %249 = vector.broadcast %161 : vector<1x32xf32> to vector<16x32xf32>
    %250 = arith.addf %248, %249 : vector<16x32xf32>
    %251 = arith.addf %154, %250 : vector<16x32xf32>
    %cst_76 = arith.constant dense<0.000000e+00> : vector<16xf32>
    %252 = vector.multi_reduction <add>, %251, %cst_76 [1] : vector<16x32xf32> to vector<16xf32>
    %253 = vector.shape_cast %252 : vector<16xf32> to vector<16x1xf32>
    %cst_77 = arith.constant 3.200000e+01 : f32
    %254 = vector.broadcast %cst_77 : f32 to vector<16x1xf32>
    %255 = arith.divf %253, %254 : vector<16x1xf32>
    %256 = arith.mulf %251, %251 : vector<16x32xf32>
    %cst_78 = arith.constant dense<0.000000e+00> : vector<16xf32>
    %257 = vector.multi_reduction <add>, %256, %cst_78 [1] : vector<16x32xf32> to vector<16xf32>
    %258 = vector.shape_cast %257 : vector<16xf32> to vector<16x1xf32>
    %cst_79 = arith.constant 3.200000e+01 : f32
    %259 = vector.broadcast %cst_79 : f32 to vector<16x1xf32>
    %260 = arith.divf %258, %259 : vector<16x1xf32>
    %261 = arith.mulf %255, %255 : vector<16x1xf32>
    %262 = arith.subf %260, %261 : vector<16x1xf32>
    %263 = vector.broadcast %255 : vector<16x1xf32> to vector<16x32xf32>
    %264 = arith.subf %251, %263 : vector<16x32xf32>
    %cst_80 = arith.constant 9.99999974E-6 : f32
    %265 = vector.broadcast %cst_80 : f32 to vector<16x1xf32>
    %266 = arith.addf %262, %265 : vector<16x1xf32>
    %267 = math.rsqrt %266 : vector<16x1xf32>
    %268 = vector.broadcast %267 : vector<16x1xf32> to vector<16x32xf32>
    %269 = arith.mulf %264, %268 : vector<16x32xf32>
    %270 = vector.broadcast %164 : vector<1x32xf32> to vector<16x32xf32>
    %271 = arith.mulf %269, %270 : vector<16x32xf32>
    %272 = vector.broadcast %165 : vector<1x32xf32> to vector<16x32xf32>
    %273 = arith.addf %271, %272 : vector<16x32xf32>
    %cst_81 = arith.constant dense<0.000000e+00> : vector<16x64xf32>
    %274 = tpu.matmul %273, %170, %cst_81 {dimension_numbers = #tpu.dot_dimension_numbers<[1], [0], [0], [1], [0, 0, 1, 1], [], []>} : vector<16x32xf32>, vector<32x64xf32>, vector<16x64xf32> -> vector<16x64xf32>
    %275 = vector.broadcast %162 : vector<1x64xf32> to vector<16x64xf32>
    %276 = arith.addf %274, %275 : vector<16x64xf32>
    %cst_82 = arith.constant 0.000000e+00 : f32
    %277 = vector.broadcast %cst_82 : f32 to vector<16x64xf32>
    %278 = arith.maximumf %276, %277 : vector<16x64xf32>
    %cst_83 = arith.constant dense<0.000000e+00> : vector<16x32xf32>
    %279 = tpu.matmul %278, %171, %cst_83 {dimension_numbers = #tpu.dot_dimension_numbers<[1], [0], [0], [1], [0, 0, 1, 1], [], []>} : vector<16x64xf32>, vector<64x32xf32>, vector<16x32xf32> -> vector<16x32xf32>
    %280 = vector.broadcast %163 : vector<1x32xf32> to vector<16x32xf32>
    %281 = arith.addf %279, %280 : vector<16x32xf32>
    %282 = arith.addf %273, %281 : vector<16x32xf32>
    %cst_84 = arith.constant dense<0.000000e+00> : vector<16xf32>
    %283 = vector.multi_reduction <add>, %282, %cst_84 [1] : vector<16x32xf32> to vector<16xf32>
    %284 = vector.shape_cast %283 : vector<16xf32> to vector<16x1xf32>
    %cst_85 = arith.constant 3.200000e+01 : f32
    %285 = vector.broadcast %cst_85 : f32 to vector<16x1xf32>
    %286 = arith.divf %284, %285 : vector<16x1xf32>
    %287 = arith.mulf %282, %282 : vector<16x32xf32>
    %cst_86 = arith.constant dense<0.000000e+00> : vector<16xf32>
    %288 = vector.multi_reduction <add>, %287, %cst_86 [1] : vector<16x32xf32> to vector<16xf32>
    %289 = vector.shape_cast %288 : vector<16xf32> to vector<16x1xf32>
    %cst_87 = arith.constant 3.200000e+01 : f32
    %290 = vector.broadcast %cst_87 : f32 to vector<16x1xf32>
    %291 = arith.divf %289, %290 : vector<16x1xf32>
    %292 = arith.mulf %286, %286 : vector<16x1xf32>
    %293 = arith.subf %291, %292 : vector<16x1xf32>
    %294 = vector.broadcast %286 : vector<16x1xf32> to vector<16x32xf32>
    %295 = arith.subf %282, %294 : vector<16x32xf32>
    %cst_88 = arith.constant 9.99999974E-6 : f32
    %296 = vector.broadcast %cst_88 : f32 to vector<16x1xf32>
    %297 = arith.addf %293, %296 : vector<16x1xf32>
    %298 = math.rsqrt %297 : vector<16x1xf32>
    %299 = vector.broadcast %298 : vector<16x1xf32> to vector<16x32xf32>
    %300 = arith.mulf %295, %299 : vector<16x32xf32>
    %301 = vector.broadcast %166 : vector<1x32xf32> to vector<16x32xf32>
    %302 = arith.mulf %300, %301 : vector<16x32xf32>
    %303 = vector.broadcast %167 : vector<1x32xf32> to vector<16x32xf32>
    %304 = arith.addf %302, %303 : vector<16x32xf32>
    %cst_89 = arith.constant dense<0.000000e+00> : vector<16x128xf32>
    %305 = tpu.matmul %304, %3, %cst_89 {dimension_numbers = #tpu.dot_dimension_numbers<[1], [0], [0], [1], [0, 0, 1, 1], [], []>} : vector<16x32xf32>, vector<32x128xf32>, vector<16x128xf32> -> vector<16x128xf32>
    %306 = vector.broadcast %4 : vector<1x128xf32> to vector<16x128xf32>
    %307 = arith.addf %305, %306 : vector<16x128xf32>
    %c0_90 = arith.constant 0 : index
    %c0_91 = arith.constant 0 : index
    %308 = vector.load %arg5[%c0_90, %c0_91] : memref<16x128xf32, #tpu.memory_space<vmem>>, vector<16x128xf32>
    tpu.vector_store %arg5[%c0_90, %c0_91], %307 {strides = array<i32>} : memref<16x128xf32, #tpu.memory_space<vmem>>, vector<16x128xf32>,
    return
  }
}

</mosaic_0001>

<llo_original>
// kernel: tile.9
$region0: #{tile.9}
  %s0 = inlined_call_operand.vmem [shape: f32[2,8,2,8], index: 0, kind: input, shape index: {}]
  %s1 = inlined_call_operand.vmem [shape: f32[16,16], index: 1, kind: output, shape index: {}]
  $region1: #{tile.9} parent=0
    #allocation0 [shape = 'u8[65536]{0}', space=vmem, size = 0x10000, scoped, tag = 'scoped mem for input reshape']
    %s3 = sshll.u32 1, 2
    %s4 = ssub.s32 %s3, 1
    %s5 = smul.addr 2, 15
    %s6 = scalar_lea.vmem %s0, %s5
    %v7 = vld [vmem:[%s6] sm:%s4]
    %s8 = scalar_lea.vmem [#allocation0], 120
    %9 = vst [vmem:[%s8] sm:%s4] %v7
    %s10 = smul.addr 2, 14
    %s11 = scalar_lea.vmem %s0, %s10
    %v12 = vld [vmem:[%s11] sm:%s4]
    %s13 = scalar_lea.vmem [#allocation0], 112
    %14 = vst [vmem:[%s13] sm:%s4] %v12
    %s15 = smul.addr 2, 13
    %s16 = scalar_lea.vmem %s0, %s15
    %v17 = vld [vmem:[%s16] sm:%s4]
    %s18 = scalar_lea.vmem [#allocation0], 104
    %19 = vst [vmem:[%s18] sm:%s4] %v17
    %s20 = smul.addr 2, 12
    %s21 = scalar_lea.vmem %s0, %s20
    %v22 = vld [vmem:[%s21] sm:%s4]
    %s23 = scalar_lea.vmem [#allocation0], 96
    %24 = vst [vmem:[%s23] sm:%s4] %v22
    %s25 = smul.addr 2, 11
    %s26 = scalar_lea.vmem %s0, %s25
    %v27 = vld [vmem:[%s26] sm:%s4]
    %s28 = scalar_lea.vmem [#allocation0], 88
    %29 = vst [vmem:[%s28] sm:%s4] %v27
    %s30 = smul.addr 2, 10
    %s31 = scalar_lea.vmem %s0, %s30
    %v32 = vld [vmem:[%s31] sm:%s4]
    %s33 = scalar_lea.vmem [#allocation0], 80
    %34 = vst [vmem:[%s33] sm:%s4] %v32
    %s35 = smul.addr 2, 9
    %s36 = scalar_lea.vmem %s0, %s35
    %v37 = vld [vmem:[%s36] sm:%s4]
    %s38 = scalar_lea.vmem [#allocation0], 72
    %39 = vst [vmem:[%s38] sm:%s4] %v37
    %s40 = smul.addr 2, 8
    %s41 = scalar_lea.vmem %s0, %s40
    %v42 = vld [vmem:[%s41] sm:%s4]
    %s43 = scalar_lea.vmem [#allocation0], 64
    %44 = vst [vmem:[%s43] sm:%s4] %v42
    %s45 = smul.addr 2, 7
    %s46 = scalar_lea.vmem %s0, %s45
    %v47 = vld [vmem:[%s46] sm:%s4]
    %s48 = scalar_lea.vmem [#allocation0], 56
    %49 = vst [vmem:[%s48] sm:%s4] %v47
    %s50 = smul.addr 2, 6
    %s51 = scalar_lea.vmem %s0, %s50
    %v52 = vld [vmem:[%s51] sm:%s4]
    %s53 = scalar_lea.vmem [#allocation0], 48
    %54 = vst [vmem:[%s53] sm:%s4] %v52
    %s55 = smul.addr 2, 5
    %s56 = scalar_lea.vmem %s0, %s55
    %v57 = vld [vmem:[%s56] sm:%s4]
    %s58 = scalar_lea.vmem [#allocation0], 40
    %59 = vst [vmem:[%s58] sm:%s4] %v57
    %s60 = smul.addr 2, 4
    %s61 = scalar_lea.vmem %s0, %s60
    %v62 = vld [vmem:[%s61] sm:%s4]
    %s63 = scalar_lea.vmem [#allocation0], 32
    %64 = vst [vmem:[%s63] sm:%s4] %v62
    %s65 = smul.addr 2, 3
    %s66 = scalar_lea.vmem %s0, %s65
    %v67 = vld [vmem:[%s66] sm:%s4]
    %s68 = scalar_lea.vmem [#allocation0], 24
    %69 = vst [vmem:[%s68] sm:%s4] %v67
    %s70 = smul.addr 2, 2
    %s71 = scalar_lea.vmem %s0, %s70
    %v72 = vld [vmem:[%s71] sm:%s4]
    %s73 = scalar_lea.vmem [#allocation0], 16
    %74 = vst [vmem:[%s73] sm:%s4] %v72
    %s75 = scalar_lea.vmem %s0, 2
    %v76 = vld [vmem:[%s75] sm:%s4]
    %s77 = scalar_lea.vmem [#allocation0], 8
    %78 = vst [vmem:[%s77] sm:%s4] %v76
    %v79 = vld [vmem:[%s0] sm:%s4]
    %80 = vst [vmem:[#allocation0] sm:%s4] %v79
    %v81 = vld [vmem:[#allocation0] ss:$8 sm:$0xf]
    %v82 = vld [vmem:[#allocation0] ss:$8 sm:$0xf0]
    %vm83 = vcmask 1047556
    %v84 = vsel %vm83, %v82, %v81
    %vm85 = vcmask 64512
    %86 = vst.msk [vmem:[%s1] sm:$0xff] %vm85, %v84
    %s87 = scalar_lea.vmem [#allocation0], 64
    %v88 = vld [vmem:[%s87] ss:$8 sm:$0xf]
    %s89 = scalar_lea.vmem [#allocation0], 64
    %v90 = vld [vmem:[%s89] ss:$8 sm:$0xf0]
    %vm91 = vcmask 1047556
    %v92 = vsel %vm91, %v90, %v88
    %vm93 = vcmask 64512
    %s94 = scalar_lea.vmem %s1, 8
    %95 = vst.msk [vmem:[%s94] sm:$0xff] %vm93, %v92
    %s96 = scalar_lea.vmem [#allocation0], 1
    %v97 = vld [vmem:[%s96] ss:$8 sm:$0xf]
    %s98 = scalar_lea.vmem [#allocation0], 1
    %v99 = vld [vmem:[%s98] ss:$8 sm:$0xf0]
    %vm100 = vcmask 1047556
    %v101 = vsel %vm100, %v99, %v97
    %102 = vrot.lane.b32.xlu0 %v101, 8
    %v103 = vpop.permute.xlu0 %102
    %vm104 = vcmask 130112
    %105 = vst.msk [vmem:[%s1] sm:$0xff] %vm104, %v103
    %s106 = scalar_lea.vmem [#allocation0], 65
    %v107 = vld [vmem:[%s106] ss:$8 sm:$0xf]
    %s108 = scalar_lea.vmem [#allocation0], 65
    %v109 = vld [vmem:[%s108] ss:$8 sm:$0xf0]
    %vm110 = vcmask 1047556
    %v111 = vsel %vm110, %v109, %v107
    %112 = vrot.lane.b32.xlu0 %v111, 8
    %v113 = vpop.permute.xlu0 %112
    %vm114 = vcmask 130112
    %s115 = scalar_lea.vmem %s1, 8
    %116 = vst.msk [vmem:[%s115] sm:$0xff] %vm114, %v113

// kernel: tile.8
$region0: #{tile.8}
  #allocation0 [shape = 's32[1]{0}', space=sflag, size = 0x4, scoped, tag = 'scoped memory for tile.8']
  %s0 = inlined_call_operand.vmem [shape: f32[8,8], index: 0, kind: input, shape index: {}]
  %s1 = inlined_call_operand.vmem [shape: f32[2,8,2,8], index: 1, kind: output, shape index: {}]
  // Predicated region
  $region2: #{tile.8} parent=0 // pred_check
    _
  $region3: #{tile.8} parent=0 // pred_check_branch
    %3 = sbr.rel (0) target = $region5
  $region4: #{tile.8} parent=0 // pred_region
    _
  $region5: #{tile.8} parent=0 // pred_fallthru
    _
  %v4 = vld [vmem:[%s0] ss:$0 sm:$0xff]
  %5 = vst [vmem:[%s1] sm:$0x3] %v4
  %s6 = scalar_lea.vmem %s1, 16
  %7 = vst [vmem:[%s6] sm:$0x3] %v4
  %s8 = scalar_lea.vmem %s0, 1
  %v9 = vld [vmem:[%s8] ss:$0 sm:$0xff]
  %s10 = scalar_lea.vmem %s1, 2
  %11 = vst [vmem:[%s10] sm:$0x3] %v9
  %s12 = scalar_lea.vmem %s1, 18
  %13 = vst [vmem:[%s12] sm:$0x3] %v9
  %s14 = scalar_lea.vmem %s0, 2
  %v15 = vld [vmem:[%s14] ss:$0 sm:$0xff]
  %s16 = scalar_lea.vmem %s1, 4
  %17 = vst [vmem:[%s16] sm:$0x3] %v15
  %s18 = scalar_lea.vmem %s1, 20
  %19 = vst [vmem:[%s18] sm:$0x3] %v15
  %s20 = scalar_lea.vmem %s0, 3
  %v21 = vld [vmem:[%s20] ss:$0 sm:$0xff]
  %s22 = scalar_lea.vmem %s1, 6
  %23 = vst [vmem:[%s22] sm:$0x3] %v21
  %s24 = scalar_lea.vmem %s1, 22
  %25 = vst [vmem:[%s24] sm:$0x3] %v21
  %s26 = scalar_lea.vmem %s0, 4
  %v27 = vld [vmem:[%s26] ss:$0 sm:$0xff]
  %s28 = scalar_lea.vmem %s1, 8
  %29 = vst [vmem:[%s28] sm:$0x3] %v27
  %s30 = scalar_lea.vmem %s1, 24
  %31 = vst [vmem:[%s30] sm:$0x3] %v27
  %s32 = scalar_lea.vmem %s0, 5
  %v33 = vld [vmem:[%s32] ss:$0 sm:$0xff]
  %s34 = scalar_lea.vmem %s1, 10
  %35 = vst [vmem:[%s34] sm:$0x3] %v33
  %s36 = scalar_lea.vmem %s1, 26
  %37 = vst [vmem:[%s36] sm:$0x3] %v33
  %s38 = scalar_lea.vmem %s0, 6
  %v39 = vld [vmem:[%s38] ss:$0 sm:$0xff]
  %s40 = scalar_lea.vmem %s1, 12
  %41 = vst [vmem:[%s40] sm:$0x3] %v39
  %s42 = scalar_lea.vmem %s1, 28
  %43 = vst [vmem:[%s42] sm:$0x3] %v39
  %s44 = scalar_lea.vmem %s0, 7
  %v45 = vld [vmem:[%s44] ss:$0 sm:$0xff]
  %s46 = scalar_lea.vmem %s1, 14
  %47 = vst [vmem:[%s46] sm:$0x3] %v45
  %s48 = scalar_lea.vmem %s1, 30
  %49 = vst [vmem:[%s48] sm:$0x3] %v45

// kernel: transformer_forward.1
$region0: #{transformer_forward.1}
  #allocation0 [shape = 'u32[]', space=smem, size = 0x4, offset = 0x4, fixed_abs, tag = 'smem constant byte address 0x4 - core index']
  #allocation1 [shape = 'u32[144,128]{1,0:T(1,128)}', space=vmem, size = 0x12000, scoped, tag = 'internal scratch']
  %s0 = inlined_call_operand.vmem [shape: f32[16,32], index: 0, kind: input, shape index: {}]
  %s1 = inlined_call_operand.vmem [shape: f32[2,32,128], index: 1, kind: input, shape index: {}]
  %s2 = inlined_call_operand.vmem [shape: f32[2,64,128], index: 2, kind: input, shape index: {}]
  %s3 = inlined_call_operand.vmem [shape: f32[2,8,128], index: 3, kind: input, shape index: {}]
  %s4 = inlined_call_operand.vmem [shape: f32[56,128], index: 4, kind: input, shape index: {}]
  %s5 = inlined_call_operand.vmem [shape: f32[16,128], index: 5, kind: output, shape index: {}]
  %s6 = sld [smem:[#allocation0]]
  $region30: #{transformer_forward.1} parent=0
    _
  %s8 = ssub.s32 1, %s6
  %s9 = scalar_select 0, %s8, %s6
  // Predicated region
  $region2: #{transformer_forward.1} parent=0 // pred_check
    _
  $region3: #{transformer_forward.1} parent=0 // pred_check_branch
    %11 = sbr.rel (0) target = $region5
  $region4: #{transformer_forward.1} parent=0 // pred_region
    _
  $region5: #{transformer_forward.1} parent=0 // pred_fallthru
    _
  // Predicated region
  $region6: #{transformer_forward.1} parent=0 // pred_check
    _
  $region7: #{transformer_forward.1} parent=0 // pred_check_branch
    %13 = sbr.rel (0) target = $region9
  $region8: #{transformer_forward.1} parent=0 // pred_region
    _
  $region9: #{transformer_forward.1} parent=0 // pred_fallthru
    _
  // Predicated region
  $region10: #{transformer_forward.1} parent=0 // pred_check
    _
  $region11: #{transformer_forward.1} parent=0 // pred_check_branch
    %15 = sbr.rel (0) target = $region13
  $region12: #{transformer_forward.1} parent=0 // pred_region
    _
  $region13: #{transformer_forward.1} parent=0 // pred_fallthru
    _
  // Predicated region
  $region14: #{transformer_forward.1} parent=0 // pred_check
    _
  $region15: #{transformer_forward.1} parent=0 // pred_check_branch
    %17 = sbr.rel (0) target = $region17
  $region16: #{transformer_forward.1} parent=0 // pred_region
    _
  $region17: #{transformer_forward.1} parent=0 // pred_fallthru
    _
  // Predicated region
  $region18: #{transformer_forward.1} parent=0 // pred_check
    _
  $region19: #{transformer_forward.1} parent=0 // pred_check_branch
    %19 = sbr.rel (0) target = $region21
  $region20: #{transformer_forward.1} parent=0 // pred_region
    _
  $region21: #{transformer_forward.1} parent=0 // pred_fallthru
    _
  %v20 = vld [vmem:[%s0] sm:$0xff]
  %v21 = vld [vmem:[%s0 + $0x8] sm:$0xff]
  %v22 = vld [vmem:[%s4] sm:$0xff]
  %v23 = vld [vmem:[%s4 + $0x8] sm:$0xff]
  %v24 = vld [vmem:[%s4 + $0x10] sm:$0xff]
  %v25 = vld [vmem:[%s4 + $0x18] sm:$0xff]
  %v26 = vld [vmem:[%s4 + $0x20] sm:$0xff]
  %v27 = vld [vmem:[%s4 + $0x28] sm:$0xff]
  %v28 = vld [vmem:[%s4 + $0x30] sm:$0xff]
  %v29 = vld [vmem:[%s1] sm:$0xff]
  %v30 = vld [vmem:[%s1 + $0x8] sm:$0xff]
  %v31 = vld [vmem:[%s1 + $0x10] sm:$0xff]
  %v32 = vld [vmem:[%s1 + $0x18] sm:$0xff]
  %v33 = vld [vmem:[%s2] sm:$0xff]
  %v34 = vld [vmem:[%s2 + $0x8] sm:$0xff]
  %v35 = vld [vmem:[%s2 + $0x10] sm:$0xff]
  %v36 = vld [vmem:[%s2 + $0x18] sm:$0xff]
  %v37 = vld [vmem:[%s2 + $0x20] sm:$0xff]
  %v38 = vld [vmem:[%s2 + $0x28] sm:$0xff]
  %v39 = vld [vmem:[%s2 + $0x30] sm:$0xff]
  %v40 = vld [vmem:[%s2 + $0x38] sm:$0xff]
  %v41 = vld [vmem:[%s3] sm:$0xff]
  %v42 = vlaneseq
  %v43 = vshrl.u32 %v42, 7
  %v44 = vsub.s32 7, %v43
  %v45 = vrot.slane %v41, %v44
  %vm46 = vcmask 261120
  %v48 = vsel %vm46, %v20, 0
  %v51 = vsel %vm46, %v21, 0
  %53 = vmatprep.subr.mxu0 0.0
  %54 = vmatpush1.msra.mxu0 0.0
  %55 = vmatprep.subr.mxu0 0.0
  %56 = vmatpush1.msra.mxu0 0.0
  %57 = vmatprep.subr.mxu0 0.0
  %58 = vmatpush1.msra.mxu0 0.0
  %59 = vmatprep.subr.mxu0 0.0
  %60 = vmatpush1.msra.mxu0 0.0
  %61 = vmatprep.subr.mxu0 0.0
  %62 = vmatpush1.msra.mxu0 0.0
  %63 = vmatprep.subr.mxu0 0.0
  %64 = vmatpush1.msra.mxu0 0.0
  %65 = vmatprep.subr.mxu0 0.0
  %66 = vmatpush1.msra.mxu0 0.0
  %67 = vmatprep.subr.mxu0 0.0
  %68 = vmatpush1.msra.mxu0 0.0
  %69 = vmatprep.subr.mxu0 0.0
  %70 = vmatpush1.msra.mxu0 0.0
  %71 = vmatprep.subr.mxu0 0.0
  %72 = vmatpush1.msra.mxu0 0.0
  %73 = vmatprep.subr.mxu0 0.0
  %74 = vmatpush1.msra.mxu0 0.0
  %75 = vmatprep.subr.mxu0 0.0
  %76 = vmatpush1.msra.mxu0 0.0
  %77 = vmatprep.subr.mxu0 0.0
  %78 = vmatpush1.msra.mxu0 %v32
  %79 = vmatprep.subr.mxu0 0.0
  %80 = vmatpush1.msra.mxu0 %v31
  %81 = vmatprep.subr.mxu0 0.0
  %82 = vmatpush1.msra.mxu0 %v30
  %83 = vmatprep.subr.mxu0 0.0
  %84 = vmatpush1.msra.mxu0 %v29
  %85 = vmatprep.subr.mxu0 0.0
  %86 = vmatpush2.msra.mxu0 0.0
  %87 = vmatprep.subr.mxu0 0.0
  %88 = vmatpush2.msra.mxu0 0.0
  %89 = vmatprep.subr.mxu0 0.0
  %90 = vmatpush2.msra.mxu0 0.0
  %91 = vmatprep.subr.mxu0 0.0
  %92 = vmatpush2.msra.mxu0 0.0
  %93 = vmatprep.subr.mxu0 0.0
  %94 = vmatpush2.msra.mxu0 0.0
  %95 = vmatprep.subr.mxu0 0.0
  %96 = vmatpush2.msra.mxu0 0.0
  %97 = vmatprep.subr.mxu0 0.0
  %98 = vmatpush2.msra.mxu0 0.0
  %99 = vmatprep.subr.mxu0 0.0
  %100 = vmatpush2.msra.mxu0 0.0
  %101 = vmatprep.subr.mxu0 0.0
  %102 = vmatpush2.msra.mxu0 0.0
  %103 = vmatprep.subr.mxu0 0.0
  %104 = vmatpush2.msra.mxu0 0.0
  %105 = vmatprep.subr.mxu0 0.0
  %106 = vmatpush2.msra.mxu0 0.0
  %107 = vmatprep.subr.mxu0 0.0
  %108 = vmatpush2.msra.mxu0 0.0
  %109 = vmatprep.subr.mxu0 0.0
  %110 = vmatpush2.msra.mxu0 0.0
  %111 = vmatprep.subr.mxu0 0.0
  %112 = vmatpush2.msra.mxu0 0.0
  %113 = vmatprep.subr.mxu0 0.0
  %114 = vmatpush2.msra.mxu0 0.0
  %115 = vmatprep.subr.mxu0 0.0
  %116 = vmatpush2.msra.mxu0 0.0
  %117 = vmatprep.mubr.f32.mxu0 0.0
  %118 = vmatmul.mubr.f32.gmra.mxu0 %v48
  %v119 = vpop.f32.mrf.mxu0
  %v120 = vadd.f32 %v45, %v119
  %v121 = vpop.f32.mrf.mxu0
  %122 = vmatprep.mubr.f32.mxu0 0.0
  %123 = vmatmul.mubr.f32.gmra.mxu0 %v51
  %v124 = vpop.f32.mrf.mxu0
  %v125 = vadd.f32 %v45, %v124
  %v126 = vpop.f32.mrf.mxu0
  %127 = vdwg.mxu0
  %130 = vrot.lane.b32.xlu0 %v120, 96
  %v131 = vpop.permute.xlu0 %130
  %132 = vrot.lane.b32.xlu0 %v125, 96
  %v133 = vpop.permute.xlu0 %132
  %vm134 = vcmask 64512
  %v135 = vsel %vm134, %v120, 0
  %v137 = vsel %vm134, %v125, 0
  %v139 = vsel %vm134, %v131, 0
  %v141 = vsel %vm134, %v133, 0
  %143 = vmatprep.subr.mxu0 0.0
  %144 = vmatpush1.xpose.msra.mxu0 0.0
  %145 = vmatprep.subr.mxu0 0.0
  %146 = vmatpush1.xpose.msra.mxu0 0.0
  %147 = vmatprep.subr.mxu0 0.0
  %148 = vmatpush1.xpose.msra.mxu0 0.0
  %149 = vmatprep.subr.mxu0 0.0
  %150 = vmatpush1.xpose.msra.mxu0 0.0
  %151 = vmatprep.subr.mxu0 0.0
  %152 = vmatpush1.xpose.msra.mxu0 0.0
  %153 = vmatprep.subr.mxu0 0.0
  %154 = vmatpush1.xpose.msra.mxu0 0.0
  %155 = vmatprep.subr.mxu0 0.0
  %156 = vmatpush1.xpose.msra.mxu0 0.0
  %157 = vmatprep.subr.mxu0 0.0
  %158 = vmatpush1.xpose.msra.mxu0 0.0
  %159 = vmatprep.subr.mxu0 0.0
  %160 = vmatpush1.xpose.msra.mxu0 0.0
  %161 = vmatprep.subr.mxu0 0.0
  %162 = vmatpush1.xpose.msra.mxu0 0.0
  %163 = vmatprep.subr.mxu0 0.0
  %164 = vmatpush1.xpose.msra.mxu0 0.0
  %165 = vmatprep.subr.mxu0 0.0
  %166 = vmatpush1.xpose.msra.mxu0 0.0
  %167 = vmatprep.subr.mxu0 0.0
  %168 = vmatpush1.xpose.msra.mxu0 0.0
  %169 = vmatprep.subr.mxu0 0.0
  %170 = vmatpush1.xpose.msra.mxu0 0.0
  %171 = vmatprep.subr.mxu0 0.0
  %172 = vmatpush1.xpose.msra.mxu0 %v141
  %173 = vmatprep.subr.mxu0 0.0
  %174 = vmatpush1.xpose.msra.mxu0 %v139
  %175 = vmatprep.subr.mxu0 0.0
  %176 = vmatpush2.xpose.msra.mxu0 0.0
  %177 = vmatprep.subr.mxu0 0.0
  %178 = vmatpush2.xpose.msra.mxu0 0.0
  %179 = vmatprep.subr.mxu0 0.0
  %180 = vmatpush2.xpose.msra.mxu0 0.0
  %181 = vmatprep.subr.mxu0 0.0
  %182 = vmatpush2.xpose.msra.mxu0 0.0
  %183 = vmatprep.subr.mxu0 0.0
  %184 = vmatpush2.xpose.msra.mxu0 0.0
  %185 = vmatprep.subr.mxu0 0.0
  %186 = vmatpush2.xpose.msra.mxu0 0.0
  %187 = vmatprep.subr.mxu0 0.0
  %188 = vmatpush2.xpose.msra.mxu0 0.0
  %189 = vmatprep.subr.mxu0 0.0
  %190 = vmatpush2.xpose.msra.mxu0 0.0
  %191 = vmatprep.subr.mxu0 0.0
  %192 = vmatpush2.xpose.msra.mxu0 0.0
  %193 = vmatprep.subr.mxu0 0.0
  %194 = vmatpush2.xpose.msra.mxu0 0.0
  %195 = vmatprep.subr.mxu0 0.0
  %196 = vmatpush2.xpose.msra.mxu0 0.0
  %197 = vmatprep.subr.mxu0 0.0
  %198 = vmatpush2.xpose.msra.mxu0 0.0
  %199 = vmatprep.subr.mxu0 0.0
  %200 = vmatpush2.xpose.msra.mxu0 0.0
  %201 = vmatprep.subr.mxu0 0.0
  %202 = vmatpush2.xpose.msra.mxu0 0.0
  %203 = vmatprep.subr.mxu0 0.0
  %204 = vmatpush2.xpose.msra.mxu0 0.0
  %205 = vmatprep.subr.mxu0 0.0
  %206 = vmatpush2.xpose.msra.mxu0 0.0
  %207 = vmatprep.mubr.f32.mxu0 0.0
  %208 = vmatmul.mubr.f32.gmra.mxu0 %v135
  %v209 = vpop.f32.mrf.mxu0
  %v210 = vadd.f32 0.0, %v209
  %v211 = vpop.f32.mrf.mxu0
  %212 = vmatprep.mubr.f32.mxu0 0.0
  %213 = vmatmul.mubr.f32.gmra.mxu0 %v137
  %v214 = vpop.f32.mrf.mxu0
  %v215 = vadd.f32 0.0, %v214
  %v216 = vpop.f32.mrf.mxu0
  %217 = vdwg.mxu0
  %v218 = vmul.f32 %v210, 0.35355338
  %v219 = vmul.f32 %v215, 0.35355338
  %v220 = vadd.f32 %v218, %v27
  %v221 = vadd.f32 %v219, %v28
  %vm222 = vcmask 130048
  %v223 = vsel %vm222, %v220, -inf
  %224 = vmax.xlane.f32.xlu0 %v223
  %v225 = vpop.xlane.xlu0 %224
  %v226 = vsel %vm222, %v221, -inf
  %227 = vmax.xlane.f32.xlu0 %v226
  %v228 = vpop.xlane.xlu0 %227
  %v229 = vsub.f32 %v220, %v225
  %v230 = vsub.f32 %v221, %v228
  %v231 = vmul.f32 %v229, 1.442695
  %v232 = vpow.pop %v231
  %v233 = vmul.f32 %v230, 1.442695
  %v234 = vpow.pop %v233
  %v235 = vsel %vm222, %v232, 0.0
  %236 = vadd.xlane.f32.xlu0 %v235
  %v237 = vpop.xlane.xlu0 %236
  %v238 = vsel %vm222, %v234, 0.0
  %239 = vadd.xlane.f32.xlu0 %v238
  %v240 = vpop.xlane.xlu0 %239
  %v241 = vrcp.pop %v237
  %v242 = vrcp.pop %v240
  %v243 = vmul.f32 %v232, %v241
  %v244 = vmul.f32 %v234, %v242
  %245 = vrot.lane.b32.xlu0 %v120, 64
  %v246 = vpop.permute.xlu0 %245
  %247 = vrot.lane.b32.xlu0 %v125, 64
  %v248 = vpop.permute.xlu0 %247
  %v252 = vsel %vm222, %v243, 0
  %v255 = vsel %vm222, %v244, 0
  %257 = vmatprep.subr.mxu0 0.0
  %258 = vmatpush1.msra.mxu0 0.0
  %259 = vmatprep.subr.mxu0 0.0
  %260 = vmatpush1.msra.mxu0 0.0
  %261 = vmatprep.subr.mxu0 0.0
  %262 = vmatpush1.msra.mxu0 0.0
  %263 = vmatprep.subr.mxu0 0.0
  %264 = vmatpush1.msra.mxu0 0.0
  %265 = vmatprep.subr.mxu0 0.0
  %266 = vmatpush1.msra.mxu0 0.0
  %267 = vmatprep.subr.mxu0 0.0
  %268 = vmatpush1.msra.mxu0 0.0
  %269 = vmatprep.subr.mxu0 0.0
  %270 = vmatpush1.msra.mxu0 0.0
  %271 = vmatprep.subr.mxu0 0.0
  %272 = vmatpush1.msra.mxu0 0.0
  %273 = vmatprep.subr.mxu0 0.0
  %274 = vmatpush1.msra.mxu0 0.0
  %275 = vmatprep.subr.mxu0 0.0
  %276 = vmatpush1.msra.mxu0 0.0
  %277 = vmatprep.subr.mxu0 0.0
  %278 = vmatpush1.msra.mxu0 0.0
  %279 = vmatprep.subr.mxu0 0.0
  %280 = vmatpush1.msra.mxu0 0.0
  %281 = vmatprep.subr.mxu0 0.0
  %282 = vmatpush1.msra.mxu0 0.0
  %283 = vmatprep.subr.mxu0 0.0
  %284 = vmatpush1.msra.mxu0 0.0
  %285 = vmatprep.subr.mxu0 0.0
  %286 = vmatpush1.msra.mxu0 %v248
  %287 = vmatprep.subr.mxu0 0.0
  %288 = vmatpush1.msra.mxu0 %v246
  %289 = vmatprep.subr.mxu0 0.0
  %290 = vmatpush2.msra.mxu0 0.0
  %291 = vmatprep.subr.mxu0 0.0
  %292 = vmatpush2.msra.mxu0 0.0
  %293 = vmatprep.subr.mxu0 0.0
  %294 = vmatpush2.msra.mxu0 0.0
  %295 = vmatprep.subr.mxu0 0.0
  %296 = vmatpush2.msra.mxu0 0.0
  %297 = vmatprep.subr.mxu0 0.0
  %298 = vmatpush2.msra.mxu0 0.0
  %299 = vmatprep.subr.mxu0 0.0
  %300 = vmatpush2.msra.mxu0 0.0
  %301 = vmatprep.subr.mxu0 0.0
  %302 = vmatpush2.msra.mxu0 0.0
  %303 = vmatprep.subr.mxu0 0.0
  %304 = vmatpush2.msra.mxu0 0.0
  %305 = vmatprep.subr.mxu0 0.0
  %306 = vmatpush2.msra.mxu0 0.0
  %307 = vmatprep.subr.mxu0 0.0
  %308 = vmatpush2.msra.mxu0 0.0
  %309 = vmatprep.subr.mxu0 0.0
  %310 = vmatpush2.msra.mxu0 0.0
  %311 = vmatprep.subr.mxu0 0.0
  %312 = vmatpush2.msra.mxu0 0.0
  %313 = vmatprep.subr.mxu0 0.0
  %314 = vmatpush2.msra.mxu0 0.0
  %315 = vmatprep.subr.mxu0 0.0
  %316 = vmatpush2.msra.mxu0 0.0
  %317 = vmatprep.subr.mxu0 0.0
  %318 = vmatpush2.msra.mxu0 0.0
  %319 = vmatprep.subr.mxu0 0.0
  %320 = vmatpush2.msra.mxu0 0.0
  %321 = vmatprep.mubr.f32.mxu0 0.0
  %322 = vmatmul.mubr.f32.gmra.mxu0 %v252
  %v323 = vpop.f32.mrf.mxu0
  %v324 = vadd.f32 0.0, %v323
  %v325 = vpop.f32.mrf.mxu0
  %326 = vmatprep.mubr.f32.mxu0 0.0
  %327 = vmatmul.mubr.f32.gmra.mxu0 %v255
  %v328 = vpop.f32.mrf.mxu0
  %v329 = vadd.f32 0.0, %v328
  %v330 = vpop.f32.mrf.mxu0
  %331 = vdwg.mxu0
  %332 = vrot.lane.b32.xlu0 %v120, 120
  %v333 = vpop.permute.xlu0 %332
  %334 = vrot.lane.b32.xlu0 %v125, 120
  %v335 = vpop.permute.xlu0 %334
  %336 = vrot.lane.b32.xlu0 %v120, 88
  %v337 = vpop.permute.xlu0 %336
  %338 = vrot.lane.b32.xlu0 %v125, 88
  %v339 = vpop.permute.xlu0 %338
  %v340 = vsel %vm134, %v333, 0
  %v342 = vsel %vm134, %v335, 0
  %v344 = vsel %vm134, %v337, 0
  %v346 = vsel %vm134, %v339, 0
  %348 = vmatprep.subr.mxu0 0.0
  %349 = vmatpush1.xpose.msra.mxu0 0.0
  %350 = vmatprep.subr.mxu0 0.0
  %351 = vmatpush1.xpose.msra.mxu0 0.0
  %352 = vmatprep.subr.mxu0 0.0
  %353 = vmatpush1.xpose.msra.mxu0 0.0
  %354 = vmatprep.subr.mxu0 0.0
  %355 = vmatpush1.xpose.msra.mxu0 0.0
  %356 = vmatprep.subr.mxu0 0.0
  %357 = vmatpush1.xpose.msra.mxu0 0.0
  %358 = vmatprep.subr.mxu0 0.0
  %359 = vmatpush1.xpose.msra.mxu0 0.0
  %360 = vmatprep.subr.mxu0 0.0
  %361 = vmatpush1.xpose.msra.mxu0 0.0
  %362 = vmatprep.subr.mxu0 0.0
  %363 = vmatpush1.xpose.msra.mxu0 0.0
  %364 = vmatprep.subr.mxu0 0.0
  %365 = vmatpush1.xpose.msra.mxu0 0.0
  %366 = vmatprep.subr.mxu0 0.0
  %367 = vmatpush1.xpose.msra.mxu0 0.0
  %368 = vmatprep.subr.mxu0 0.0
  %369 = vmatpush1.xpose.msra.mxu0 0.0
  %370 = vmatprep.subr.mxu0 0.0
  %371 = vmatpush1.xpose.msra.mxu0 0.0
  %372 = vmatprep.subr.mxu0 0.0
  %373 = vmatpush1.xpose.msra.mxu0 0.0
  %374 = vmatprep.subr.mxu0 0.0
  %375 = vmatpush1.xpose.msra.mxu0 0.0
  %376 = vmatprep.subr.mxu0 0.0
  %377 = vmatpush1.xpose.msra.mxu0 %v346
  %378 = vmatprep.subr.mxu0 0.0
  %379 = vmatpush1.xpose.msra.mxu0 %v344
  %380 = vmatprep.subr.mxu0 0.0
  %381 = vmatpush2.xpose.msra.mxu0 0.0
  %382 = vmatprep.subr.mxu0 0.0
  %383 = vmatpush2.xpose.msra.mxu0 0.0
  %384 = vmatprep.subr.mxu0 0.0
  %385 = vmatpush2.xpose.msra.mxu0 0.0
  %386 = vmatprep.subr.mxu0 0.0
  %387 = vmatpush2.xpose.msra.mxu0 0.0
  %388 = vmatprep.subr.mxu0 0.0
  %389 = vmatpush2.xpose.msra.mxu0 0.0
  %390 = vmatprep.subr.mxu0 0.0
  %391 = vmatpush2.xpose.msra.mxu0 0.0
  %392 = vmatprep.subr.mxu0 0.0
  %393 = vmatpush2.xpose.msra.mxu0 0.0
  %394 = vmatprep.subr.mxu0 0.0
  %395 = vmatpush2.xpose.msra.mxu0 0.0
  %396 = vmatprep.subr.mxu0 0.0
  %397 = vmatpush2.xpose.msra.mxu0 0.0
  %398 = vmatprep.subr.mxu0 0.0
  %399 = vmatpush2.xpose.msra.mxu0 0.0
  %400 = vmatprep.subr.mxu0 0.0
  %401 = vmatpush2.xpose.msra.mxu0 0.0
  %402 = vmatprep.subr.mxu0 0.0
  %403 = vmatpush2.xpose.msra.mxu0 0.0
  %404 = vmatprep.subr.mxu0 0.0
  %405 = vmatpush2.xpose.msra.mxu0 0.0
  %406 = vmatprep.subr.mxu0 0.0
  %407 = vmatpush2.xpose.msra.mxu0 0.0
  %408 = vmatprep.subr.mxu0 0.0
  %409 = vmatpush2.xpose.msra.mxu0 0.0
  %410 = vmatprep.subr.mxu0 0.0
  %411 = vmatpush2.xpose.msra.mxu0 0.0
  %412 = vmatprep.mubr.f32.mxu0 0.0
  %413 = vmatmul.mubr.f32.gmra.mxu0 %v340
  %v414 = vpop.f32.mrf.mxu0
  %v415 = vadd.f32 0.0, %v414
  %v416 = vpop.f32.mrf.mxu0
  %417 = vmatprep.mubr.f32.mxu0 0.0
  %418 = vmatmul.mubr.f32.gmra.mxu0 %v342
  %v419 = vpop.f32.mrf.mxu0
  %v420 = vadd.f32 0.0, %v419
  %v421 = vpop.f32.mrf.mxu0
  %422 = vdwg.mxu0
  %v423 = vmul.f32 %v415, 0.35355338
  %v424 = vmul.f32 %v420, 0.35355338
  %v425 = vadd.f32 %v423, %v27
  %v426 = vadd.f32 %v424, %v28
  %v427 = vsel %vm222, %v425, -inf
  %428 = vmax.xlane.f32.xlu0 %v427
  %v429 = vpop.xlane.xlu0 %428
  %v430 = vsel %vm222, %v426, -inf
  %431 = vmax.xlane.f32.xlu0 %v430
  %v432 = vpop.xlane.xlu0 %431
  %v433 = vsub.f32 %v425, %v429
  %v434 = vsub.f32 %v426, %v432
  %v435 = vmul.f32 %v433, 1.442695
  %v436 = vpow.pop %v435
  %v437 = vmul.f32 %v434, 1.442695
  %v438 = vpow.pop %v437
  %v439 = vsel %vm222, %v436, 0.0
  %440 = vadd.xlane.f32.xlu0 %v439
  %v441 = vpop.xlane.xlu0 %440
  %v442 = vsel %vm222, %v438, 0.0
  %443 = vadd.xlane.f32.xlu0 %v442
  %v444 = vpop.xlane.xlu0 %443
  %v445 = vrcp.pop %v441
  %v446 = vrcp.pop %v444
  %v447 = vmul.f32 %v436, %v445
  %v448 = vmul.f32 %v438, %v446
  %449 = vrot.lane.b32.xlu0 %v120, 56
  %v450 = vpop.permute.xlu0 %449
  %451 = vrot.lane.b32.xlu0 %v125, 56
  %v452 = vpop.permute.xlu0 %451
  %v456 = vsel %vm222, %v447, 0
  %v459 = vsel %vm222, %v448, 0
  %461 = vmatprep.subr.mxu0 0.0
  %462 = vmatpush1.msra.mxu0 0.0
  %463 = vmatprep.subr.mxu0 0.0
  %464 = vmatpush1.msra.mxu0 0.0
  %465 = vmatprep.subr.mxu0 0.0
  %466 = vmatpush1.msra.mxu0 0.0
  %467 = vmatprep.subr.mxu0 0.0
  %468 = vmatpush1.msra.mxu0 0.0
  %469 = vmatprep.subr.mxu0 0.0
  %470 = vmatpush1.msra.mxu0 0.0
  %471 = vmatprep.subr.mxu0 0.0
  %472 = vmatpush1.msra.mxu0 0.0
  %473 = vmatprep.subr.mxu0 0.0
  %474 = vmatpush1.msra.mxu0 0.0
  %475 = vmatprep.subr.mxu0 0.0
  %476 = vmatpush1.msra.mxu0 0.0
  %477 = vmatprep.subr.mxu0 0.0
  %478 = vmatpush1.msra.mxu0 0.0
  %479 = vmatprep.subr.mxu0 0.0
  %480 = vmatpush1.msra.mxu0 0.0
  %481 = vmatprep.subr.mxu0 0.0
  %482 = vmatpush1.msra.mxu0 0.0
  %483 = vmatprep.subr.mxu0 0.0
  %484 = vmatpush1.msra.mxu0 0.0
  %485 = vmatprep.subr.mxu0 0.0
  %486 = vmatpush1.msra.mxu0 0.0
  %487 = vmatprep.subr.mxu0 0.0
  %488 = vmatpush1.msra.mxu0 0.0
  %489 = vmatprep.subr.mxu0 0.0
  %490 = vmatpush1.msra.mxu0 %v452
  %491 = vmatprep.subr.mxu0 0.0
  %492 = vmatpush1.msra.mxu0 %v450
  %493 = vmatprep.subr.mxu0 0.0
  %494 = vmatpush2.msra.mxu0 0.0
  %495 = vmatprep.subr.mxu0 0.0
  %496 = vmatpush2.msra.mxu0 0.0
  %497 = vmatprep.subr.mxu0 0.0
  %498 = vmatpush2.msra.mxu0 0.0
  %499 = vmatprep.subr.mxu0 0.0
  %500 = vmatpush2.msra.mxu0 0.0
  %501 = vmatprep.subr.mxu0 0.0
  %502 = vmatpush2.msra.mxu0 0.0
  %503 = vmatprep.subr.mxu0 0.0
  %504 = vmatpush2.msra.mxu0 0.0
  %505 = vmatprep.subr.mxu0 0.0
  %506 = vmatpush2.msra.mxu0 0.0
  %507 = vmatprep.subr.mxu0 0.0
  %508 = vmatpush2.msra.mxu0 0.0
  %509 = vmatprep.subr.mxu0 0.0
  %510 = vmatpush2.msra.mxu0 0.0
  %511 = vmatprep.subr.mxu0 0.0
  %512 = vmatpush2.msra.mxu0 0.0
  %513 = vmatprep.subr.mxu0 0.0
  %514 = vmatpush2.msra.mxu0 0.0
  %515 = vmatprep.subr.mxu0 0.0
  %516 = vmatpush2.msra.mxu0 0.0
  %517 = vmatprep.subr.mxu0 0.0
  %518 = vmatpush2.msra.mxu0 0.0
  %519 = vmatprep.subr.mxu0 0.0
  %520 = vmatpush2.msra.mxu0 0.0
  %521 = vmatprep.subr.mxu0 0.0
  %522 = vmatpush2.msra.mxu0 0.0
  %523 = vmatprep.subr.mxu0 0.0
  %524 = vmatpush2.msra.mxu0 0.0
  %525 = vmatprep.mubr.f32.mxu0 0.0
  %526 = vmatmul.mubr.f32.gmra.mxu0 %v456
  %v527 = vpop.f32.mrf.mxu0
  %v528 = vadd.f32 0.0, %v527
  %v529 = vpop.f32.mrf.mxu0
  %530 = vmatprep.mubr.f32.mxu0 0.0
  %531 = vmatmul.mubr.f32.gmra.mxu0 %v459
  %v532 = vpop.f32.mrf.mxu0
  %v533 = vadd.f32 0.0, %v532
  %v534 = vpop.f32.mrf.mxu0
  %535 = vdwg.mxu0
  %536 = vrot.lane.b32.xlu0 %v120, 112
  %v537 = vpop.permute.xlu0 %536
  %538 = vrot.lane.b32.xlu0 %v125, 112
  %v539 = vpop.permute.xlu0 %538
  %540 = vrot.lane.b32.xlu0 %v120, 80
  %v541 = vpop.permute.xlu0 %540
  %542 = vrot.lane.b32.xlu0 %v125, 80
  %v543 = vpop.permute.xlu0 %542
  %v544 = vsel %vm134, %v537, 0
  %v546 = vsel %vm134, %v539, 0
  %v548 = vsel %vm134, %v541, 0
  %v550 = vsel %vm134, %v543, 0
  %552 = vmatprep.subr.mxu0 0.0
  %553 = vmatpush1.xpose.msra.mxu0 0.0
  %554 = vmatprep.subr.mxu0 0.0
  %555 = vmatpush1.xpose.msra.mxu0 0.0
  %556 = vmatprep.subr.mxu0 0.0
  %557 = vmatpush1.xpose.msra.mxu0 0.0
  %558 = vmatprep.subr.mxu0 0.0
  %559 = vmatpush1.xpose.msra.mxu0 0.0
  %560 = vmatprep.subr.mxu0 0.0
  %561 = vmatpush1.xpose.msra.mxu0 0.0
  %562 = vmatprep.subr.mxu0 0.0
  %563 = vmatpush1.xpose.msra.mxu0 0.0
  %564 = vmatprep.subr.mxu0 0.0
  %565 = vmatpush1.xpose.msra.mxu0 0.0
  %566 = vmatprep.subr.mxu0 0.0
  %567 = vmatpush1.xpose.msra.mxu0 0.0
  %568 = vmatprep.subr.mxu0 0.0
  %569 = vmatpush1.xpose.msra.mxu0 0.0
  %570 = vmatprep.subr.mxu0 0.0
  %571 = vmatpush1.xpose.msra.mxu0 0.0
  %572 = vmatprep.subr.mxu0 0.0
  %573 = vmatpush1.xpose.msra.mxu0 0.0
  %574 = vmatprep.subr.mxu0 0.0
  %575 = vmatpush1.xpose.msra.mxu0 0.0
  %576 = vmatprep.subr.mxu0 0.0
  %577 = vmatpush1.xpose.msra.mxu0 0.0
  %578 = vmatprep.subr.mxu0 0.0
  %579 = vmatpush1.xpose.msra.mxu0 0.0
  %580 = vmatprep.subr.mxu0 0.0
  %581 = vmatpush1.xpose.msra.mxu0 %v550
  %582 = vmatprep.subr.mxu0 0.0
  %583 = vmatpush1.xpose.msra.mxu0 %v548
  %584 = vmatprep.subr.mxu0 0.0
  %585 = vmatpush2.xpose.msra.mxu0 0.0
  %586 = vmatprep.subr.mxu0 0.0
  %587 = vmatpush2.xpose.msra.mxu0 0.0
  %588 = vmatprep.subr.mxu0 0.0
  %589 = vmatpush2.xpose.msra.mxu0 0.0
  %590 = vmatprep.subr.mxu0 0.0
  %591 = vmatpush2.xpose.msra.mxu0 0.0
  %592 = vmatprep.subr.mxu0 0.0
  %593 = vmatpush2.xpose.msra.mxu0 0.0
  %594 = vmatprep.subr.mxu0 0.0
  %595 = vmatpush2.xpose.msra.mxu0 0.0
  %596 = vmatprep.subr.mxu0 0.0
  %597 = vmatpush2.xpose.msra.mxu0 0.0
  %598 = vmatprep.subr.mxu0 0.0
  %599 = vmatpush2.xpose.msra.mxu0 0.0
  %600 = vmatprep.subr.mxu0 0.0
  %601 = vmatpush2.xpose.msra.mxu0 0.0
  %602 = vmatprep.subr.mxu0 0.0
  %603 = vmatpush2.xpose.msra.mxu0 0.0
  %604 = vmatprep.subr.mxu0 0.0
  %605 = vmatpush2.xpose.msra.mxu0 0.0
  %606 = vmatprep.subr.mxu0 0.0
  %607 = vmatpush2.xpose.msra.mxu0 0.0
  %608 = vmatprep.subr.mxu0 0.0
  %609 = vmatpush2.xpose.msra.mxu0 0.0
  %610 = vmatprep.subr.mxu0 0.0
  %611 = vmatpush2.xpose.msra.mxu0 0.0
  %612 = vmatprep.subr.mxu0 0.0
  %613 = vmatpush2.xpose.msra.mxu0 0.0
  %614 = vmatprep.subr.mxu0 0.0
  %615 = vmatpush2.xpose.msra.mxu0 0.0
  %616 = vmatprep.mubr.f32.mxu0 0.0
  %617 = vmatmul.mubr.f32.gmra.mxu0 %v544
  %v618 = vpop.f32.mrf.mxu0
  %v619 = vadd.f32 0.0, %v618
  %v620 = vpop.f32.mrf.mxu0
  %621 = vmatprep.mubr.f32.mxu0 0.0
  %622 = vmatmul.mubr.f32.gmra.mxu0 %v546
  %v623 = vpop.f32.mrf.mxu0
  %v624 = vadd.f32 0.0, %v623
  %v625 = vpop.f32.mrf.mxu0
  %626 = vdwg.mxu0
  %v627 = vmul.f32 %v619, 0.35355338
  %v628 = vmul.f32 %v624, 0.35355338
  %v629 = vadd.f32 %v627, %v27
  %v630 = vadd.f32 %v628, %v28
  %v631 = vsel %vm222, %v629, -inf
  %632 = vmax.xlane.f32.xlu0 %v631
  %v633 = vpop.xlane.xlu0 %632
  %v634 = vsel %vm222, %v630, -inf
  %635 = vmax.xlane.f32.xlu0 %v634
  %v636 = vpop.xlane.xlu0 %635
  %v637 = vsub.f32 %v629, %v633
  %v638 = vsub.f32 %v630, %v636
  %v639 = vmul.f32 %v637, 1.442695
  %v640 = vpow.pop %v639
  %v641 = vmul.f32 %v638, 1.442695
  %v642 = vpow.pop %v641
  %v643 = vsel %vm222, %v640, 0.0
  %644 = vadd.xlane.f32.xlu0 %v643
  %v645 = vpop.xlane.xlu0 %644
  %v646 = vsel %vm222, %v642, 0.0
  %647 = vadd.xlane.f32.xlu0 %v646
  %v648 = vpop.xlane.xlu0 %647
  %v649 = vrcp.pop %v645
  %v650 = vrcp.pop %v648
  %v651 = vmul.f32 %v640, %v649
  %v652 = vmul.f32 %v642, %v650
  %653 = vrot.lane.b32.xlu0 %v120, 48
  %v654 = vpop.permute.xlu0 %653
  %655 = vrot.lane.b32.xlu0 %v125, 48
  %v656 = vpop.permute.xlu0 %655
  %v660 = vsel %vm222, %v651, 0
  %v663 = vsel %vm222, %v652, 0
  %665 = vmatprep.subr.mxu0 0.0
  %666 = vmatpush1.msra.mxu0 0.0
  %667 = vmatprep.subr.mxu0 0.0
  %668 = vmatpush1.msra.mxu0 0.0
  %669 = vmatprep.subr.mxu0 0.0
  %670 = vmatpush1.msra.mxu0 0.0
  %671 = vmatprep.subr.mxu0 0.0
  %672 = vmatpush1.msra.mxu0 0.0
  %673 = vmatprep.subr.mxu0 0.0
  %674 = vmatpush1.msra.mxu0 0.0
  %675 = vmatprep.subr.mxu0 0.0
  %676 = vmatpush1.msra.mxu0 0.0
  %677 = vmatprep.subr.mxu0 0.0
  %678 = vmatpush1.msra.mxu0 0.0
  %679 = vmatprep.subr.mxu0 0.0
  %680 = vmatpush1.msra.mxu0 0.0
  %681 = vmatprep.subr.mxu0 0.0
  %682 = vmatpush1.msra.mxu0 0.0
  %683 = vmatprep.subr.mxu0 0.0
  %684 = vmatpush1.msra.mxu0 0.0
  %685 = vmatprep.subr.mxu0 0.0
  %686 = vmatpush1.msra.mxu0 0.0
  %687 = vmatprep.subr.mxu0 0.0
  %688 = vmatpush1.msra.mxu0 0.0
  %689 = vmatprep.subr.mxu0 0.0
  %690 = vmatpush1.msra.mxu0 0.0
  %691 = vmatprep.subr.mxu0 0.0
  %692 = vmatpush1.msra.mxu0 0.0
  %693 = vmatprep.subr.mxu0 0.0
  %694 = vmatpush1.msra.mxu0 %v656
  %695 = vmatprep.subr.mxu0 0.0
  %696 = vmatpush1.msra.mxu0 %v654
  %697 = vmatprep.subr.mxu0 0.0
  %698 = vmatpush2.msra.mxu0 0.0
  %699 = vmatprep.subr.mxu0 0.0
  %700 = vmatpush2.msra.mxu0 0.0
  %701 = vmatprep.subr.mxu0 0.0
  %702 = vmatpush2.msra.mxu0 0.0
  %703 = vmatprep.subr.mxu0 0.0
  %704 = vmatpush2.msra.mxu0 0.0
  %705 = vmatprep.subr.mxu0 0.0
  %706 = vmatpush2.msra.mxu0 0.0
  %707 = vmatprep.subr.mxu0 0.0
  %708 = vmatpush2.msra.mxu0 0.0
  %709 = vmatprep.subr.mxu0 0.0
  %710 = vmatpush2.msra.mxu0 0.0
  %711 = vmatprep.subr.mxu0 0.0
  %712 = vmatpush2.msra.mxu0 0.0
  %713 = vmatprep.subr.mxu0 0.0
  %714 = vmatpush2.msra.mxu0 0.0
  %715 = vmatprep.subr.mxu0 0.0
  %716 = vmatpush2.msra.mxu0 0.0
  %717 = vmatprep.subr.mxu0 0.0
  %718 = vmatpush2.msra.mxu0 0.0
  %719 = vmatprep.subr.mxu0 0.0
  %720 = vmatpush2.msra.mxu0 0.0
  %721 = vmatprep.subr.mxu0 0.0
  %722 = vmatpush2.msra.mxu0 0.0
  %723 = vmatprep.subr.mxu0 0.0
  %724 = vmatpush2.msra.mxu0 0.0
  %725 = vmatprep.subr.mxu0 0.0
  %726 = vmatpush2.msra.mxu0 0.0
  %727 = vmatprep.subr.mxu0 0.0
  %728 = vmatpush2.msra.mxu0 0.0
  %729 = vmatprep.mubr.f32.mxu0 0.0
  %730 = vmatmul.mubr.f32.gmra.mxu0 %v660
  %v731 = vpop.f32.mrf.mxu0
  %v732 = vadd.f32 0.0, %v731
  %v733 = vpop.f32.mrf.mxu0
  %734 = vmatprep.mubr.f32.mxu0 0.0
  %735 = vmatmul.mubr.f32.gmra.mxu0 %v663
  %v736 = vpop.f32.mrf.mxu0
  %v737 = vadd.f32 0.0, %v736
  %v738 = vpop.f32.mrf.mxu0
  %739 = vdwg.mxu0
  %740 = vrot.lane.b32.xlu0 %v120, 104
  %v741 = vpop.permute.xlu0 %740
  %742 = vrot.lane.b32.xlu0 %v125, 104
  %v743 = vpop.permute.xlu0 %742
  %744 = vrot.lane.b32.xlu0 %v120, 72
  %v745 = vpop.permute.xlu0 %744
  %746 = vrot.lane.b32.xlu0 %v125, 72
  %v747 = vpop.permute.xlu0 %746
  %v748 = vsel %vm134, %v741, 0
  %v750 = vsel %vm134, %v743, 0
  %v752 = vsel %vm134, %v745, 0
  %v754 = vsel %vm134, %v747, 0
  %756 = vmatprep.subr.mxu0 0.0
  %757 = vmatpush1.xpose.msra.mxu0 0.0
  %758 = vmatprep.subr.mxu0 0.0
  %759 = vmatpush1.xpose.msra.mxu0 0.0
  %760 = vmatprep.subr.mxu0 0.0
  %761 = vmatpush1.xpose.msra.mxu0 0.0
  %762 = vmatprep.subr.mxu0 0.0
  %763 = vmatpush1.xpose.msra.mxu0 0.0
  %764 = vmatprep.subr.mxu0 0.0
  %765 = vmatpush1.xpose.msra.mxu0 0.0
  %766 = vmatprep.subr.mxu0 0.0
  %767 = vmatpush1.xpose.msra.mxu0 0.0
  %768 = vmatprep.subr.mxu0 0.0
  %769 = vmatpush1.xpose.msra.mxu0 0.0
  %770 = vmatprep.subr.mxu0 0.0
  %771 = vmatpush1.xpose.msra.mxu0 0.0
  %772 = vmatprep.subr.mxu0 0.0
  %773 = vmatpush1.xpose.msra.mxu0 0.0
  %774 = vmatprep.subr.mxu0 0.0
  %775 = vmatpush1.xpose.msra.mxu0 0.0
  %776 = vmatprep.subr.mxu0 0.0
  %777 = vmatpush1.xpose.msra.mxu0 0.0
  %778 = vmatprep.subr.mxu0 0.0
  %779 = vmatpush1.xpose.msra.mxu0 0.0
  %780 = vmatprep.subr.mxu0 0.0
  %781 = vmatpush1.xpose.msra.mxu0 0.0
  %782 = vmatprep.subr.mxu0 0.0
  %783 = vmatpush1.xpose.msra.mxu0 0.0
  %784 = vmatprep.subr.mxu0 0.0
  %785 = vmatpush1.xpose.msra.mxu0 %v754
  %786 = vmatprep.subr.mxu0 0.0
  %787 = vmatpush1.xpose.msra.mxu0 %v752
  %788 = vmatprep.subr.mxu0 0.0
  %789 = vmatpush2.xpose.msra.mxu0 0.0
  %790 = vmatprep.subr.mxu0 0.0
  %791 = vmatpush2.xpose.msra.mxu0 0.0
  %792 = vmatprep.subr.mxu0 0.0
  %793 = vmatpush2.xpose.msra.mxu0 0.0
  %794 = vmatprep.subr.mxu0 0.0
  %795 = vmatpush2.xpose.msra.mxu0 0.0
  %796 = vmatprep.subr.mxu0 0.0
  %797 = vmatpush2.xpose.msra.mxu0 0.0
  %798 = vmatprep.subr.mxu0 0.0
  %799 = vmatpush2.xpose.msra.mxu0 0.0
  %800 = vmatprep.subr.mxu0 0.0
  %801 = vmatpush2.xpose.msra.mxu0 0.0
  %802 = vmatprep.subr.mxu0 0.0
  %803 = vmatpush2.xpose.msra.mxu0 0.0
  %804 = vmatprep.subr.mxu0 0.0
  %805 = vmatpush2.xpose.msra.mxu0 0.0
  %806 = vmatprep.subr.mxu0 0.0
  %807 = vmatpush2.xpose.msra.mxu0 0.0
  %808 = vmatprep.subr.mxu0 0.0
  %809 = vmatpush2.xpose.msra.mxu0 0.0
  %810 = vmatprep.subr.mxu0 0.0
  %811 = vmatpush2.xpose.msra.mxu0 0.0
  %812 = vmatprep.subr.mxu0 0.0
  %813 = vmatpush2.xpose.msra.mxu0 0.0
  %814 = vmatprep.subr.mxu0 0.0
  %815 = vmatpush2.xpose.msra.mxu0 0.0
  %816 = vmatprep.subr.mxu0 0.0
  %817 = vmatpush2.xpose.msra.mxu0 0.0
  %818 = vmatprep.subr.mxu0 0.0
  %819 = vmatpush2.xpose.msra.mxu0 0.0
  %820 = vmatprep.mubr.f32.mxu0 0.0
  %821 = vmatmul.mubr.f32.gmra.mxu0 %v748
  %v822 = vpop.f32.mrf.mxu0
  %v823 = vadd.f32 0.0, %v822
  %v824 = vpop.f32.mrf.mxu0
  %825 = vmatprep.mubr.f32.mxu0 0.0
  %826 = vmatmul.mubr.f32.gmra.mxu0 %v750
  %v827 = vpop.f32.mrf.mxu0
  %v828 = vadd.f32 0.0, %v827
  %v829 = vpop.f32.mrf.mxu0
  %830 = vdwg.mxu0
  %v831 = vmul.f32 %v823, 0.35355338
  %v832 = vmul.f32 %v828, 0.35355338
  %v833 = vadd.f32 %v831, %v27
  %v834 = vadd.f32 %v832, %v28
  %v835 = vsel %vm222, %v833, -inf
  %836 = vmax.xlane.f32.xlu0 %v835
  %v837 = vpop.xlane.xlu0 %836
  %v838 = vsel %vm222, %v834, -inf
  %839 = vmax.xlane.f32.xlu0 %v838
  %v840 = vpop.xlane.xlu0 %839
  %v841 = vsub.f32 %v833, %v837
  %v842 = vsub.f32 %v834, %v840
  %v843 = vmul.f32 %v841, 1.442695
  %v844 = vpow.pop %v843
  %v845 = vmul.f32 %v842, 1.442695
  %v846 = vpow.pop %v845
  %v847 = vsel %vm222, %v844, 0.0
  %848 = vadd.xlane.f32.xlu0 %v847
  %v849 = vpop.xlane.xlu0 %848
  %v850 = vsel %vm222, %v846, 0.0
  %851 = vadd.xlane.f32.xlu0 %v850
  %v852 = vpop.xlane.xlu0 %851
  %v853 = vrcp.pop %v849
  %v854 = vrcp.pop %v852
  %v855 = vmul.f32 %v844, %v853
  %v856 = vmul.f32 %v846, %v854
  %857 = vrot.lane.b32.xlu0 %v120, 40
  %v858 = vpop.permute.xlu0 %857
  %859 = vrot.lane.b32.xlu0 %v125, 40
  %v860 = vpop.permute.xlu0 %859
  %v864 = vsel %vm222, %v855, 0
  %v867 = vsel %vm222, %v856, 0
  %869 = vmatprep.subr.mxu0 0.0
  %870 = vmatpush1.msra.mxu0 0.0
  %871 = vmatprep.subr.mxu0 0.0
  %872 = vmatpush1.msra.mxu0 0.0
  %873 = vmatprep.subr.mxu0 0.0
  %874 = vmatpush1.msra.mxu0 0.0
  %875 = vmatprep.subr.mxu0 0.0
  %876 = vmatpush1.msra.mxu0 0.0
  %877 = vmatprep.subr.mxu0 0.0
  %878 = vmatpush1.msra.mxu0 0.0
  %879 = vmatprep.subr.mxu0 0.0
  %880 = vmatpush1.msra.mxu0 0.0
  %881 = vmatprep.subr.mxu0 0.0
  %882 = vmatpush1.msra.mxu0 0.0
  %883 = vmatprep.subr.mxu0 0.0
  %884 = vmatpush1.msra.mxu0 0.0
  %885 = vmatprep.subr.mxu0 0.0
  %886 = vmatpush1.msra.mxu0 0.0
  %887 = vmatprep.subr.mxu0 0.0
  %888 = vmatpush1.msra.mxu0 0.0
  %889 = vmatprep.subr.mxu0 0.0
  %890 = vmatpush1.msra.mxu0 0.0
  %891 = vmatprep.subr.mxu0 0.0
  %892 = vmatpush1.msra.mxu0 0.0
  %893 = vmatprep.subr.mxu0 0.0
  %894 = vmatpush1.msra.mxu0 0.0
  %895 = vmatprep.subr.mxu0 0.0
  %896 = vmatpush1.msra.mxu0 0.0
  %897 = vmatprep.subr.mxu0 0.0
  %898 = vmatpush1.msra.mxu0 %v860
  %899 = vmatprep.subr.mxu0 0.0
  %900 = vmatpush1.msra.mxu0 %v858
  %901 = vmatprep.subr.mxu0 0.0
  %902 = vmatpush2.msra.mxu0 0.0
  %903 = vmatprep.subr.mxu0 0.0
  %904 = vmatpush2.msra.mxu0 0.0
  %905 = vmatprep.subr.mxu0 0.0
  %906 = vmatpush2.msra.mxu0 0.0
  %907 = vmatprep.subr.mxu0 0.0
  %908 = vmatpush2.msra.mxu0 0.0
  %909 = vmatprep.subr.mxu0 0.0
  %910 = vmatpush2.msra.mxu0 0.0
  %911 = vmatprep.subr.mxu0 0.0
  %912 = vmatpush2.msra.mxu0 0.0
  %913 = vmatprep.subr.mxu0 0.0
  %914 = vmatpush2.msra.mxu0 0.0
  %915 = vmatprep.subr.mxu0 0.0
  %916 = vmatpush2.msra.mxu0 0.0
  %917 = vmatprep.subr.mxu0 0.0
  %918 = vmatpush2.msra.mxu0 0.0
  %919 = vmatprep.subr.mxu0 0.0
  %920 = vmatpush2.msra.mxu0 0.0
  %921 = vmatprep.subr.mxu0 0.0
  %922 = vmatpush2.msra.mxu0 0.0
  %923 = vmatprep.subr.mxu0 0.0
  %924 = vmatpush2.msra.mxu0 0.0
  %925 = vmatprep.subr.mxu0 0.0
  %926 = vmatpush2.msra.mxu0 0.0
  %927 = vmatprep.subr.mxu0 0.0
  %928 = vmatpush2.msra.mxu0 0.0
  %929 = vmatprep.subr.mxu0 0.0
  %930 = vmatpush2.msra.mxu0 0.0
  %931 = vmatprep.subr.mxu0 0.0
  %932 = vmatpush2.msra.mxu0 0.0
  %933 = vmatprep.mubr.f32.mxu0 0.0
  %934 = vmatmul.mubr.f32.gmra.mxu0 %v864
  %v935 = vpop.f32.mrf.mxu0
  %v936 = vadd.f32 0.0, %v935
  %v937 = vpop.f32.mrf.mxu0
  %938 = vmatprep.mubr.f32.mxu0 0.0
  %939 = vmatmul.mubr.f32.gmra.mxu0 %v867
  %v940 = vpop.f32.mrf.mxu0
  %v941 = vadd.f32 0.0, %v940
  %v942 = vpop.f32.mrf.mxu0
  %943 = vdwg.mxu0
  %946 = vrot.lane.b32.xlu0 %v528, 8
  %v947 = vpop.permute.xlu0 %946
  %948 = vrot.lane.b32.xlu0 %v533, 8
  %v949 = vpop.permute.xlu0 %948
  %954 = vrot.lane.b32.xlu0 %v732, 16
  %v955 = vpop.permute.xlu0 %954
  %956 = vrot.lane.b32.xlu0 %v737, 16
  %v957 = vpop.permute.xlu0 %956
  %962 = vrot.lane.b32.xlu0 %v936, 24
  %v963 = vpop.permute.xlu0 %962
  %964 = vrot.lane.b32.xlu0 %v941, 24
  %v965 = vpop.permute.xlu0 %964
  %v968 = vsel %vm134, %v324, %v947
  %v969 = vsel %vm134, %v329, %v949
  %v970 = vsel %vm222, %v968, %v955
  %v971 = vsel %vm222, %v969, %v957
  %vm972 = vcmask 195584
  %v973 = vsel %vm972, %v970, %v963
  %v974 = vsel %vm972, %v971, %v965
  %v975 = vlaneseq
  %v976 = vshrl.u32 %v975, 7
  %v977 = vsub.s32 0, %v976
  %v978 = vrot.slane %v41, %v977
  %v980 = vsel %vm46, %v973, 0
  %v983 = vsel %vm46, %v974, 0
  %985 = vmatprep.subr.mxu0 0.0
  %986 = vmatpush1.msra.mxu0 0.0
  %987 = vmatprep.subr.mxu0 0.0
  %988 = vmatpush1.msra.mxu0 0.0
  %989 = vmatprep.subr.mxu0 0.0
  %990 = vmatpush1.msra.mxu0 0.0
  %991 = vmatprep.subr.mxu0 0.0
  %992 = vmatpush1.msra.mxu0 0.0
  %993 = vmatprep.subr.mxu0 0.0
  %994 = vmatpush1.msra.mxu0 0.0
  %995 = vmatprep.subr.mxu0 0.0
  %996 = vmatpush1.msra.mxu0 0.0
  %997 = vmatprep.subr.mxu0 0.0
  %998 = vmatpush1.msra.mxu0 0.0
  %999 = vmatprep.subr.mxu0 0.0
  %1000 = vmatpush1.msra.mxu0 0.0
  %1001 = vmatprep.subr.mxu0 0.0
  %1002 = vmatpush1.msra.mxu0 0.0
  %1003 = vmatprep.subr.mxu0 0.0
  %1004 = vmatpush1.msra.mxu0 0.0
  %1005 = vmatprep.subr.mxu0 0.0
  %1006 = vmatpush1.msra.mxu0 0.0
  %1007 = vmatprep.subr.mxu0 0.0
  %1008 = vmatpush1.msra.mxu0 0.0
  %1009 = vmatprep.subr.mxu0 0.0
  %1010 = vmatpush1.msra.mxu0 %v36
  %1011 = vmatprep.subr.mxu0 0.0
  %1012 = vmatpush1.msra.mxu0 %v35
  %1013 = vmatprep.subr.mxu0 0.0
  %1014 = vmatpush1.msra.mxu0 %v34
  %1015 = vmatprep.subr.mxu0 0.0
  %1016 = vmatpush1.msra.mxu0 %v33
  %1017 = vmatprep.subr.mxu0 0.0
  %1018 = vmatpush2.msra.mxu0 0.0
  %1019 = vmatprep.subr.mxu0 0.0
  %1020 = vmatpush2.msra.mxu0 0.0
  %1021 = vmatprep.subr.mxu0 0.0
  %1022 = vmatpush2.msra.mxu0 0.0
  %1023 = vmatprep.subr.mxu0 0.0
  %1024 = vmatpush2.msra.mxu0 0.0
  %1025 = vmatprep.subr.mxu0 0.0
  %1026 = vmatpush2.msra.mxu0 0.0
  %1027 = vmatprep.subr.mxu0 0.0
  %1028 = vmatpush2.msra.mxu0 0.0
  %1029 = vmatprep.subr.mxu0 0.0
  %1030 = vmatpush2.msra.mxu0 0.0
  %1031 = vmatprep.subr.mxu0 0.0
  %1032 = vmatpush2.msra.mxu0 0.0
  %1033 = vmatprep.subr.mxu0 0.0
  %1034 = vmatpush2.msra.mxu0 0.0
  %1035 = vmatprep.subr.mxu0 0.0
  %1036 = vmatpush2.msra.mxu0 0.0
  %1037 = vmatprep.subr.mxu0 0.0
  %1038 = vmatpush2.msra.mxu0 0.0
  %1039 = vmatprep.subr.mxu0 0.0
  %1040 = vmatpush2.msra.mxu0 0.0
  %1041 = vmatprep.subr.mxu0 0.0
  %1042 = vmatpush2.msra.mxu0 0.0
  %1043 = vmatprep.subr.mxu0 0.0
  %1044 = vmatpush2.msra.mxu0 0.0
  %1045 = vmatprep.subr.mxu0 0.0
  %1046 = vmatpush2.msra.mxu0 0.0
  %1047 = vmatprep.subr.mxu0 0.0
  %1048 = vmatpush2.msra.mxu0 0.0
  %1049 = vmatprep.mubr.f32.mxu0 0.0
  %1050 = vmatmul.mubr.f32.gmra.mxu0 %v980
  %v1051 = vpop.f32.mrf.mxu0
  %v1052 = vadd.f32 %v978, %v1051
  %v1053 = vpop.f32.mrf.mxu0
  %1054 = vmatprep.mubr.f32.mxu0 0.0
  %1055 = vmatmul.mubr.f32.gmra.mxu0 %v983
  %v1056 = vpop.f32.mrf.mxu0
  %v1057 = vadd.f32 %v978, %v1056
  %v1058 = vpop.f32.mrf.mxu0
  %1059 = vdwg.mxu0
  %v1060 = vadd.f32 %v20, %v1052
  %v1061 = vadd.f32 %v21, %v1057
  %v1062 = vsel %vm46, %v1060, 0.0
  %1063 = vadd.xlane.f32.xlu0 %v1062
  %v1064 = vpop.xlane.xlu0 %1063
  %v1065 = vsel %vm46, %v1061, 0.0
  %1066 = vadd.xlane.f32.xlu0 %v1065
  %v1067 = vpop.xlane.xlu0 %1066
  %v1068 = vrcp.pop 32.0
  %v1069 = vmul.f32 %v1064, %v1068
  %v1070 = vmul.f32 %v1067, %v1068
  %v1071 = vmul.f32 %v1060, %v1060
  %v1072 = vmul.f32 %v1061, %v1061
  %v1073 = vsel %vm46, %v1071, 0.0
  %1074 = vadd.xlane.f32.xlu0 %v1073
  %v1075 = vpop.xlane.xlu0 %1074
  %v1076 = vsel %vm46, %v1072, 0.0
  %1077 = vadd.xlane.f32.xlu0 %v1076
  %v1078 = vpop.xlane.xlu0 %1077
  %v1079 = vmul.f32 %v1075, %v1068
  %v1080 = vmul.f32 %v1078, %v1068
  %v1081 = vmul.f32 %v1069, %v1069
  %v1082 = vmul.f32 %v1070, %v1070
  %v1083 = vsub.f32 %v1079, %v1081
  %v1084 = vsub.f32 %v1080, %v1082
  %v1085 = vsub.f32 %v1060, %v1069
  %v1086 = vsub.f32 %v1061, %v1070
  %v1087 = vadd.f32 %v1083, 1e-05
  %v1088 = vadd.f32 %v1084, 1e-05
  %v1089 = vrsqrt.pop %v1087
  %v1090 = vrsqrt.pop %v1088
  %v1091 = vmul.f32 %v1085, %v1089
  %v1092 = vmul.f32 %v1086, %v1090
  %v1093 = vlaneseq
  %v1094 = vshrl.u32 %v1093, 7
  %v1095 = vsub.s32 3, %v1094
  %v1096 = vrot.slane %v41, %v1095
  %v1097 = vmul.f32 %v1091, %v1096
  %v1098 = vmul.f32 %v1092, %v1096
  %v1099 = vlaneseq
  %v1100 = vshrl.u32 %v1099, 7
  %v1101 = vsub.s32 4, %v1100
  %v1102 = vrot.slane %v41, %v1101
  %v1103 = vadd.f32 %v1097, %v1102
  %v1104 = vadd.f32 %v1098, %v1102
  %v1105 = vlaneseq
  %v1106 = vshrl.u32 %v1105, 7
  %v1107 = vsub.s32 1, %v1106
  %v1108 = vrot.slane %v41, %v1107
  %1113 = vrot.lane.b32.xlu0 %v33, 96
  %v1114 = vpop.permute.xlu0 %1113
  %1115 = vrot.lane.b32.xlu0 %v34, 96
  %v1116 = vpop.permute.xlu0 %1115
  %1117 = vrot.lane.b32.xlu0 %v35, 96
  %v1118 = vpop.permute.xlu0 %1117
  %1119 = vrot.lane.b32.xlu0 %v36, 96
  %v1120 = vpop.permute.xlu0 %1119
  %v1126 = vsel %vm46, %v1103, 0
  %v1129 = vsel %vm46, %v1104, 0
  %1131 = vmatprep.subr.mxu0 0.0
  %1132 = vmatpush1.msra.mxu0 0.0
  %1133 = vmatprep.subr.mxu0 0.0
  %1134 = vmatpush1.msra.mxu0 0.0
  %1135 = vmatprep.subr.mxu0 0.0
  %1136 = vmatpush1.msra.mxu0 0.0
  %1137 = vmatprep.subr.mxu0 0.0
  %1138 = vmatpush1.msra.mxu0 0.0
  %1139 = vmatprep.subr.mxu0 0.0
  %1140 = vmatpush1.msra.mxu0 0.0
  %1141 = vmatprep.subr.mxu0 0.0
  %1142 = vmatpush1.msra.mxu0 0.0
  %1143 = vmatprep.subr.mxu0 0.0
  %1144 = vmatpush1.msra.mxu0 0.0
  %1145 = vmatprep.subr.mxu0 0.0
  %1146 = vmatpush1.msra.mxu0 0.0
  %1147 = vmatprep.subr.mxu0 0.0
  %1148 = vmatpush1.msra.mxu0 0.0
  %1149 = vmatprep.subr.mxu0 0.0
  %1150 = vmatpush1.msra.mxu0 0.0
  %1151 = vmatprep.subr.mxu0 0.0
  %1152 = vmatpush1.msra.mxu0 0.0
  %1153 = vmatprep.subr.mxu0 0.0
  %1154 = vmatpush1.msra.mxu0 0.0
  %1155 = vmatprep.subr.mxu0 0.0
  %1156 = vmatpush1.msra.mxu0 %v1120
  %1157 = vmatprep.subr.mxu0 0.0
  %1158 = vmatpush1.msra.mxu0 %v1118
  %1159 = vmatprep.subr.mxu0 0.0
  %1160 = vmatpush1.msra.mxu0 %v1116
  %1161 = vmatprep.subr.mxu0 0.0
  %1162 = vmatpush1.msra.mxu0 %v1114
  %1163 = vmatprep.subr.mxu0 0.0
  %1164 = vmatpush2.msra.mxu0 0.0
  %1165 = vmatprep.subr.mxu0 0.0
  %1166 = vmatpush2.msra.mxu0 0.0
  %1167 = vmatprep.subr.mxu0 0.0
  %1168 = vmatpush2.msra.mxu0 0.0
  %1169 = vmatprep.subr.mxu0 0.0
  %1170 = vmatpush2.msra.mxu0 0.0
  %1171 = vmatprep.subr.mxu0 0.0
  %1172 = vmatpush2.msra.mxu0 0.0
  %1173 = vmatprep.subr.mxu0 0.0
  %1174 = vmatpush2.msra.mxu0 0.0
  %1175 = vmatprep.subr.mxu0 0.0
  %1176 = vmatpush2.msra.mxu0 0.0
  %1177 = vmatprep.subr.mxu0 0.0
  %1178 = vmatpush2.msra.mxu0 0.0
  %1179 = vmatprep.subr.mxu0 0.0
  %1180 = vmatpush2.msra.mxu0 0.0
  %1181 = vmatprep.subr.mxu0 0.0
  %1182 = vmatpush2.msra.mxu0 0.0
  %1183 = vmatprep.subr.mxu0 0.0
  %1184 = vmatpush2.msra.mxu0 0.0
  %1185 = vmatprep.subr.mxu0 0.0
  %1186 = vmatpush2.msra.mxu0 0.0
  %1187 = vmatprep.subr.mxu0 0.0
  %1188 = vmatpush2.msra.mxu0 0.0
  %1189 = vmatprep.subr.mxu0 0.0
  %1190 = vmatpush2.msra.mxu0 0.0
  %1191 = vmatprep.subr.mxu0 0.0
  %1192 = vmatpush2.msra.mxu0 0.0
  %1193 = vmatprep.subr.mxu0 0.0
  %1194 = vmatpush2.msra.mxu0 0.0
  %1195 = vmatprep.mubr.f32.mxu0 0.0
  %1196 = vmatmul.mubr.f32.gmra.mxu0 %v1126
  %v1197 = vpop.f32.mrf.mxu0
  %v1198 = vadd.f32 %v1108, %v1197
  %v1199 = vpop.f32.mrf.mxu0
  %1200 = vmatprep.mubr.f32.mxu0 0.0
  %1201 = vmatmul.mubr.f32.gmra.mxu0 %v1129
  %v1202 = vpop.f32.mrf.mxu0
  %v1203 = vadd.f32 %v1108, %v1202
  %v1204 = vpop.f32.mrf.mxu0
  %1205 = vdwg.mxu0
  %v1206 = vmax.f32 %v1198, 0.0
  %v1207 = vmax.f32 %v1203, 0.0
  %v1208 = vlaneseq
  %v1209 = vshrl.u32 %v1208, 7
  %v1210 = vsub.s32 2, %v1209
  %v1211 = vrot.slane %v41, %v1210
  %1216 = vrot.lane.b32.xlu0 %v33, 32
  %v1217 = vpop.permute.xlu0 %1216
  %1218 = vrot.lane.b32.xlu0 %v34, 32
  %v1219 = vpop.permute.xlu0 %1218
  %1220 = vrot.lane.b32.xlu0 %v35, 32
  %v1221 = vpop.permute.xlu0 %1220
  %1222 = vrot.lane.b32.xlu0 %v36, 32
  %v1223 = vpop.permute.xlu0 %1222
  %1224 = vrot.lane.b32.xlu0 %v37, 32
  %v1225 = vpop.permute.xlu0 %1224
  %1226 = vrot.lane.b32.xlu0 %v38, 32
  %v1227 = vpop.permute.xlu0 %1226
  %1228 = vrot.lane.b32.xlu0 %v39, 32
  %v1229 = vpop.permute.xlu0 %1228
  %1230 = vrot.lane.b32.xlu0 %v40, 32
  %v1231 = vpop.permute.xlu0 %1230
  %vm1240 = vcmask 523264
  %v1242 = vsel %vm1240, %v1206, 0
  %v1245 = vsel %vm1240, %v1207, 0
  %1247 = vmatprep.subr.mxu0 0.0
  %1248 = vmatpush1.msra.mxu0 0.0
  %1249 = vmatprep.subr.mxu0 0.0
  %1250 = vmatpush1.msra.mxu0 0.0
  %1251 = vmatprep.subr.mxu0 0.0
  %1252 = vmatpush1.msra.mxu0 0.0
  %1253 = vmatprep.subr.mxu0 0.0
  %1254 = vmatpush1.msra.mxu0 0.0
  %1255 = vmatprep.subr.mxu0 0.0
  %1256 = vmatpush1.msra.mxu0 0.0
  %1257 = vmatprep.subr.mxu0 0.0
  %1258 = vmatpush1.msra.mxu0 0.0
  %1259 = vmatprep.subr.mxu0 0.0
  %1260 = vmatpush1.msra.mxu0 0.0
  %1261 = vmatprep.subr.mxu0 0.0
  %1262 = vmatpush1.msra.mxu0 0.0
  %1263 = vmatprep.subr.mxu0 0.0
  %1264 = vmatpush1.msra.mxu0 %v1231
  %1265 = vmatprep.subr.mxu0 0.0
  %1266 = vmatpush1.msra.mxu0 %v1229
  %1267 = vmatprep.subr.mxu0 0.0
  %1268 = vmatpush1.msra.mxu0 %v1227
  %1269 = vmatprep.subr.mxu0 0.0
  %1270 = vmatpush1.msra.mxu0 %v1225
  %1271 = vmatprep.subr.mxu0 0.0
  %1272 = vmatpush1.msra.mxu0 %v1223
  %1273 = vmatprep.subr.mxu0 0.0
  %1274 = vmatpush1.msra.mxu0 %v1221
  %1275 = vmatprep.subr.mxu0 0.0
  %1276 = vmatpush1.msra.mxu0 %v1219
  %1277 = vmatprep.subr.mxu0 0.0
  %1278 = vmatpush1.msra.mxu0 %v1217
  %1279 = vmatprep.subr.mxu0 0.0
  %1280 = vmatpush2.msra.mxu0 0.0
  %1281 = vmatprep.subr.mxu0 0.0
  %1282 = vmatpush2.msra.mxu0 0.0
  %1283 = vmatprep.subr.mxu0 0.0
  %1284 = vmatpush2.msra.mxu0 0.0
  %1285 = vmatprep.subr.mxu0 0.0
  %1286 = vmatpush2.msra.mxu0 0.0
  %1287 = vmatprep.subr.mxu0 0.0
  %1288 = vmatpush2.msra.mxu0 0.0
  %1289 = vmatprep.subr.mxu0 0.0
  %1290 = vmatpush2.msra.mxu0 0.0
  %1291 = vmatprep.subr.mxu0 0.0
  %1292 = vmatpush2.msra.mxu0 0.0
  %1293 = vmatprep.subr.mxu0 0.0
  %1294 = vmatpush2.msra.mxu0 0.0
  %1295 = vmatprep.subr.mxu0 0.0
  %1296 = vmatpush2.msra.mxu0 0.0
  %1297 = vmatprep.subr.mxu0 0.0
  %1298 = vmatpush2.msra.mxu0 0.0
  %1299 = vmatprep.subr.mxu0 0.0
  %1300 = vmatpush2.msra.mxu0 0.0
  %1301 = vmatprep.subr.mxu0 0.0
  %1302 = vmatpush2.msra.mxu0 0.0
  %1303 = vmatprep.subr.mxu0 0.0
  %1304 = vmatpush2.msra.mxu0 0.0
  %1305 = vmatprep.subr.mxu0 0.0
  %1306 = vmatpush2.msra.mxu0 0.0
  %1307 = vmatprep.subr.mxu0 0.0
  %1308 = vmatpush2.msra.mxu0 0.0
  %1309 = vmatprep.subr.mxu0 0.0
  %1310 = vmatpush2.msra.mxu0 0.0
  %1311 = vmatprep.mubr.f32.mxu0 0.0
  %1312 = vmatmul.mubr.f32.gmra.mxu0 %v1242
  %v1313 = vpop.f32.mrf.mxu0
  %v1314 = vadd.f32 %v1211, %v1313
  %v1315 = vpop.f32.mrf.mxu0
  %1316 = vmatprep.mubr.f32.mxu0 0.0
  %1317 = vmatmul.mubr.f32.gmra.mxu0 %v1245
  %v1318 = vpop.f32.mrf.mxu0
  %v1319 = vadd.f32 %v1211, %v1318
  %v1320 = vpop.f32.mrf.mxu0
  %1321 = vdwg.mxu0
  %v1322 = vadd.f32 %v1103, %v1314
  %v1323 = vadd.f32 %v1104, %v1319
  %v1324 = vsel %vm46, %v1322, 0.0
  %1325 = vadd.xlane.f32.xlu0 %v1324
  %v1326 = vpop.xlane.xlu0 %1325
  %v1327 = vsel %vm46, %v1323, 0.0
  %1328 = vadd.xlane.f32.xlu0 %v1327
  %v1329 = vpop.xlane.xlu0 %1328
  %v1330 = vmul.f32 %v1326, %v1068
  %v1331 = vmul.f32 %v1329, %v1068
  %v1332 = vmul.f32 %v1322, %v1322
  %v1333 = vmul.f32 %v1323, %v1323
  %v1334 = vsel %vm46, %v1332, 0.0
  %1335 = vadd.xlane.f32.xlu0 %v1334
  %v1336 = vpop.xlane.xlu0 %1335
  %v1337 = vsel %vm46, %v1333, 0.0
  %1338 = vadd.xlane.f32.xlu0 %v1337
  %v1339 = vpop.xlane.xlu0 %1338
  %v1340 = vmul.f32 %v1336, %v1068
  %v1341 = vmul.f32 %v1339, %v1068
  %v1342 = vmul.f32 %v1330, %v1330
  %v1343 = vmul.f32 %v1331, %v1331
  %v1344 = vsub.f32 %v1340, %v1342
  %v1345 = vsub.f32 %v1341, %v1343
  %v1346 = vsub.f32 %v1322, %v1330
  %v1347 = vsub.f32 %v1323, %v1331
  %v1348 = vadd.f32 %v1344, 1e-05
  %v1349 = vadd.f32 %v1345, 1e-05
  %v1350 = vrsqrt.pop %v1348
  %v1351 = vrsqrt.pop %v1349
  %v1352 = vmul.f32 %v1346, %v1350
  %v1353 = vmul.f32 %v1347, %v1351
  %v1354 = vlaneseq
  %v1355 = vshrl.u32 %v1354, 7
  %v1356 = vsub.s32 5, %v1355
  %v1357 = vrot.slane %v41, %v1356
  %v1358 = vmul.f32 %v1352, %v1357
  %v1359 = vmul.f32 %v1353, %v1357
  %v1360 = vlaneseq
  %v1361 = vshrl.u32 %v1360, 7
  %v1362 = vsub.s32 6, %v1361
  %v1363 = vrot.slane %v41, %v1362
  %v1364 = vadd.f32 %v1358, %v1363
  %v1365 = vadd.f32 %v1359, %v1363
  %s1366 = scalar_lea.vmem %s1, 32
  %v1367 = vld [vmem:[%s1366] sm:$0xff]
  %v1368 = vld [vmem:[%s1366 + $0x8] sm:$0xff]
  %v1369 = vld [vmem:[%s1366 + $0x10] sm:$0xff]
  %v1370 = vld [vmem:[%s1366 + $0x18] sm:$0xff]
  %s1371 = scalar_lea.vmem %s2, 64
  %v1372 = vld [vmem:[%s1371] sm:$0xff]
  %v1373 = vld [vmem:[%s1371 + $0x8] sm:$0xff]
  %v1374 = vld [vmem:[%s1371 + $0x10] sm:$0xff]
  %v1375 = vld [vmem:[%s1371 + $0x18] sm:$0xff]
  %v1376 = vld [vmem:[%s1371 + $0x20] sm:$0xff]
  %v1377 = vld [vmem:[%s1371 + $0x28] sm:$0xff]
  %v1378 = vld [vmem:[%s1371 + $0x30] sm:$0xff]
  %v1379 = vld [vmem:[%s1371 + $0x38] sm:$0xff]
  %s1380 = scalar_lea.vmem %s3, 8
  %v1381 = vld [vmem:[%s1380] sm:$0xff]
  %v1382 = vlaneseq
  %v1383 = vshrl.u32 %v1382, 7
  %v1384 = vsub.s32 7, %v1383
  %v1385 = vrot.slane %v1381, %v1384
  %v1387 = vsel %vm46, %v1364, 0
  %v1390 = vsel %vm46, %v1365, 0
  %1392 = vmatprep.subr.mxu0 0.0
  %1393 = vmatpush1.msra.mxu0 0.0
  %1394 = vmatprep.subr.mxu0 0.0
  %1395 = vmatpush1.msra.mxu0 0.0
  %1396 = vmatprep.subr.mxu0 0.0
  %1397 = vmatpush1.msra.mxu0 0.0
  %1398 = vmatprep.subr.mxu0 0.0
  %1399 = vmatpush1.msra.mxu0 0.0
  %1400 = vmatprep.subr.mxu0 0.0
  %1401 = vmatpush1.msra.mxu0 0.0
  %1402 = vmatprep.subr.mxu0 0.0
  %1403 = vmatpush1.msra.mxu0 0.0
  %1404 = vmatprep.subr.mxu0 0.0
  %1405 = vmatpush1.msra.mxu0 0.0
  %1406 = vmatprep.subr.mxu0 0.0
  %1407 = vmatpush1.msra.mxu0 0.0
  %1408 = vmatprep.subr.mxu0 0.0
  %1409 = vmatpush1.msra.mxu0 0.0
  %1410 = vmatprep.subr.mxu0 0.0
  %1411 = vmatpush1.msra.mxu0 0.0
  %1412 = vmatprep.subr.mxu0 0.0
  %1413 = vmatpush1.msra.mxu0 0.0
  %1414 = vmatprep.subr.mxu0 0.0
  %1415 = vmatpush1.msra.mxu0 0.0
  %1416 = vmatprep.subr.mxu0 0.0
  %1417 = vmatpush1.msra.mxu0 %v1370
  %1418 = vmatprep.subr.mxu0 0.0
  %1419 = vmatpush1.msra.mxu0 %v1369
  %1420 = vmatprep.subr.mxu0 0.0
  %1421 = vmatpush1.msra.mxu0 %v1368
  %1422 = vmatprep.subr.mxu0 0.0
  %1423 = vmatpush1.msra.mxu0 %v1367
  %1424 = vmatprep.subr.mxu0 0.0
  %1425 = vmatpush2.msra.mxu0 0.0
  %1426 = vmatprep.subr.mxu0 0.0
  %1427 = vmatpush2.msra.mxu0 0.0
  %1428 = vmatprep.subr.mxu0 0.0
  %1429 = vmatpush2.msra.mxu0 0.0
  %1430 = vmatprep.subr.mxu0 0.0
  %1431 = vmatpush2.msra.mxu0 0.0
  %1432 = vmatprep.subr.mxu0 0.0
  %1433 = vmatpush2.msra.mxu0 0.0
  %1434 = vmatprep.subr.mxu0 0.0
  %1435 = vmatpush2.msra.mxu0 0.0
  %1436 = vmatprep.subr.mxu0 0.0
  %1437 = vmatpush2.msra.mxu0 0.0
  %1438 = vmatprep.subr.mxu0 0.0
  %1439 = vmatpush2.msra.mxu0 0.0
  %1440 = vmatprep.subr.mxu0 0.0
  %1441 = vmatpush2.msra.mxu0 0.0
  %1442 = vmatprep.subr.mxu0 0.0
  %1443 = vmatpush2.msra.mxu0 0.0
  %1444 = vmatprep.subr.mxu0 0.0
  %1445 = vmatpush2.msra.mxu0 0.0
  %1446 = vmatprep.subr.mxu0 0.0
  %1447 = vmatpush2.msra.mxu0 0.0
  %1448 = vmatprep.subr.mxu0 0.0
  %1449 = vmatpush2.msra.mxu0 0.0
  %1450 = vmatprep.subr.mxu0 0.0
  %1451 = vmatpush2.msra.mxu0 0.0
  %1452 = vmatprep.subr.mxu0 0.0
  %1453 = vmatpush2.msra.mxu0 0.0
  %1454 = vmatprep.subr.mxu0 0.0
  %1455 = vmatpush2.msra.mxu0 0.0
  %1456 = vmatprep.mubr.f32.mxu0 0.0
  %1457 = vmatmul.mubr.f32.gmra.mxu0 %v1387
  %v1458 = vpop.f32.mrf.mxu0
  %v1459 = vadd.f32 %v1385, %v1458
  %v1460 = vpop.f32.mrf.mxu0
  %1461 = vmatprep.mubr.f32.mxu0 0.0
  %1462 = vmatmul.mubr.f32.gmra.mxu0 %v1390
  %v1463 = vpop.f32.mrf.mxu0
  %v1464 = vadd.f32 %v1385, %v1463
  %v1465 = vpop.f32.mrf.mxu0
  %1466 = vdwg.mxu0
  %1469 = vrot.lane.b32.xlu0 %v1459, 96
  %v1470 = vpop.permute.xlu0 %1469
  %1471 = vrot.lane.b32.xlu0 %v1464, 96
  %v1472 = vpop.permute.xlu0 %1471
  %v1473 = vsel %vm134, %v1459, 0
  %v1475 = vsel %vm134, %v1464, 0
  %v1477 = vsel %vm134, %v1470, 0
  %v1479 = vsel %vm134, %v1472, 0
  %1481 = vmatprep.subr.mxu0 0.0
  %1482 = vmatpush1.xpose.msra.mxu0 0.0
  %1483 = vmatprep.subr.mxu0 0.0
  %1484 = vmatpush1.xpose.msra.mxu0 0.0
  %1485 = vmatprep.subr.mxu0 0.0
  %1486 = vmatpush1.xpose.msra.mxu0 0.0
  %1487 = vmatprep.subr.mxu0 0.0
  %1488 = vmatpush1.xpose.msra.mxu0 0.0
  %1489 = vmatprep.subr.mxu0 0.0
  %1490 = vmatpush1.xpose.msra.mxu0 0.0
  %1491 = vmatprep.subr.mxu0 0.0
  %1492 = vmatpush1.xpose.msra.mxu0 0.0
  %1493 = vmatprep.subr.mxu0 0.0
  %1494 = vmatpush1.xpose.msra.mxu0 0.0
  %1495 = vmatprep.subr.mxu0 0.0
  %1496 = vmatpush1.xpose.msra.mxu0 0.0
  %1497 = vmatprep.subr.mxu0 0.0
  %1498 = vmatpush1.xpose.msra.mxu0 0.0
  %1499 = vmatprep.subr.mxu0 0.0
  %1500 = vmatpush1.xpose.msra.mxu0 0.0
  %1501 = vmatprep.subr.mxu0 0.0
  %1502 = vmatpush1.xpose.msra.mxu0 0.0
  %1503 = vmatprep.subr.mxu0 0.0
  %1504 = vmatpush1.xpose.msra.mxu0 0.0
  %1505 = vmatprep.subr.mxu0 0.0
  %1506 = vmatpush1.xpose.msra.mxu0 0.0
  %1507 = vmatprep.subr.mxu0 0.0
  %1508 = vmatpush1.xpose.msra.mxu0 0.0
  %1509 = vmatprep.subr.mxu0 0.0
  %1510 = vmatpush1.xpose.msra.mxu0 %v1479
  %1511 = vmatprep.subr.mxu0 0.0
  %1512 = vmatpush1.xpose.msra.mxu0 %v1477
  %1513 = vmatprep.subr.mxu0 0.0
  %1514 = vmatpush2.xpose.msra.mxu0 0.0
  %1515 = vmatprep.subr.mxu0 0.0
  %1516 = vmatpush2.xpose.msra.mxu0 0.0
  %1517 = vmatprep.subr.mxu0 0.0
  %1518 = vmatpush2.xpose.msra.mxu0 0.0
  %1519 = vmatprep.subr.mxu0 0.0
  %1520 = vmatpush2.xpose.msra.mxu0 0.0
  %1521 = vmatprep.subr.mxu0 0.0
  %1522 = vmatpush2.xpose.msra.mxu0 0.0
  %1523 = vmatprep.subr.mxu0 0.0
  %1524 = vmatpush2.xpose.msra.mxu0 0.0
  %1525 = vmatprep.subr.mxu0 0.0
  %1526 = vmatpush2.xpose.msra.mxu0 0.0
  %1527 = vmatprep.subr.mxu0 0.0
  %1528 = vmatpush2.xpose.msra.mxu0 0.0
  %1529 = vmatprep.subr.mxu0 0.0
  %1530 = vmatpush2.xpose.msra.mxu0 0.0
  %1531 = vmatprep.subr.mxu0 0.0
  %1532 = vmatpush2.xpose.msra.mxu0 0.0
  %1533 = vmatprep.subr.mxu0 0.0
  %1534 = vmatpush2.xpose.msra.mxu0 0.0
  %1535 = vmatprep.subr.mxu0 0.0
  %1536 = vmatpush2.xpose.msra.mxu0 0.0
  %1537 = vmatprep.subr.mxu0 0.0
  %1538 = vmatpush2.xpose.msra.mxu0 0.0
  %1539 = vmatprep.subr.mxu0 0.0
  %1540 = vmatpush2.xpose.msra.mxu0 0.0
  %1541 = vmatprep.subr.mxu0 0.0
  %1542 = vmatpush2.xpose.msra.mxu0 0.0
  %1543 = vmatprep.subr.mxu0 0.0
  %1544 = vmatpush2.xpose.msra.mxu0 0.0
  %1545 = vmatprep.mubr.f32.mxu0 0.0
  %1546 = vmatmul.mubr.f32.gmra.mxu0 %v1473
  %v1547 = vpop.f32.mrf.mxu0
  %v1548 = vadd.f32 0.0, %v1547
  %v1549 = vpop.f32.mrf.mxu0
  %1550 = vmatprep.mubr.f32.mxu0 0.0
  %1551 = vmatmul.mubr.f32.gmra.mxu0 %v1475
  %v1552 = vpop.f32.mrf.mxu0
  %v1553 = vadd.f32 0.0, %v1552
  %v1554 = vpop.f32.mrf.mxu0
  %1555 = vdwg.mxu0
  %v1556 = vmul.f32 %v1548, 0.35355338
  %v1557 = vmul.f32 %v1553, 0.35355338
  %v1558 = vadd.f32 %v1556, %v27
  %v1559 = vadd.f32 %v1557, %v28
  %v1560 = vsel %vm222, %v1558, -inf
  %1561 = vmax.xlane.f32.xlu0 %v1560
  %v1562 = vpop.xlane.xlu0 %1561
  %v1563 = vsel %vm222, %v1559, -inf
  %1564 = vmax.xlane.f32.xlu0 %v1563
  %v1565 = vpop.xlane.xlu0 %1564
  %v1566 = vsub.f32 %v1558, %v1562
  %v1567 = vsub.f32 %v1559, %v1565
  %v1568 = vmul.f32 %v1566, 1.442695
  %v1569 = vpow.pop %v1568
  %v1570 = vmul.f32 %v1567, 1.442695
  %v1571 = vpow.pop %v1570
  %v1572 = vsel %vm222, %v1569, 0.0
  %1573 = vadd.xlane.f32.xlu0 %v1572
  %v1574 = vpop.xlane.xlu0 %1573
  %v1575 = vsel %vm222, %v1571, 0.0
  %1576 = vadd.xlane.f32.xlu0 %v1575
  %v1577 = vpop.xlane.xlu0 %1576
  %v1578 = vrcp.pop %v1574
  %v1579 = vrcp.pop %v1577
  %v1580 = vmul.f32 %v1569, %v1578
  %v1581 = vmul.f32 %v1571, %v1579
  %1582 = vrot.lane.b32.xlu0 %v1459, 64
  %v1583 = vpop.permute.xlu0 %1582
  %1584 = vrot.lane.b32.xlu0 %v1464, 64
  %v1585 = vpop.permute.xlu0 %1584
  %v1589 = vsel %vm222, %v1580, 0
  %v1592 = vsel %vm222, %v1581, 0
  %1594 = vmatprep.subr.mxu0 0.0
  %1595 = vmatpush1.msra.mxu0 0.0
  %1596 = vmatprep.subr.mxu0 0.0
  %1597 = vmatpush1.msra.mxu0 0.0
  %1598 = vmatprep.subr.mxu0 0.0
  %1599 = vmatpush1.msra.mxu0 0.0
  %1600 = vmatprep.subr.mxu0 0.0
  %1601 = vmatpush1.msra.mxu0 0.0
  %1602 = vmatprep.subr.mxu0 0.0
  %1603 = vmatpush1.msra.mxu0 0.0
  %1604 = vmatprep.subr.mxu0 0.0
  %1605 = vmatpush1.msra.mxu0 0.0
  %1606 = vmatprep.subr.mxu0 0.0
  %1607 = vmatpush1.msra.mxu0 0.0
  %1608 = vmatprep.subr.mxu0 0.0
  %1609 = vmatpush1.msra.mxu0 0.0
  %1610 = vmatprep.subr.mxu0 0.0
  %1611 = vmatpush1.msra.mxu0 0.0
  %1612 = vmatprep.subr.mxu0 0.0
  %1613 = vmatpush1.msra.mxu0 0.0
  %1614 = vmatprep.subr.mxu0 0.0
  %1615 = vmatpush1.msra.mxu0 0.0
  %1616 = vmatprep.subr.mxu0 0.0
  %1617 = vmatpush1.msra.mxu0 0.0
  %1618 = vmatprep.subr.mxu0 0.0
  %1619 = vmatpush1.msra.mxu0 0.0
  %1620 = vmatprep.subr.mxu0 0.0
  %1621 = vmatpush1.msra.mxu0 0.0
  %1622 = vmatprep.subr.mxu0 0.0
  %1623 = vmatpush1.msra.mxu0 %v1585
  %1624 = vmatprep.subr.mxu0 0.0
  %1625 = vmatpush1.msra.mxu0 %v1583
  %1626 = vmatprep.subr.mxu0 0.0
  %1627 = vmatpush2.msra.mxu0 0.0
  %1628 = vmatprep.subr.mxu0 0.0
  %1629 = vmatpush2.msra.mxu0 0.0
  %1630 = vmatprep.subr.mxu0 0.0
  %1631 = vmatpush2.msra.mxu0 0.0
  %1632 = vmatprep.subr.mxu0 0.0
  %1633 = vmatpush2.msra.mxu0 0.0
  %1634 = vmatprep.subr.mxu0 0.0
  %1635 = vmatpush2.msra.mxu0 0.0
  %1636 = vmatprep.subr.mxu0 0.0
  %1637 = vmatpush2.msra.mxu0 0.0
  %1638 = vmatprep.subr.mxu0 0.0
  %1639 = vmatpush2.msra.mxu0 0.0
  %1640 = vmatprep.subr.mxu0 0.0
  %1641 = vmatpush2.msra.mxu0 0.0
  %1642 = vmatprep.subr.mxu0 0.0
  %1643 = vmatpush2.msra.mxu0 0.0
  %1644 = vmatprep.subr.mxu0 0.0
  %1645 = vmatpush2.msra.mxu0 0.0
  %1646 = vmatprep.subr.mxu0 0.0
  %1647 = vmatpush2.msra.mxu0 0.0
  %1648 = vmatprep.subr.mxu0 0.0
  %1649 = vmatpush2.msra.mxu0 0.0
  %1650 = vmatprep.subr.mxu0 0.0
  %1651 = vmatpush2.msra.mxu0 0.0
  %1652 = vmatprep.subr.mxu0 0.0
  %1653 = vmatpush2.msra.mxu0 0.0
  %1654 = vmatprep.subr.mxu0 0.0
  %1655 = vmatpush2.msra.mxu0 0.0
  %1656 = vmatprep.subr.mxu0 0.0
  %1657 = vmatpush2.msra.mxu0 0.0
  %1658 = vmatprep.mubr.f32.mxu0 0.0
  %1659 = vmatmul.mubr.f32.gmra.mxu0 %v1589
  %v1660 = vpop.f32.mrf.mxu0
  %v1661 = vadd.f32 0.0, %v1660
  %v1662 = vpop.f32.mrf.mxu0
  %1663 = vmatprep.mubr.f32.mxu0 0.0
  %1664 = vmatmul.mubr.f32.gmra.mxu0 %v1592
  %v1665 = vpop.f32.mrf.mxu0
  %v1666 = vadd.f32 0.0, %v1665
  %v1667 = vpop.f32.mrf.mxu0
  %1668 = vdwg.mxu0
  %1669 = vrot.lane.b32.xlu0 %v1459, 120
  %v1670 = vpop.permute.xlu0 %1669
  %1671 = vrot.lane.b32.xlu0 %v1464, 120
  %v1672 = vpop.permute.xlu0 %1671
  %1673 = vrot.lane.b32.xlu0 %v1459, 88
  %v1674 = vpop.permute.xlu0 %1673
  %1675 = vrot.lane.b32.xlu0 %v1464, 88
  %v1676 = vpop.permute.xlu0 %1675
  %v1677 = vsel %vm134, %v1670, 0
  %v1679 = vsel %vm134, %v1672, 0
  %v1681 = vsel %vm134, %v1674, 0
  %v1683 = vsel %vm134, %v1676, 0
  %1685 = vmatprep.subr.mxu0 0.0
  %1686 = vmatpush1.xpose.msra.mxu0 0.0
  %1687 = vmatprep.subr.mxu0 0.0
  %1688 = vmatpush1.xpose.msra.mxu0 0.0
  %1689 = vmatprep.subr.mxu0 0.0
  %1690 = vmatpush1.xpose.msra.mxu0 0.0
  %1691 = vmatprep.subr.mxu0 0.0
  %1692 = vmatpush1.xpose.msra.mxu0 0.0
  %1693 = vmatprep.subr.mxu0 0.0
  %1694 = vmatpush1.xpose.msra.mxu0 0.0
  %1695 = vmatprep.subr.mxu0 0.0
  %1696 = vmatpush1.xpose.msra.mxu0 0.0
  %1697 = vmatprep.subr.mxu0 0.0
  %1698 = vmatpush1.xpose.msra.mxu0 0.0
  %1699 = vmatprep.subr.mxu0 0.0
  %1700 = vmatpush1.xpose.msra.mxu0 0.0
  %1701 = vmatprep.subr.mxu0 0.0
  %1702 = vmatpush1.xpose.msra.mxu0 0.0
  %1703 = vmatprep.subr.mxu0 0.0
  %1704 = vmatpush1.xpose.msra.mxu0 0.0
  %1705 = vmatprep.subr.mxu0 0.0
  %1706 = vmatpush1.xpose.msra.mxu0 0.0
  %1707 = vmatprep.subr.mxu0 0.0
  %1708 = vmatpush1.xpose.msra.mxu0 0.0
  %1709 = vmatprep.subr.mxu0 0.0
  %1710 = vmatpush1.xpose.msra.mxu0 0.0
  %1711 = vmatprep.subr.mxu0 0.0
  %1712 = vmatpush1.xpose.msra.mxu0 0.0
  %1713 = vmatprep.subr.mxu0 0.0
  %1714 = vmatpush1.xpose.msra.mxu0 %v1683
  %1715 = vmatprep.subr.mxu0 0.0
  %1716 = vmatpush1.xpose.msra.mxu0 %v1681
  %1717 = vmatprep.subr.mxu0 0.0
  %1718 = vmatpush2.xpose.msra.mxu0 0.0
  %1719 = vmatprep.subr.mxu0 0.0
  %1720 = vmatpush2.xpose.msra.mxu0 0.0
  %1721 = vmatprep.subr.mxu0 0.0
  %1722 = vmatpush2.xpose.msra.mxu0 0.0
  %1723 = vmatprep.subr.mxu0 0.0
  %1724 = vmatpush2.xpose.msra.mxu0 0.0
  %1725 = vmatprep.subr.mxu0 0.0
  %1726 = vmatpush2.xpose.msra.mxu0 0.0
  %1727 = vmatprep.subr.mxu0 0.0
  %1728 = vmatpush2.xpose.msra.mxu0 0.0
  %1729 = vmatprep.subr.mxu0 0.0
  %1730 = vmatpush2.xpose.msra.mxu0 0.0
  %1731 = vmatprep.subr.mxu0 0.0
  %1732 = vmatpush2.xpose.msra.mxu0 0.0
  %1733 = vmatprep.subr.mxu0 0.0
  %1734 = vmatpush2.xpose.msra.mxu0 0.0
  %1735 = vmatprep.subr.mxu0 0.0
  %1736 = vmatpush2.xpose.msra.mxu0 0.0
  %1737 = vmatprep.subr.mxu0 0.0
  %1738 = vmatpush2.xpose.msra.mxu0 0.0
  %1739 = vmatprep.subr.mxu0 0.0
  %1740 = vmatpush2.xpose.msra.mxu0 0.0
  %1741 = vmatprep.subr.mxu0 0.0
  %1742 = vmatpush2.xpose.msra.mxu0 0.0
  %1743 = vmatprep.subr.mxu0 0.0
  %1744 = vmatpush2.xpose.msra.mxu0 0.0
  %1745 = vmatprep.subr.mxu0 0.0
  %1746 = vmatpush2.xpose.msra.mxu0 0.0
  %1747 = vmatprep.subr.mxu0 0.0
  %1748 = vmatpush2.xpose.msra.mxu0 0.0
  %1749 = vmatprep.mubr.f32.mxu0 0.0
  %1750 = vmatmul.mubr.f32.gmra.mxu0 %v1677
  %v1751 = vpop.f32.mrf.mxu0
  %v1752 = vadd.f32 0.0, %v1751
  %v1753 = vpop.f32.mrf.mxu0
  %1754 = vmatprep.mubr.f32.mxu0 0.0
  %1755 = vmatmul.mubr.f32.gmra.mxu0 %v1679
  %v1756 = vpop.f32.mrf.mxu0
  %v1757 = vadd.f32 0.0, %v1756
  %v1758 = vpop.f32.mrf.mxu0
  %1759 = vdwg.mxu0
  %v1760 = vmul.f32 %v1752, 0.35355338
  %v1761 = vmul.f32 %v1757, 0.35355338
  %v1762 = vadd.f32 %v1760, %v27
  %v1763 = vadd.f32 %v1761, %v28
  %v1764 = vsel %vm222, %v1762, -inf
  %1765 = vmax.xlane.f32.xlu0 %v1764
  %v1766 = vpop.xlane.xlu0 %1765
  %v1767 = vsel %vm222, %v1763, -inf
  %1768 = vmax.xlane.f32.xlu0 %v1767
  %v1769 = vpop.xlane.xlu0 %1768
  %v1770 = vsub.f32 %v1762, %v1766
  %v1771 = vsub.f32 %v1763, %v1769
  %v1772 = vmul.f32 %v1770, 1.442695
  %v1773 = vpow.pop %v1772
  %v1774 = vmul.f32 %v1771, 1.442695
  %v1775 = vpow.pop %v1774
  %v1776 = vsel %vm222, %v1773, 0.0
  %1777 = vadd.xlane.f32.xlu0 %v1776
  %v1778 = vpop.xlane.xlu0 %1777
  %v1779 = vsel %vm222, %v1775, 0.0
  %1780 = vadd.xlane.f32.xlu0 %v1779
  %v1781 = vpop.xlane.xlu0 %1780
  %v1782 = vrcp.pop %v1778
  %v1783 = vrcp.pop %v1781
  %v1784 = vmul.f32 %v1773, %v1782
  %v1785 = vmul.f32 %v1775, %v1783
  %1786 = vrot.lane.b32.xlu0 %v1459, 56
  %v1787 = vpop.permute.xlu0 %1786
  %1788 = vrot.lane.b32.xlu0 %v1464, 56
  %v1789 = vpop.permute.xlu0 %1788
  %v1793 = vsel %vm222, %v1784, 0
  %v1796 = vsel %vm222, %v1785, 0
  %1798 = vmatprep.subr.mxu0 0.0
  %1799 = vmatpush1.msra.mxu0 0.0
  %1800 = vmatprep.subr.mxu0 0.0
  %1801 = vmatpush1.msra.mxu0 0.0
  %1802 = vmatprep.subr.mxu0 0.0
  %1803 = vmatpush1.msra.mxu0 0.0
  %1804 = vmatprep.subr.mxu0 0.0
  %1805 = vmatpush1.msra.mxu0 0.0
  %1806 = vmatprep.subr.mxu0 0.0
  %1807 = vmatpush1.msra.mxu0 0.0
  %1808 = vmatprep.subr.mxu0 0.0
  %1809 = vmatpush1.msra.mxu0 0.0
  %1810 = vmatprep.subr.mxu0 0.0
  %1811 = vmatpush1.msra.mxu0 0.0
  %1812 = vmatprep.subr.mxu0 0.0
  %1813 = vmatpush1.msra.mxu0 0.0
  %1814 = vmatprep.subr.mxu0 0.0
  %1815 = vmatpush1.msra.mxu0 0.0
  %1816 = vmatprep.subr.mxu0 0.0
  %1817 = vmatpush1.msra.mxu0 0.0
  %1818 = vmatprep.subr.mxu0 0.0
  %1819 = vmatpush1.msra.mxu0 0.0
  %1820 = vmatprep.subr.mxu0 0.0
  %1821 = vmatpush1.msra.mxu0 0.0
  %1822 = vmatprep.subr.mxu0 0.0
  %1823 = vmatpush1.msra.mxu0 0.0
  %1824 = vmatprep.subr.mxu0 0.0
  %1825 = vmatpush1.msra.mxu0 0.0
  %1826 = vmatprep.subr.mxu0 0.0
  %1827 = vmatpush1.msra.mxu0 %v1789
  %1828 = vmatprep.subr.mxu0 0.0
  %1829 = vmatpush1.msra.mxu0 %v1787
  %1830 = vmatprep.subr.mxu0 0.0
  %1831 = vmatpush2.msra.mxu0 0.0
  %1832 = vmatprep.subr.mxu0 0.0
  %1833 = vmatpush2.msra.mxu0 0.0
  %1834 = vmatprep.subr.mxu0 0.0
  %1835 = vmatpush2.msra.mxu0 0.0
  %1836 = vmatprep.subr.mxu0 0.0
  %1837 = vmatpush2.msra.mxu0 0.0
  %1838 = vmatprep.subr.mxu0 0.0
  %1839 = vmatpush2.msra.mxu0 0.0
  %1840 = vmatprep.subr.mxu0 0.0
  %1841 = vmatpush2.msra.mxu0 0.0
  %1842 = vmatprep.subr.mxu0 0.0
  %1843 = vmatpush2.msra.mxu0 0.0
  %1844 = vmatprep.subr.mxu0 0.0
  %1845 = vmatpush2.msra.mxu0 0.0
  %1846 = vmatprep.subr.mxu0 0.0
  %1847 = vmatpush2.msra.mxu0 0.0
  %1848 = vmatprep.subr.mxu0 0.0
  %1849 = vmatpush2.msra.mxu0 0.0
  %1850 = vmatprep.subr.mxu0 0.0
  %1851 = vmatpush2.msra.mxu0 0.0
  %1852 = vmatprep.subr.mxu0 0.0
  %1853 = vmatpush2.msra.mxu0 0.0
  %1854 = vmatprep.subr.mxu0 0.0
  %1855 = vmatpush2.msra.mxu0 0.0
  %1856 = vmatprep.subr.mxu0 0.0
  %1857 = vmatpush2.msra.mxu0 0.0
  %1858 = vmatprep.subr.mxu0 0.0
  %1859 = vmatpush2.msra.mxu0 0.0
  %1860 = vmatprep.subr.mxu0 0.0
  %1861 = vmatpush2.msra.mxu0 0.0
  %1862 = vmatprep.mubr.f32.mxu0 0.0
  %1863 = vmatmul.mubr.f32.gmra.mxu0 %v1793
  %v1864 = vpop.f32.mrf.mxu0
  %v1865 = vadd.f32 0.0, %v1864
  %v1866 = vpop.f32.mrf.mxu0
  %1867 = vmatprep.mubr.f32.mxu0 0.0
  %1868 = vmatmul.mubr.f32.gmra.mxu0 %v1796
  %v1869 = vpop.f32.mrf.mxu0
  %v1870 = vadd.f32 0.0, %v1869
  %v1871 = vpop.f32.mrf.mxu0
  %1872 = vdwg.mxu0
  %1873 = vrot.lane.b32.xlu0 %v1459, 112
  %v1874 = vpop.permute.xlu0 %1873
  %1875 = vrot.lane.b32.xlu0 %v1464, 112
  %v1876 = vpop.permute.xlu0 %1875
  %1877 = vrot.lane.b32.xlu0 %v1459, 80
  %v1878 = vpop.permute.xlu0 %1877
  %1879 = vrot.lane.b32.xlu0 %v1464, 80
  %v1880 = vpop.permute.xlu0 %1879
  %v1881 = vsel %vm134, %v1874, 0
  %v1883 = vsel %vm134, %v1876, 0
  %v1885 = vsel %vm134, %v1878, 0
  %v1887 = vsel %vm134, %v1880, 0
  %1889 = vmatprep.subr.mxu0 0.0
  %1890 = vmatpush1.xpose.msra.mxu0 0.0
  %1891 = vmatprep.subr.mxu0 0.0
  %1892 = vmatpush1.xpose.msra.mxu0 0.0
  %1893 = vmatprep.subr.mxu0 0.0
  %1894 = vmatpush1.xpose.msra.mxu0 0.0
  %1895 = vmatprep.subr.mxu0 0.0
  %1896 = vmatpush1.xpose.msra.mxu0 0.0
  %1897 = vmatprep.subr.mxu0 0.0
  %1898 = vmatpush1.xpose.msra.mxu0 0.0
  %1899 = vmatprep.subr.mxu0 0.0
  %1900 = vmatpush1.xpose.msra.mxu0 0.0
  %1901 = vmatprep.subr.mxu0 0.0
  %1902 = vmatpush1.xpose.msra.mxu0 0.0
  %1903 = vmatprep.subr.mxu0 0.0
  %1904 = vmatpush1.xpose.msra.mxu0 0.0
  %1905 = vmatprep.subr.mxu0 0.0
  %1906 = vmatpush1.xpose.msra.mxu0 0.0
  %1907 = vmatprep.subr.mxu0 0.0
  %1908 = vmatpush1.xpose.msra.mxu0 0.0
  %1909 = vmatprep.subr.mxu0 0.0
  %1910 = vmatpush1.xpose.msra.mxu0 0.0
  %1911 = vmatprep.subr.mxu0 0.0
  %1912 = vmatpush1.xpose.msra.mxu0 0.0
  %1913 = vmatprep.subr.mxu0 0.0
  %1914 = vmatpush1.xpose.msra.mxu0 0.0
  %1915 = vmatprep.subr.mxu0 0.0
  %1916 = vmatpush1.xpose.msra.mxu0 0.0
  %1917 = vmatprep.subr.mxu0 0.0
  %1918 = vmatpush1.xpose.msra.mxu0 %v1887
  %1919 = vmatprep.subr.mxu0 0.0
  %1920 = vmatpush1.xpose.msra.mxu0 %v1885
  %1921 = vmatprep.subr.mxu0 0.0
  %1922 = vmatpush2.xpose.msra.mxu0 0.0
  %1923 = vmatprep.subr.mxu0 0.0
  %1924 = vmatpush2.xpose.msra.mxu0 0.0
  %1925 = vmatprep.subr.mxu0 0.0
  %1926 = vmatpush2.xpose.msra.mxu0 0.0
  %1927 = vmatprep.subr.mxu0 0.0
  %1928 = vmatpush2.xpose.msra.mxu0 0.0
  %1929 = vmatprep.subr.mxu0 0.0
  %1930 = vmatpush2.xpose.msra.mxu0 0.0
  %1931 = vmatprep.subr.mxu0 0.0
  %1932 = vmatpush2.xpose.msra.mxu0 0.0
  %1933 = vmatprep.subr.mxu0 0.0
  %1934 = vmatpush2.xpose.msra.mxu0 0.0
  %1935 = vmatprep.subr.mxu0 0.0
  %1936 = vmatpush2.xpose.msra.mxu0 0.0
  %1937 = vmatprep.subr.mxu0 0.0
  %1938 = vmatpush2.xpose.msra.mxu0 0.0
  %1939 = vmatprep.subr.mxu0 0.0
  %1940 = vmatpush2.xpose.msra.mxu0 0.0
  %1941 = vmatprep.subr.mxu0 0.0
  %1942 = vmatpush2.xpose.msra.mxu0 0.0
  %1943 = vmatprep.subr.mxu0 0.0
  %1944 = vmatpush2.xpose.msra.mxu0 0.0
  %1945 = vmatprep.subr.mxu0 0.0
  %1946 = vmatpush2.xpose.msra.mxu0 0.0
  %1947 = vmatprep.subr.mxu0 0.0
  %1948 = vmatpush2.xpose.msra.mxu0 0.0
  %1949 = vmatprep.subr.mxu0 0.0
  %1950 = vmatpush2.xpose.msra.mxu0 0.0
  %1951 = vmatprep.subr.mxu0 0.0
  %1952 = vmatpush2.xpose.msra.mxu0 0.0
  %1953 = vmatprep.mubr.f32.mxu0 0.0
  %1954 = vmatmul.mubr.f32.gmra.mxu0 %v1881
  %v1955 = vpop.f32.mrf.mxu0
  %v1956 = vadd.f32 0.0, %v1955
  %v1957 = vpop.f32.mrf.mxu0
  %1958 = vmatprep.mubr.f32.mxu0 0.0
  %1959 = vmatmul.mubr.f32.gmra.mxu0 %v1883
  %v1960 = vpop.f32.mrf.mxu0
  %v1961 = vadd.f32 0.0, %v1960
  %v1962 = vpop.f32.mrf.mxu0
  %1963 = vdwg.mxu0
  %v1964 = vmul.f32 %v1956, 0.35355338
  %v1965 = vmul.f32 %v1961, 0.35355338
  %v1966 = vadd.f32 %v1964, %v27
  %v1967 = vadd.f32 %v1965, %v28
  %v1968 = vsel %vm222, %v1966, -inf
  %1969 = vmax.xlane.f32.xlu0 %v1968
  %v1970 = vpop.xlane.xlu0 %1969
  %v1971 = vsel %vm222, %v1967, -inf
  %1972 = vmax.xlane.f32.xlu0 %v1971
  %v1973 = vpop.xlane.xlu0 %1972
  %v1974 = vsub.f32 %v1966, %v1970
  %v1975 = vsub.f32 %v1967, %v1973
  %v1976 = vmul.f32 %v1974, 1.442695
  %v1977 = vpow.pop %v1976
  %v1978 = vmul.f32 %v1975, 1.442695
  %v1979 = vpow.pop %v1978
  %v1980 = vsel %vm222, %v1977, 0.0
  %1981 = vadd.xlane.f32.xlu0 %v1980
  %v1982 = vpop.xlane.xlu0 %1981
  %v1983 = vsel %vm222, %v1979, 0.0
  %1984 = vadd.xlane.f32.xlu0 %v1983
  %v1985 = vpop.xlane.xlu0 %1984
  %v1986 = vrcp.pop %v1982
  %v1987 = vrcp.pop %v1985
  %v1988 = vmul.f32 %v1977, %v1986
  %v1989 = vmul.f32 %v1979, %v1987
  %1990 = vrot.lane.b32.xlu0 %v1459, 48
  %v1991 = vpop.permute.xlu0 %1990
  %1992 = vrot.lane.b32.xlu0 %v1464, 48
  %v1993 = vpop.permute.xlu0 %1992
  %v1997 = vsel %vm222, %v1988, 0
  %v2000 = vsel %vm222, %v1989, 0
  %2002 = vmatprep.subr.mxu0 0.0
  %2003 = vmatpush1.msra.mxu0 0.0
  %2004 = vmatprep.subr.mxu0 0.0
  %2005 = vmatpush1.msra.mxu0 0.0
  %2006 = vmatprep.subr.mxu0 0.0
  %2007 = vmatpush1.msra.mxu0 0.0
  %2008 = vmatprep.subr.mxu0 0.0
  %2009 = vmatpush1.msra.mxu0 0.0
  %2010 = vmatprep.subr.mxu0 0.0
  %2011 = vmatpush1.msra.mxu0 0.0
  %2012 = vmatprep.subr.mxu0 0.0
  %2013 = vmatpush1.msra.mxu0 0.0
  %2014 = vmatprep.subr.mxu0 0.0
  %2015 = vmatpush1.msra.mxu0 0.0
  %2016 = vmatprep.subr.mxu0 0.0
  %2017 = vmatpush1.msra.mxu0 0.0
  %2018 = vmatprep.subr.mxu0 0.0
  %2019 = vmatpush1.msra.mxu0 0.0
  %2020 = vmatprep.subr.mxu0 0.0
  %2021 = vmatpush1.msra.mxu0 0.0
  %2022 = vmatprep.subr.mxu0 0.0
  %2023 = vmatpush1.msra.mxu0 0.0
  %2024 = vmatprep.subr.mxu0 0.0
  %2025 = vmatpush1.msra.mxu0 0.0
  %2026 = vmatprep.subr.mxu0 0.0
  %2027 = vmatpush1.msra.mxu0 0.0
  %2028 = vmatprep.subr.mxu0 0.0
  %2029 = vmatpush1.msra.mxu0 0.0
  %2030 = vmatprep.subr.mxu0 0.0
  %2031 = vmatpush1.msra.mxu0 %v1993
  %2032 = vmatprep.subr.mxu0 0.0
  %2033 = vmatpush1.msra.mxu0 %v1991
  %2034 = vmatprep.subr.mxu0 0.0
  %2035 = vmatpush2.msra.mxu0 0.0
  %2036 = vmatprep.subr.mxu0 0.0
  %2037 = vmatpush2.msra.mxu0 0.0
  %2038 = vmatprep.subr.mxu0 0.0
  %2039 = vmatpush2.msra.mxu0 0.0
  %2040 = vmatprep.subr.mxu0 0.0
  %2041 = vmatpush2.msra.mxu0 0.0
  %2042 = vmatprep.subr.mxu0 0.0
  %2043 = vmatpush2.msra.mxu0 0.0
  %2044 = vmatprep.subr.mxu0 0.0
  %2045 = vmatpush2.msra.mxu0 0.0
  %2046 = vmatprep.subr.mxu0 0.0
  %2047 = vmatpush2.msra.mxu0 0.0
  %2048 = vmatprep.subr.mxu0 0.0
  %2049 = vmatpush2.msra.mxu0 0.0
  %2050 = vmatprep.subr.mxu0 0.0
  %2051 = vmatpush2.msra.mxu0 0.0
  %2052 = vmatprep.subr.mxu0 0.0
  %2053 = vmatpush2.msra.mxu0 0.0
  %2054 = vmatprep.subr.mxu0 0.0
  %2055 = vmatpush2.msra.mxu0 0.0
  %2056 = vmatprep.subr.mxu0 0.0
  %2057 = vmatpush2.msra.mxu0 0.0
  %2058 = vmatprep.subr.mxu0 0.0
  %2059 = vmatpush2.msra.mxu0 0.0
  %2060 = vmatprep.subr.mxu0 0.0
  %2061 = vmatpush2.msra.mxu0 0.0
  %2062 = vmatprep.subr.mxu0 0.0
  %2063 = vmatpush2.msra.mxu0 0.0
  %2064 = vmatprep.subr.mxu0 0.0
  %2065 = vmatpush2.msra.mxu0 0.0
  %2066 = vmatprep.mubr.f32.mxu0 0.0
  %2067 = vmatmul.mubr.f32.gmra.mxu0 %v1997
  %v2068 = vpop.f32.mrf.mxu0
  %v2069 = vadd.f32 0.0, %v2068
  %v2070 = vpop.f32.mrf.mxu0
  %2071 = vmatprep.mubr.f32.mxu0 0.0
  %2072 = vmatmul.mubr.f32.gmra.mxu0 %v2000
  %v2073 = vpop.f32.mrf.mxu0
  %v2074 = vadd.f32 0.0, %v2073
  %v2075 = vpop.f32.mrf.mxu0
  %2076 = vdwg.mxu0
  %2077 = vrot.lane.b32.xlu0 %v1459, 104
  %v2078 = vpop.permute.xlu0 %2077
  %2079 = vrot.lane.b32.xlu0 %v1464, 104
  %v2080 = vpop.permute.xlu0 %2079
  %2081 = vrot.lane.b32.xlu0 %v1459, 72
  %v2082 = vpop.permute.xlu0 %2081
  %2083 = vrot.lane.b32.xlu0 %v1464, 72
  %v2084 = vpop.permute.xlu0 %2083
  %v2085 = vsel %vm134, %v2078, 0
  %v2087 = vsel %vm134, %v2080, 0
  %v2089 = vsel %vm134, %v2082, 0
  %v2091 = vsel %vm134, %v2084, 0
  %2093 = vmatprep.subr.mxu0 0.0
  %2094 = vmatpush1.xpose.msra.mxu0 0.0
  %2095 = vmatprep.subr.mxu0 0.0
  %2096 = vmatpush1.xpose.msra.mxu0 0.0
  %2097 = vmatprep.subr.mxu0 0.0
  %2098 = vmatpush1.xpose.msra.mxu0 0.0
  %2099 = vmatprep.subr.mxu0 0.0
  %2100 = vmatpush1.xpose.msra.mxu0 0.0
  %2101 = vmatprep.subr.mxu0 0.0
  %2102 = vmatpush1.xpose.msra.mxu0 0.0
  %2103 = vmatprep.subr.mxu0 0.0
  %2104 = vmatpush1.xpose.msra.mxu0 0.0
  %2105 = vmatprep.subr.mxu0 0.0
  %2106 = vmatpush1.xpose.msra.mxu0 0.0
  %2107 = vmatprep.subr.mxu0 0.0
  %2108 = vmatpush1.xpose.msra.mxu0 0.0
  %2109 = vmatprep.subr.mxu0 0.0
  %2110 = vmatpush1.xpose.msra.mxu0 0.0
  %2111 = vmatprep.subr.mxu0 0.0
  %2112 = vmatpush1.xpose.msra.mxu0 0.0
  %2113 = vmatprep.subr.mxu0 0.0
  %2114 = vmatpush1.xpose.msra.mxu0 0.0
  %2115 = vmatprep.subr.mxu0 0.0
  %2116 = vmatpush1.xpose.msra.mxu0 0.0
  %2117 = vmatprep.subr.mxu0 0.0
  %2118 = vmatpush1.xpose.msra.mxu0 0.0
  %2119 = vmatprep.subr.mxu0 0.0
  %2120 = vmatpush1.xpose.msra.mxu0 0.0
  %2121 = vmatprep.subr.mxu0 0.0
  %2122 = vmatpush1.xpose.msra.mxu0 %v2091
  %2123 = vmatprep.subr.mxu0 0.0
  %2124 = vmatpush1.xpose.msra.mxu0 %v2089
  %2125 = vmatprep.subr.mxu0 0.0
  %2126 = vmatpush2.xpose.msra.mxu0 0.0
  %2127 = vmatprep.subr.mxu0 0.0
  %2128 = vmatpush2.xpose.msra.mxu0 0.0
  %2129 = vmatprep.subr.mxu0 0.0
  %2130 = vmatpush2.xpose.msra.mxu0 0.0
  %2131 = vmatprep.subr.mxu0 0.0
  %2132 = vmatpush2.xpose.msra.mxu0 0.0
  %2133 = vmatprep.subr.mxu0 0.0
  %2134 = vmatpush2.xpose.msra.mxu0 0.0
  %2135 = vmatprep.subr.mxu0 0.0
  %2136 = vmatpush2.xpose.msra.mxu0 0.0
  %2137 = vmatprep.subr.mxu0 0.0
  %2138 = vmatpush2.xpose.msra.mxu0 0.0
  %2139 = vmatprep.subr.mxu0 0.0
  %2140 = vmatpush2.xpose.msra.mxu0 0.0
  %2141 = vmatprep.subr.mxu0 0.0
  %2142 = vmatpush2.xpose.msra.mxu0 0.0
  %2143 = vmatprep.subr.mxu0 0.0
  %2144 = vmatpush2.xpose.msra.mxu0 0.0
  %2145 = vmatprep.subr.mxu0 0.0
  %2146 = vmatpush2.xpose.msra.mxu0 0.0
  %2147 = vmatprep.subr.mxu0 0.0
  %2148 = vmatpush2.xpose.msra.mxu0 0.0
  %2149 = vmatprep.subr.mxu0 0.0
  %2150 = vmatpush2.xpose.msra.mxu0 0.0
  %2151 = vmatprep.subr.mxu0 0.0
  %2152 = vmatpush2.xpose.msra.mxu0 0.0
  %2153 = vmatprep.subr.mxu0 0.0
  %2154 = vmatpush2.xpose.msra.mxu0 0.0
  %2155 = vmatprep.subr.mxu0 0.0
  %2156 = vmatpush2.xpose.msra.mxu0 0.0
  %2157 = vmatprep.mubr.f32.mxu0 0.0
  %2158 = vmatmul.mubr.f32.gmra.mxu0 %v2085
  %v2159 = vpop.f32.mrf.mxu0
  %v2160 = vadd.f32 0.0, %v2159
  %v2161 = vpop.f32.mrf.mxu0
  %2162 = vmatprep.mubr.f32.mxu0 0.0
  %2163 = vmatmul.mubr.f32.gmra.mxu0 %v2087
  %v2164 = vpop.f32.mrf.mxu0
  %v2165 = vadd.f32 0.0, %v2164
  %v2166 = vpop.f32.mrf.mxu0
  %2167 = vdwg.mxu0
  %v2168 = vmul.f32 %v2160, 0.35355338
  %v2169 = vmul.f32 %v2165, 0.35355338
  %v2170 = vadd.f32 %v2168, %v27
  %v2171 = vadd.f32 %v2169, %v28
  %v2172 = vsel %vm222, %v2170, -inf
  %2173 = vmax.xlane.f32.xlu0 %v2172
  %v2174 = vpop.xlane.xlu0 %2173
  %v2175 = vsel %vm222, %v2171, -inf
  %2176 = vmax.xlane.f32.xlu0 %v2175
  %v2177 = vpop.xlane.xlu0 %2176
  %v2178 = vsub.f32 %v2170, %v2174
  %v2179 = vsub.f32 %v2171, %v2177
  %v2180 = vmul.f32 %v2178, 1.442695
  %v2181 = vpow.pop %v2180
  %v2182 = vmul.f32 %v2179, 1.442695
  %v2183 = vpow.pop %v2182
  %v2184 = vsel %vm222, %v2181, 0.0
  %2185 = vadd.xlane.f32.xlu0 %v2184
  %v2186 = vpop.xlane.xlu0 %2185
  %v2187 = vsel %vm222, %v2183, 0.0
  %2188 = vadd.xlane.f32.xlu0 %v2187
  %v2189 = vpop.xlane.xlu0 %2188
  %v2190 = vrcp.pop %v2186
  %v2191 = vrcp.pop %v2189
  %v2192 = vmul.f32 %v2181, %v2190
  %v2193 = vmul.f32 %v2183, %v2191
  %2194 = vrot.lane.b32.xlu0 %v1459, 40
  %v2195 = vpop.permute.xlu0 %2194
  %2196 = vrot.lane.b32.xlu0 %v1464, 40
  %v2197 = vpop.permute.xlu0 %2196
  %v2201 = vsel %vm222, %v2192, 0
  %v2204 = vsel %vm222, %v2193, 0
  %2206 = vmatprep.subr.mxu0 0.0
  %2207 = vmatpush1.msra.mxu0 0.0
  %2208 = vmatprep.subr.mxu0 0.0
  %2209 = vmatpush1.msra.mxu0 0.0
  %2210 = vmatprep.subr.mxu0 0.0
  %2211 = vmatpush1.msra.mxu0 0.0
  %2212 = vmatprep.subr.mxu0 0.0
  %2213 = vmatpush1.msra.mxu0 0.0
  %2214 = vmatprep.subr.mxu0 0.0
  %2215 = vmatpush1.msra.mxu0 0.0
  %2216 = vmatprep.subr.mxu0 0.0
  %2217 = vmatpush1.msra.mxu0 0.0
  %2218 = vmatprep.subr.mxu0 0.0
  %2219 = vmatpush1.msra.mxu0 0.0
  %2220 = vmatprep.subr.mxu0 0.0
  %2221 = vmatpush1.msra.mxu0 0.0
  %2222 = vmatprep.subr.mxu0 0.0
  %2223 = vmatpush1.msra.mxu0 0.0
  %2224 = vmatprep.subr.mxu0 0.0
  %2225 = vmatpush1.msra.mxu0 0.0
  %2226 = vmatprep.subr.mxu0 0.0
  %2227 = vmatpush1.msra.mxu0 0.0
  %2228 = vmatprep.subr.mxu0 0.0
  %2229 = vmatpush1.msra.mxu0 0.0
  %2230 = vmatprep.subr.mxu0 0.0
  %2231 = vmatpush1.msra.mxu0 0.0
  %2232 = vmatprep.subr.mxu0 0.0
  %2233 = vmatpush1.msra.mxu0 0.0
  %2234 = vmatprep.subr.mxu0 0.0
  %2235 = vmatpush1.msra.mxu0 %v2197
  %2236 = vmatprep.subr.mxu0 0.0
  %2237 = vmatpush1.msra.mxu0 %v2195
  %2238 = vmatprep.subr.mxu0 0.0
  %2239 = vmatpush2.msra.mxu0 0.0
  %2240 = vmatprep.subr.mxu0 0.0
  %2241 = vmatpush2.msra.mxu0 0.0
  %2242 = vmatprep.subr.mxu0 0.0
  %2243 = vmatpush2.msra.mxu0 0.0
  %2244 = vmatprep.subr.mxu0 0.0
  %2245 = vmatpush2.msra.mxu0 0.0
  %2246 = vmatprep.subr.mxu0 0.0
  %2247 = vmatpush2.msra.mxu0 0.0
  %2248 = vmatprep.subr.mxu0 0.0
  %2249 = vmatpush2.msra.mxu0 0.0
  %2250 = vmatprep.subr.mxu0 0.0
  %2251 = vmatpush2.msra.mxu0 0.0
  %2252 = vmatprep.subr.mxu0 0.0
  %2253 = vmatpush2.msra.mxu0 0.0
  %2254 = vmatprep.subr.mxu0 0.0
  %2255 = vmatpush2.msra.mxu0 0.0
  %2256 = vmatprep.subr.mxu0 0.0
  %2257 = vmatpush2.msra.mxu0 0.0
  %2258 = vmatprep.subr.mxu0 0.0
  %2259 = vmatpush2.msra.mxu0 0.0
  %2260 = vmatprep.subr.mxu0 0.0
  %2261 = vmatpush2.msra.mxu0 0.0
  %2262 = vmatprep.subr.mxu0 0.0
  %2263 = vmatpush2.msra.mxu0 0.0
  %2264 = vmatprep.subr.mxu0 0.0
  %2265 = vmatpush2.msra.mxu0 0.0
  %2266 = vmatprep.subr.mxu0 0.0
  %2267 = vmatpush2.msra.mxu0 0.0
  %2268 = vmatprep.subr.mxu0 0.0
  %2269 = vmatpush2.msra.mxu0 0.0
  %2270 = vmatprep.mubr.f32.mxu0 0.0
  %2271 = vmatmul.mubr.f32.gmra.mxu0 %v2201
  %v2272 = vpop.f32.mrf.mxu0
  %v2273 = vadd.f32 0.0, %v2272
  %v2274 = vpop.f32.mrf.mxu0
  %2275 = vmatprep.mubr.f32.mxu0 0.0
  %2276 = vmatmul.mubr.f32.gmra.mxu0 %v2204
  %v2277 = vpop.f32.mrf.mxu0
  %v2278 = vadd.f32 0.0, %v2277
  %v2279 = vpop.f32.mrf.mxu0
  %2280 = vdwg.mxu0
  %2283 = vrot.lane.b32.xlu0 %v1865, 8
  %v2284 = vpop.permute.xlu0 %2283
  %2285 = vrot.lane.b32.xlu0 %v1870, 8
  %v2286 = vpop.permute.xlu0 %2285
  %2291 = vrot.lane.b32.xlu0 %v2069, 16
  %v2292 = vpop.permute.xlu0 %2291
  %2293 = vrot.lane.b32.xlu0 %v2074, 16
  %v2294 = vpop.permute.xlu0 %2293
  %2299 = vrot.lane.b32.xlu0 %v2273, 24
  %v2300 = vpop.permute.xlu0 %2299
  %2301 = vrot.lane.b32.xlu0 %v2278, 24
  %v2302 = vpop.permute.xlu0 %2301
  %v2305 = vsel %vm134, %v1661, %v2284
  %v2306 = vsel %vm134, %v1666, %v2286
  %v2307 = vsel %vm222, %v2305, %v2292
  %v2308 = vsel %vm222, %v2306, %v2294
  %v2309 = vsel %vm972, %v2307, %v2300
  %v2310 = vsel %vm972, %v2308, %v2302
  %v2311 = vlaneseq
  %v2312 = vshrl.u32 %v2311, 7
  %v2313 = vsub.s32 0, %v2312
  %v2314 = vrot.slane %v1381, %v2313
  %v2316 = vsel %vm46, %v2309, 0
  %v2319 = vsel %vm46, %v2310, 0
  %2321 = vmatprep.subr.mxu0 0.0
  %2322 = vmatpush1.msra.mxu0 0.0
  %2323 = vmatprep.subr.mxu0 0.0
  %2324 = vmatpush1.msra.mxu0 0.0
  %2325 = vmatprep.subr.mxu0 0.0
  %2326 = vmatpush1.msra.mxu0 0.0
  %2327 = vmatprep.subr.mxu0 0.0
  %2328 = vmatpush1.msra.mxu0 0.0
  %2329 = vmatprep.subr.mxu0 0.0
  %2330 = vmatpush1.msra.mxu0 0.0
  %2331 = vmatprep.subr.mxu0 0.0
  %2332 = vmatpush1.msra.mxu0 0.0
  %2333 = vmatprep.subr.mxu0 0.0
  %2334 = vmatpush1.msra.mxu0 0.0
  %2335 = vmatprep.subr.mxu0 0.0
  %2336 = vmatpush1.msra.mxu0 0.0
  %2337 = vmatprep.subr.mxu0 0.0
  %2338 = vmatpush1.msra.mxu0 0.0
  %2339 = vmatprep.subr.mxu0 0.0
  %2340 = vmatpush1.msra.mxu0 0.0
  %2341 = vmatprep.subr.mxu0 0.0
  %2342 = vmatpush1.msra.mxu0 0.0
  %2343 = vmatprep.subr.mxu0 0.0
  %2344 = vmatpush1.msra.mxu0 0.0
  %2345 = vmatprep.subr.mxu0 0.0
  %2346 = vmatpush1.msra.mxu0 %v1375
  %2347 = vmatprep.subr.mxu0 0.0
  %2348 = vmatpush1.msra.mxu0 %v1374
  %2349 = vmatprep.subr.mxu0 0.0
  %2350 = vmatpush1.msra.mxu0 %v1373
  %2351 = vmatprep.subr.mxu0 0.0
  %2352 = vmatpush1.msra.mxu0 %v1372
  %2353 = vmatprep.subr.mxu0 0.0
  %2354 = vmatpush2.msra.mxu0 0.0
  %2355 = vmatprep.subr.mxu0 0.0
  %2356 = vmatpush2.msra.mxu0 0.0
  %2357 = vmatprep.subr.mxu0 0.0
  %2358 = vmatpush2.msra.mxu0 0.0
  %2359 = vmatprep.subr.mxu0 0.0
  %2360 = vmatpush2.msra.mxu0 0.0
  %2361 = vmatprep.subr.mxu0 0.0
  %2362 = vmatpush2.msra.mxu0 0.0
  %2363 = vmatprep.subr.mxu0 0.0
  %2364 = vmatpush2.msra.mxu0 0.0
  %2365 = vmatprep.subr.mxu0 0.0
  %2366 = vmatpush2.msra.mxu0 0.0
  %2367 = vmatprep.subr.mxu0 0.0
  %2368 = vmatpush2.msra.mxu0 0.0
  %2369 = vmatprep.subr.mxu0 0.0
  %2370 = vmatpush2.msra.mxu0 0.0
  %2371 = vmatprep.subr.mxu0 0.0
  %2372 = vmatpush2.msra.mxu0 0.0
  %2373 = vmatprep.subr.mxu0 0.0
  %2374 = vmatpush2.msra.mxu0 0.0
  %2375 = vmatprep.subr.mxu0 0.0
  %2376 = vmatpush2.msra.mxu0 0.0
  %2377 = vmatprep.subr.mxu0 0.0
  %2378 = vmatpush2.msra.mxu0 0.0
  %2379 = vmatprep.subr.mxu0 0.0
  %2380 = vmatpush2.msra.mxu0 0.0
  %2381 = vmatprep.subr.mxu0 0.0
  %2382 = vmatpush2.msra.mxu0 0.0
  %2383 = vmatprep.subr.mxu0 0.0
  %2384 = vmatpush2.msra.mxu0 0.0
  %2385 = vmatprep.mubr.f32.mxu0 0.0
  %2386 = vmatmul.mubr.f32.gmra.mxu0 %v2316
  %v2387 = vpop.f32.mrf.mxu0
  %v2388 = vadd.f32 %v2314, %v2387
  %v2389 = vpop.f32.mrf.mxu0
  %2390 = vmatprep.mubr.f32.mxu0 0.0
  %2391 = vmatmul.mubr.f32.gmra.mxu0 %v2319
  %v2392 = vpop.f32.mrf.mxu0
  %v2393 = vadd.f32 %v2314, %v2392
  %v2394 = vpop.f32.mrf.mxu0
  %2395 = vdwg.mxu0
  %v2396 = vadd.f32 %v1364, %v2388
  %v2397 = vadd.f32 %v1365, %v2393
  %v2398 = vsel %vm46, %v2396, 0.0
  %2399 = vadd.xlane.f32.xlu0 %v2398
  %v2400 = vpop.xlane.xlu0 %2399
  %v2401 = vsel %vm46, %v2397, 0.0
  %2402 = vadd.xlane.f32.xlu0 %v2401
  %v2403 = vpop.xlane.xlu0 %2402
  %v2404 = vmul.f32 %v2400, %v1068
  %v2405 = vmul.f32 %v2403, %v1068
  %v2406 = vmul.f32 %v2396, %v2396
  %v2407 = vmul.f32 %v2397, %v2397
  %v2408 = vsel %vm46, %v2406, 0.0
  %2409 = vadd.xlane.f32.xlu0 %v2408
  %v2410 = vpop.xlane.xlu0 %2409
  %v2411 = vsel %vm46, %v2407, 0.0
  %2412 = vadd.xlane.f32.xlu0 %v2411
  %v2413 = vpop.xlane.xlu0 %2412
  %v2414 = vmul.f32 %v2410, %v1068
  %v2415 = vmul.f32 %v2413, %v1068
  %v2416 = vmul.f32 %v2404, %v2404
  %v2417 = vmul.f32 %v2405, %v2405
  %v2418 = vsub.f32 %v2414, %v2416
  %v2419 = vsub.f32 %v2415, %v2417
  %v2420 = vsub.f32 %v2396, %v2404
  %v2421 = vsub.f32 %v2397, %v2405
  %v2422 = vadd.f32 %v2418, 1e-05
  %v2423 = vadd.f32 %v2419, 1e-05
  %v2424 = vrsqrt.pop %v2422
  %v2425 = vrsqrt.pop %v2423
  %v2426 = vmul.f32 %v2420, %v2424
  %v2427 = vmul.f32 %v2421, %v2425
  %v2428 = vlaneseq
  %v2429 = vshrl.u32 %v2428, 7
  %v2430 = vsub.s32 3, %v2429
  %v2431 = vrot.slane %v1381, %v2430
  %v2432 = vmul.f32 %v2426, %v2431
  %v2433 = vmul.f32 %v2427, %v2431
  %v2434 = vlaneseq
  %v2435 = vshrl.u32 %v2434, 7
  %v2436 = vsub.s32 4, %v2435
  %v2437 = vrot.slane %v1381, %v2436
  %v2438 = vadd.f32 %v2432, %v2437
  %v2439 = vadd.f32 %v2433, %v2437
  %v2440 = vlaneseq
  %v2441 = vshrl.u32 %v2440, 7
  %v2442 = vsub.s32 1, %v2441
  %v2443 = vrot.slane %v1381, %v2442
  %2448 = vrot.lane.b32.xlu0 %v1372, 96
  %v2449 = vpop.permute.xlu0 %2448
  %2450 = vrot.lane.b32.xlu0 %v1373, 96
  %v2451 = vpop.permute.xlu0 %2450
  %2452 = vrot.lane.b32.xlu0 %v1374, 96
  %v2453 = vpop.permute.xlu0 %2452
  %2454 = vrot.lane.b32.xlu0 %v1375, 96
  %v2455 = vpop.permute.xlu0 %2454
  %v2461 = vsel %vm46, %v2438, 0
  %v2464 = vsel %vm46, %v2439, 0
  %2466 = vmatprep.subr.mxu0 0.0
  %2467 = vmatpush1.msra.mxu0 0.0
  %2468 = vmatprep.subr.mxu0 0.0
  %2469 = vmatpush1.msra.mxu0 0.0
  %2470 = vmatprep.subr.mxu0 0.0
  %2471 = vmatpush1.msra.mxu0 0.0
  %2472 = vmatprep.subr.mxu0 0.0
  %2473 = vmatpush1.msra.mxu0 0.0
  %2474 = vmatprep.subr.mxu0 0.0
  %2475 = vmatpush1.msra.mxu0 0.0
  %2476 = vmatprep.subr.mxu0 0.0
  %2477 = vmatpush1.msra.mxu0 0.0
  %2478 = vmatprep.subr.mxu0 0.0
  %2479 = vmatpush1.msra.mxu0 0.0
  %2480 = vmatprep.subr.mxu0 0.0
  %2481 = vmatpush1.msra.mxu0 0.0
  %2482 = vmatprep.subr.mxu0 0.0
  %2483 = vmatpush1.msra.mxu0 0.0
  %2484 = vmatprep.subr.mxu0 0.0
  %2485 = vmatpush1.msra.mxu0 0.0
  %2486 = vmatprep.subr.mxu0 0.0
  %2487 = vmatpush1.msra.mxu0 0.0
  %2488 = vmatprep.subr.mxu0 0.0
  %2489 = vmatpush1.msra.mxu0 0.0
  %2490 = vmatprep.subr.mxu0 0.0
  %2491 = vmatpush1.msra.mxu0 %v2455
  %2492 = vmatprep.subr.mxu0 0.0
  %2493 = vmatpush1.msra.mxu0 %v2453
  %2494 = vmatprep.subr.mxu0 0.0
  %2495 = vmatpush1.msra.mxu0 %v2451
  %2496 = vmatprep.subr.mxu0 0.0
  %2497 = vmatpush1.msra.mxu0 %v2449
  %2498 = vmatprep.subr.mxu0 0.0
  %2499 = vmatpush2.msra.mxu0 0.0
  %2500 = vmatprep.subr.mxu0 0.0
  %2501 = vmatpush2.msra.mxu0 0.0
  %2502 = vmatprep.subr.mxu0 0.0
  %2503 = vmatpush2.msra.mxu0 0.0
  %2504 = vmatprep.subr.mxu0 0.0
  %2505 = vmatpush2.msra.mxu0 0.0
  %2506 = vmatprep.subr.mxu0 0.0
  %2507 = vmatpush2.msra.mxu0 0.0
  %2508 = vmatprep.subr.mxu0 0.0
  %2509 = vmatpush2.msra.mxu0 0.0
  %2510 = vmatprep.subr.mxu0 0.0
  %2511 = vmatpush2.msra.mxu0 0.0
  %2512 = vmatprep.subr.mxu0 0.0
  %2513 = vmatpush2.msra.mxu0 0.0
  %2514 = vmatprep.subr.mxu0 0.0
  %2515 = vmatpush2.msra.mxu0 0.0
  %2516 = vmatprep.subr.mxu0 0.0
  %2517 = vmatpush2.msra.mxu0 0.0
  %2518 = vmatprep.subr.mxu0 0.0
  %2519 = vmatpush2.msra.mxu0 0.0
  %2520 = vmatprep.subr.mxu0 0.0
  %2521 = vmatpush2.msra.mxu0 0.0
  %2522 = vmatprep.subr.mxu0 0.0
  %2523 = vmatpush2.msra.mxu0 0.0
  %2524 = vmatprep.subr.mxu0 0.0
  %2525 = vmatpush2.msra.mxu0 0.0
  %2526 = vmatprep.subr.mxu0 0.0
  %2527 = vmatpush2.msra.mxu0 0.0
  %2528 = vmatprep.subr.mxu0 0.0
  %2529 = vmatpush2.msra.mxu0 0.0
  %2530 = vmatprep.mubr.f32.mxu0 0.0
  %2531 = vmatmul.mubr.f32.gmra.mxu0 %v2461
  %v2532 = vpop.f32.mrf.mxu0
  %v2533 = vadd.f32 %v2443, %v2532
  %v2534 = vpop.f32.mrf.mxu0
  %2535 = vmatprep.mubr.f32.mxu0 0.0
  %2536 = vmatmul.mubr.f32.gmra.mxu0 %v2464
  %v2537 = vpop.f32.mrf.mxu0
  %v2538 = vadd.f32 %v2443, %v2537
  %v2539 = vpop.f32.mrf.mxu0
  %2540 = vdwg.mxu0
  %v2541 = vmax.f32 %v2533, 0.0
  %v2542 = vmax.f32 %v2538, 0.0
  %v2543 = vlaneseq
  %v2544 = vshrl.u32 %v2543, 7
  %v2545 = vsub.s32 2, %v2544
  %v2546 = vrot.slane %v1381, %v2545
  %2551 = vrot.lane.b32.xlu0 %v1372, 32
  %v2552 = vpop.permute.xlu0 %2551
  %2553 = vrot.lane.b32.xlu0 %v1373, 32
  %v2554 = vpop.permute.xlu0 %2553
  %2555 = vrot.lane.b32.xlu0 %v1374, 32
  %v2556 = vpop.permute.xlu0 %2555
  %2557 = vrot.lane.b32.xlu0 %v1375, 32
  %v2558 = vpop.permute.xlu0 %2557
  %2559 = vrot.lane.b32.xlu0 %v1376, 32
  %v2560 = vpop.permute.xlu0 %2559
  %2561 = vrot.lane.b32.xlu0 %v1377, 32
  %v2562 = vpop.permute.xlu0 %2561
  %2563 = vrot.lane.b32.xlu0 %v1378, 32
  %v2564 = vpop.permute.xlu0 %2563
  %2565 = vrot.lane.b32.xlu0 %v1379, 32
  %v2566 = vpop.permute.xlu0 %2565
  %v2576 = vsel %vm1240, %v2541, 0
  %v2579 = vsel %vm1240, %v2542, 0
  %2581 = vmatprep.subr.mxu0 0.0
  %2582 = vmatpush1.msra.mxu0 0.0
  %2583 = vmatprep.subr.mxu0 0.0
  %2584 = vmatpush1.msra.mxu0 0.0
  %2585 = vmatprep.subr.mxu0 0.0
  %2586 = vmatpush1.msra.mxu0 0.0
  %2587 = vmatprep.subr.mxu0 0.0
  %2588 = vmatpush1.msra.mxu0 0.0
  %2589 = vmatprep.subr.mxu0 0.0
  %2590 = vmatpush1.msra.mxu0 0.0
  %2591 = vmatprep.subr.mxu0 0.0
  %2592 = vmatpush1.msra.mxu0 0.0
  %2593 = vmatprep.subr.mxu0 0.0
  %2594 = vmatpush1.msra.mxu0 0.0
  %2595 = vmatprep.subr.mxu0 0.0
  %2596 = vmatpush1.msra.mxu0 0.0
  %2597 = vmatprep.subr.mxu0 0.0
  %2598 = vmatpush1.msra.mxu0 %v2566
  %2599 = vmatprep.subr.mxu0 0.0
  %2600 = vmatpush1.msra.mxu0 %v2564
  %2601 = vmatprep.subr.mxu0 0.0
  %2602 = vmatpush1.msra.mxu0 %v2562
  %2603 = vmatprep.subr.mxu0 0.0
  %2604 = vmatpush1.msra.mxu0 %v2560
  %2605 = vmatprep.subr.mxu0 0.0
  %2606 = vmatpush1.msra.mxu0 %v2558
  %2607 = vmatprep.subr.mxu0 0.0
  %2608 = vmatpush1.msra.mxu0 %v2556
  %2609 = vmatprep.subr.mxu0 0.0
  %2610 = vmatpush1.msra.mxu0 %v2554
  %2611 = vmatprep.subr.mxu0 0.0
  %2612 = vmatpush1.msra.mxu0 %v2552
  %2613 = vmatprep.subr.mxu0 0.0
  %2614 = vmatpush2.msra.mxu0 0.0
  %2615 = vmatprep.subr.mxu0 0.0
  %2616 = vmatpush2.msra.mxu0 0.0
  %2617 = vmatprep.subr.mxu0 0.0
  %2618 = vmatpush2.msra.mxu0 0.0
  %2619 = vmatprep.subr.mxu0 0.0
  %2620 = vmatpush2.msra.mxu0 0.0
  %2621 = vmatprep.subr.mxu0 0.0
  %2622 = vmatpush2.msra.mxu0 0.0
  %2623 = vmatprep.subr.mxu0 0.0
  %2624 = vmatpush2.msra.mxu0 0.0
  %2625 = vmatprep.subr.mxu0 0.0
  %2626 = vmatpush2.msra.mxu0 0.0
  %2627 = vmatprep.subr.mxu0 0.0
  %2628 = vmatpush2.msra.mxu0 0.0
  %2629 = vmatprep.subr.mxu0 0.0
  %2630 = vmatpush2.msra.mxu0 0.0
  %2631 = vmatprep.subr.mxu0 0.0
  %2632 = vmatpush2.msra.mxu0 0.0
  %2633 = vmatprep.subr.mxu0 0.0
  %2634 = vmatpush2.msra.mxu0 0.0
  %2635 = vmatprep.subr.mxu0 0.0
  %2636 = vmatpush2.msra.mxu0 0.0
  %2637 = vmatprep.subr.mxu0 0.0
  %2638 = vmatpush2.msra.mxu0 0.0
  %2639 = vmatprep.subr.mxu0 0.0
  %2640 = vmatpush2.msra.mxu0 0.0
  %2641 = vmatprep.subr.mxu0 0.0
  %2642 = vmatpush2.msra.mxu0 0.0
  %2643 = vmatprep.subr.mxu0 0.0
  %2644 = vmatpush2.msra.mxu0 0.0
  %2645 = vmatprep.mubr.f32.mxu0 0.0
  %2646 = vmatmul.mubr.f32.gmra.mxu0 %v2576
  %v2647 = vpop.f32.mrf.mxu0
  %v2648 = vadd.f32 %v2546, %v2647
  %v2649 = vpop.f32.mrf.mxu0
  %2650 = vmatprep.mubr.f32.mxu0 0.0
  %2651 = vmatmul.mubr.f32.gmra.mxu0 %v2579
  %v2652 = vpop.f32.mrf.mxu0
  %v2653 = vadd.f32 %v2546, %v2652
  %v2654 = vpop.f32.mrf.mxu0
  %2655 = vdwg.mxu0
  %v2656 = vadd.f32 %v2438, %v2648
  %v2657 = vadd.f32 %v2439, %v2653
  %v2658 = vsel %vm46, %v2656, 0.0
  %2659 = vadd.xlane.f32.xlu0 %v2658
  %v2660 = vpop.xlane.xlu0 %2659
  %v2661 = vsel %vm46, %v2657, 0.0
  %2662 = vadd.xlane.f32.xlu0 %v2661
  %v2663 = vpop.xlane.xlu0 %2662
  %v2664 = vmul.f32 %v2660, %v1068
  %v2665 = vmul.f32 %v2663, %v1068
  %v2666 = vmul.f32 %v2656, %v2656
  %v2667 = vmul.f32 %v2657, %v2657
  %v2668 = vsel %vm46, %v2666, 0.0
  %2669 = vadd.xlane.f32.xlu0 %v2668
  %v2670 = vpop.xlane.xlu0 %2669
  %v2671 = vsel %vm46, %v2667, 0.0
  %2672 = vadd.xlane.f32.xlu0 %v2671
  %v2673 = vpop.xlane.xlu0 %2672
  %v2674 = vmul.f32 %v2670, %v1068
  %v2675 = vmul.f32 %v2673, %v1068
  %v2676 = vmul.f32 %v2664, %v2664
  %v2677 = vmul.f32 %v2665, %v2665
  %v2678 = vsub.f32 %v2674, %v2676
  %v2679 = vsub.f32 %v2675, %v2677
  %v2680 = vsub.f32 %v2656, %v2664
  %v2681 = vsub.f32 %v2657, %v2665
  %v2682 = vadd.f32 %v2678, 1e-05
  %v2683 = vadd.f32 %v2679, 1e-05
  %v2684 = vrsqrt.pop %v2682
  %v2685 = vrsqrt.pop %v2683
  %v2686 = vmul.f32 %v2680, %v2684
  %v2687 = vmul.f32 %v2681, %v2685
  %v2688 = vlaneseq
  %v2689 = vshrl.u32 %v2688, 7
  %v2690 = vsub.s32 5, %v2689
  %v2691 = vrot.slane %v1381, %v2690
  %v2692 = vmul.f32 %v2686, %v2691
  %v2693 = vmul.f32 %v2687, %v2691
  %v2694 = vlaneseq
  %v2695 = vshrl.u32 %v2694, 7
  %v2696 = vsub.s32 6, %v2695
  %v2697 = vrot.slane %v1381, %v2696
  %v2698 = vadd.f32 %v2692, %v2697
  %v2699 = vadd.f32 %v2693, %v2697
  %v2700 = vlaneseq
  %v2701 = vshrl.u32 %v2700, 7
  %v2702 = vsub.s32 0, %v2701
  %v2703 = vrot.slane %v26, %v2702
  %v2705 = vsel %vm46, %v2698, 0
  %v2708 = vsel %vm46, %v2699, 0
  %2710 = vmatprep.subr.mxu0 0.0
  %2711 = vmatpush1.msra.mxu0 0.0
  %2712 = vmatprep.subr.mxu0 0.0
  %2713 = vmatpush1.msra.mxu0 0.0
  %2714 = vmatprep.subr.mxu0 0.0
  %2715 = vmatpush1.msra.mxu0 0.0
  %2716 = vmatprep.subr.mxu0 0.0
  %2717 = vmatpush1.msra.mxu0 0.0
  %2718 = vmatprep.subr.mxu0 0.0
  %2719 = vmatpush1.msra.mxu0 0.0
  %2720 = vmatprep.subr.mxu0 0.0
  %2721 = vmatpush1.msra.mxu0 0.0
  %2722 = vmatprep.subr.mxu0 0.0
  %2723 = vmatpush1.msra.mxu0 0.0
  %2724 = vmatprep.subr.mxu0 0.0
  %2725 = vmatpush1.msra.mxu0 0.0
  %2726 = vmatprep.subr.mxu0 0.0
  %2727 = vmatpush1.msra.mxu0 0.0
  %2728 = vmatprep.subr.mxu0 0.0
  %2729 = vmatpush1.msra.mxu0 0.0
  %2730 = vmatprep.subr.mxu0 0.0
  %2731 = vmatpush1.msra.mxu0 0.0
  %2732 = vmatprep.subr.mxu0 0.0
  %2733 = vmatpush1.msra.mxu0 0.0
  %2734 = vmatprep.subr.mxu0 0.0
  %2735 = vmatpush1.msra.mxu0 %v25
  %2736 = vmatprep.subr.mxu0 0.0
  %2737 = vmatpush1.msra.mxu0 %v24
  %2738 = vmatprep.subr.mxu0 0.0
  %2739 = vmatpush1.msra.mxu0 %v23
  %2740 = vmatprep.subr.mxu0 0.0
  %2741 = vmatpush1.msra.mxu0 %v22
  %2742 = vmatprep.subr.mxu0 0.0
  %2743 = vmatpush2.msra.mxu0 0.0
  %2744 = vmatprep.subr.mxu0 0.0
  %2745 = vmatpush2.msra.mxu0 0.0
  %2746 = vmatprep.subr.mxu0 0.0
  %2747 = vmatpush2.msra.mxu0 0.0
  %2748 = vmatprep.subr.mxu0 0.0
  %2749 = vmatpush2.msra.mxu0 0.0
  %2750 = vmatprep.subr.mxu0 0.0
  %2751 = vmatpush2.msra.mxu0 0.0
  %2752 = vmatprep.subr.mxu0 0.0
  %2753 = vmatpush2.msra.mxu0 0.0
  %2754 = vmatprep.subr.mxu0 0.0
  %2755 = vmatpush2.msra.mxu0 0.0
  %2756 = vmatprep.subr.mxu0 0.0
  %2757 = vmatpush2.msra.mxu0 0.0
  %2758 = vmatprep.subr.mxu0 0.0
  %2759 = vmatpush2.msra.mxu0 0.0
  %2760 = vmatprep.subr.mxu0 0.0
  %2761 = vmatpush2.msra.mxu0 0.0
  %2762 = vmatprep.subr.mxu0 0.0
  %2763 = vmatpush2.msra.mxu0 0.0
  %2764 = vmatprep.subr.mxu0 0.0
  %2765 = vmatpush2.msra.mxu0 0.0
  %2766 = vmatprep.subr.mxu0 0.0
  %2767 = vmatpush2.msra.mxu0 0.0
  %2768 = vmatprep.subr.mxu0 0.0
  %2769 = vmatpush2.msra.mxu0 0.0
  %2770 = vmatprep.subr.mxu0 0.0
  %2771 = vmatpush2.msra.mxu0 0.0
  %2772 = vmatprep.subr.mxu0 0.0
  %2773 = vmatpush2.msra.mxu0 0.0
  %2774 = vmatprep.mubr.f32.mxu0 0.0
  %2775 = vmatmul.mubr.f32.gmra.mxu0 %v2705
  %v2776 = vpop.f32.mrf.mxu0
  %v2777 = vadd.f32 %v2703, %v2776
  %v2778 = vpop.f32.mrf.mxu0
  %2779 = vmatprep.mubr.f32.mxu0 0.0
  %2780 = vmatmul.mubr.f32.gmra.mxu0 %v2708
  %v2781 = vpop.f32.mrf.mxu0
  %v2782 = vadd.f32 %v2703, %v2781
  %v2783 = vpop.f32.mrf.mxu0
  %2784 = vdwg.mxu0
  %2785 = vst [vmem:[%s5] sm:$0xff] %v2777
  %2786 = vst [vmem:[%s5 + $0x8] sm:$0xff] %v2782
  // Predicated region
  $region22: #{transformer_forward.1} parent=0 // pred_check
    _
  $region23: #{transformer_forward.1} parent=0 // pred_check_branch
    %2788 = sbr.rel (0) target = $region25
  $region24: #{transformer_forward.1} parent=0 // pred_region
    _
  $region25: #{transformer_forward.1} parent=0 // pred_fallthru
    _
  // Predicated region
  $region26: #{transformer_forward.1} parent=0 // pred_check
    _
  $region27: #{transformer_forward.1} parent=0 // pred_check_branch
    %2790 = sbr.rel (0) target = $region29
  $region28: #{transformer_forward.1} parent=0 // pred_region
    _
  $region29: #{transformer_forward.1} parent=0 // pred_fallthru
    _

</llo_original>
